<compile_context>
chip_gen: v7x
topology: tpu7x:2x2x1
jax: 0.10.0
libtpu: 0.0.40
codegen_flags: <defaults>
</compile_context>

<pallas_src>
import functools

import jax
import jax.numpy as jnp
import numpy as np
from jax import lax
from jax.experimental import pallas as pl
from jax.experimental.pallas import tpu as pltpu


# ----------------------------- Pallas kernels ------------------------------

def _conv_relu_pool_kernel(x_ref, bw_ref, sel_ref, b_ref, o_ref, *, H):
    """Fused conv3x3(pad=1) + bias + ReLU + maxpool2x2 for one image.

    x_ref  : (1, Hp, Wp*Cin)        padded input image, lane-dense (w,c) columns
    bw_ref : (2, 3, Wp*Cin, Wo*Cout) per (w-phase q, row-tap dh) conv weight matrices
    sel_ref: (2, Ho, H)              0/1 even/odd row selection matrices (H-pool)
    b_ref  : (1, Wo*Cout)            channel bias tiled over Wo
    o_ref  : (1, Ho, Wo*Cout)        pooled output, lane-dense
    """
    x2 = x_ref[0]                                    # (Hp, Wp*Cin)

    # W-phase conv outputs (pool over W folded into the weight matrices).
    zmax = None
    for q in range(2):                               # even / odd output column phase
        acc = None
        for dh in range(3):                          # row taps of the 3x3 kernel
            a = x2[dh:dh + H, :]                     # (H, Wp*Cin) static slice
            t = jnp.dot(a, bw_ref[q, dh],
                        preferred_element_type=jnp.float32)   # (H, Wo*Cout) MXU
            acc = t if acc is None else acc + t
        zmax = acc if zmax is None else jnp.maximum(zmax, acc)   # max over W-pairs

    # H-pool: select even/odd rows with 0/1 matmuls (exact), then elementwise max.
    ze = jnp.dot(sel_ref[0], zmax, preferred_element_type=jnp.float32)  # (Ho, Wo*Cout)
    zo = jnp.dot(sel_ref[1], zmax, preferred_element_type=jnp.float32)
    pooled = jnp.maximum(ze, zo)

    # bias + ReLU (commutes with the max-pool), single lane-dense store.
    o_ref[0] = jnp.maximum(pooled + b_ref[...], 0.0)


def _mlp_kernel(x_ref, w1_ref, b1_ref, w2_ref, b2_ref, w3_ref, b3_ref, o_ref):
    h = jnp.dot(x_ref[...], w1_ref[...], preferred_element_type=jnp.float32)
    h = jnp.maximum(h + b1_ref[...], 0.0)
    h = jnp.dot(h, w2_ref[...], preferred_element_type=jnp.float32)
    h = jnp.maximum(h + b2_ref[...], 0.0)
    o_ref[...] = jnp.dot(h, w3_ref[...], preferred_element_type=jnp.float32) + b3_ref[...]


# ----------------------------- Pallas wrappers ------------------------------

_COMPILER_PARAMS = pltpu.CompilerParams(
    dimension_semantics=("parallel",),          # shard batch across TCs (v7x megacore)
    vmem_limit_bytes=32 * 1024 * 1024,          # explicit; well under v7x 64 MiB/TC
)


def conv_relu_pool(xp, bw, sel, bias_t, *, H, Ho, WoC):
    """xp: (N, Hp, Wp*Cin) padded input. Returns (N, Ho, WoC) pooled activations."""
    N, Hp, KC = xp.shape
    kern = functools.partial(_conv_relu_pool_kernel, H=H)
    return pl.pallas_call(
        kern,
        grid=(N,),
        out_shape=jax.ShapeDtypeStruct((N, Ho, WoC), jnp.float32),
        in_specs=[
            pl.BlockSpec((1, Hp, KC), lambda i: (i, 0, 0)),     # per-image tile
            pl.BlockSpec(bw.shape, lambda i: (0, 0, 0, 0)),     # weights: VMEM-resident
            pl.BlockSpec(sel.shape, lambda i: (0, 0, 0)),       # selectors: resident
            pl.BlockSpec(bias_t.shape, lambda i: (0, 0)),       # bias: resident
        ],
        out_specs=pl.BlockSpec((1, Ho, WoC), lambda i: (i, 0, 0)),
        compiler_params=_COMPILER_PARAMS,
    )(xp, bw, sel, bias_t)


def classifier_mlp(x, w1, b1, w2, b2, w3, b3):
    M, K = x.shape
    n1, n2, n3 = w1.shape[1], w2.shape[1], w3.shape[1]
    TM = M if M <= 256 else 256                     # tile batch, weights stay resident
    return pl.pallas_call(
        _mlp_kernel,
        grid=(pl.cdiv(M, TM),),
        out_shape=jax.ShapeDtypeStruct((M, n3), jnp.float32),
        in_specs=[pl.BlockSpec((TM, K), lambda i: (i, 0)),
                  pl.BlockSpec((K, n1), lambda i: (0, 0)),
                  pl.BlockSpec((1, n1), lambda i: (0, 0)),
                  pl.BlockSpec((n1, n2), lambda i: (0, 0)),
                  pl.BlockSpec((1, n2), lambda i: (0, 0)),
                  pl.BlockSpec((n2, n3), lambda i: (0, 0)),
                  pl.BlockSpec((1, n3), lambda i: (0, 0))],
        out_specs=pl.BlockSpec((TM, n3), lambda i: (i, 0)),
        compiler_params=_COMPILER_PARAMS,
    )(x, w1, b1, w2, b2, w3, b3)


# --------------------- host-side (one-time) weight preparation ---------------------

def _make_conv_pool_mats(w_oihw, b, *, Wp, Cin, W):
    """Build (2,3,Wp*Cin,Wo*Cout) weight mats with the W-pool phase folded in, + tiled bias."""
    w = np.asarray(w_oihw, np.float32)              # (Cout, Cin, 3, 3)
    Cout = w.shape[0]
    Wo = W // 2
    bw = np.zeros((2, 3, Wp * Cin, Wo * Cout), np.float32)
    for q in range(2):
        for dh in range(3):
            for wo in range(Wo):
                for dw in range(3):
                    w_in = 2 * wo + q + dw
                    bw[q, dh,
                       w_in * Cin:(w_in + 1) * Cin,
                       wo * Cout:(wo + 1) * Cout] = w[:, :, dh, dw].T   # (Cin, Cout)
    bias_t = np.tile(np.asarray(b, np.float32), Wo)[None, :]            # (1, Wo*Cout)
    return jnp.asarray(bw), jnp.asarray(bias_t)


def _make_row_selectors(H):
    Ho = H // 2
    s = np.zeros((2, Ho, H), np.float32)
    s[0, np.arange(Ho), 2 * np.arange(Ho)] = 1.0
    s[1, np.arange(Ho), 2 * np.arange(Ho) + 1] = 1.0
    return jnp.asarray(s)


def _flatten_permutation(Ho, Wo, Cout):
    """Map our flatten index (ho, wo, co) -> PyTorch NCHW flatten index (co, ho, wo)."""
    f = np.arange(Ho * Wo * Cout)
    ho = f // (Wo * Cout)
    rem = f % (Wo * Cout)
    wo = rem // Cout
    co = rem % Cout
    return co * (Ho * Wo) + ho * Wo + wo


def prepare_pallas_params(p):
    """Convert PyTorch-layout parameters into kernel-ready arrays (host-side, one time)."""
    bw1, b1t = _make_conv_pool_mats(p['conv1_w'], p['conv1_b'], Wp=32, Cin=1, W=28)
    bw2, b2t = _make_conv_pool_mats(p['conv2_w'], p['conv2_b'], Wp=16, Cin=16, W=14)
    perm = _flatten_permutation(7, 7, 32)
    fc1_w = jnp.asarray(np.asarray(p['fc1_w'], np.float32)[perm, :])   # fold NCHW flatten
    return {
        'bw1': bw1, 'b1t': b1t, 'sel1': _make_row_selectors(28),
        'bw2': bw2, 'b2t': b2t, 'sel2': _make_row_selectors(14),
        'fc1_w': fc1_w, 'fc1_b': jnp.asarray(p['fc1_b']).reshape(1, -1),
        'fc2_w': jnp.asarray(p['fc2_w']), 'fc2_b': jnp.asarray(p['fc2_b']).reshape(1, -1),
        'fc3_w': jnp.asarray(p['fc3_w']), 'fc3_b': jnp.asarray(p['fc3_b']).reshape(1, -1),
    }


# ----------------------------- Full forward ---------------------------------

def conv_classifier_v1_forward(x_nchw, pp):
    """Eval-mode forward pass of ConvClassifier_v1 (dropout = identity)."""
    N = x_nchw.shape[0]
    x = x_nchw[:, 0, :, :].astype(jnp.float32)                       # (N, 28, 28), Cin=1
    xp = jnp.pad(x, ((0, 0), (1, 3), (1, 3)))                        # (N, 32, 32)

    y1 = conv_relu_pool(xp, pp['bw1'], pp['sel1'], pp['b1t'],
                        H=28, Ho=14, WoC=14 * 16)                    # (N,14,224) = NHWC (N,14,14,16)

    y1 = y1.reshape(N, 14, 14, 16)
    y1p = jnp.pad(y1, ((0, 0), (1, 1), (1, 1), (0, 0))).reshape(N, 16, 16 * 16)

    y2 = conv_relu_pool(y1p, pp['bw2'], pp['sel2'], pp['b2t'],
                        H=14, Ho=7, WoC=7 * 32)                      # (N,7,224) = NHWC (N,7,7,32)

    feat = y2.reshape(N, 7 * 7 * 32)     # fc1_w rows were permuted -> matches NCHW flatten
    return classifier_mlp(feat, pp['fc1_w'], pp['fc1_b'],
                          pp['fc2_w'], pp['fc2_b'],
                          pp['fc3_w'], pp['fc3_b'])                  # (N, 10)


# ----------------------------- Parameter init -------------------------------

def init_params(key, n1, n2):
    """PyTorch-default-style uniform(-1/sqrt(fan_in), 1/sqrt(fan_in)); PyTorch layouts.

    fc weights are stored as (in_features, out_features); fc1's input index ordering is the
    PyTorch NCHW flatten order (C, H, W)."""
    ks = jax.random.split(key, 10)

    def u(k, shape, fan_in):
        bound = 1.0 / np.sqrt(fan_in)
        return jax.random.uniform(k, shape, jnp.float32, -bound, bound)

    return {
        'conv1_w': u(ks[0], (16, 1, 3, 3), 1 * 9),
        'conv1_b': u(ks[1], (16,), 1 * 9),
        'conv2_w': u(ks[2], (32, 16, 3, 3), 16 * 9),
        'conv2_b': u(ks[3], (32,), 16 * 9),
        'fc1_w': u(ks[4], (32 * 7 * 7, n1), 32 * 7 * 7),
        'fc1_b': u(ks[5], (n1,), 32 * 7 * 7),
        'fc2_w': u(ks[6], (n1, n2), n1),
        'fc2_b': u(ks[7], (n2,), n1),
        'fc3_w': u(ks[8], (n2, 10), n2),
        'fc3_b': u(ks[9], (10,), n2),
    }


# ----------------------------- Pure-JAX reference ---------------------------

def reference_forward(x_nchw, p):
    x = jnp.transpose(x_nchw, (0, 2, 3, 1)).astype(jnp.float32)

    def conv(x, w, b):
        y = lax.conv_general_dilated(
            x, jnp.transpose(w, (2, 3, 1, 0)), window_strides=(1, 1),
            padding='SAME', dimension_numbers=('NHWC', 'HWIO', 'NHWC'),
            precision=lax.Precision.HIGHEST)
        return jnp.maximum(y + b, 0.0)

    def pool(x):
        N, H, W, C = x.shape
        return x.reshape(N, H // 2, 2, W // 2, 2, C).max(axis=(2, 4))

    x = pool(conv(x, p['conv1_w'], p['conv1_b']))
    x = pool(conv(x, p['conv2_w'], p['conv2_b']))
    x = jnp.transpose(x, (0, 3, 1, 2)).reshape(x.shape[0], -1)       # PyTorch NCHW flatten
    x = jnp.maximum(jnp.dot(x, p['fc1_w'], precision=lax.Precision.HIGHEST) + p['fc1_b'], 0.0)
    x = jnp.maximum(jnp.dot(x, p['fc2_w'], precision=lax.Precision.HIGHEST) + p['fc2_b'], 0.0)
    return jnp.dot(x, p['fc3_w'], precision=lax.Precision.HIGHEST) + p['fc3_b']


# ------------------------------------ main -----------------------------------

if __name__ == "__main__":
    key = jax.random.PRNGKey(0)
    k_params, k_x = jax.random.split(key)

    n1, n2 = 32, 16                       # small hidden sizes for the classifier
    params = init_params(k_params, n1, n2)
    pparams = prepare_pallas_params(params)   # one-time host-side prep

    # Input must be 28x28 single-channel so that flatten gives 32*7*7 features.
    x = jax.random.normal(k_x, (2, 1, 28, 28), dtype=jnp.float32)

    fwd = jax.jit(conv_classifier_v1_forward)
    logits = jax.block_until_ready(fwd(x, pparams))

    ref = jax.block_until_ready(reference_forward(x, params))
    assert logits.shape == (2, 10), logits.shape
    np.testing.assert_allclose(np.asarray(logits), np.asarray(ref),
                               rtol=1e-3, atol=1e-3)

    print("KERNEL_OK")
</pallas_src>

<mosaic_0001>
module attributes {stable_mosaic.version = 11 : i64} {
  func.func @_conv_relu_pool_kernel(%arg0: i32, %arg1: memref<1x32x32xf32, #tpu.memory_space<vmem>>, %arg2: memref<2x3x32x224xf32, #tpu.memory_space<vmem>>, %arg3: memref<2x14x28xf32, #tpu.memory_space<vmem>>, %arg4: memref<1x224xf32, #tpu.memory_space<vmem>>, %arg5: memref<1x14x224xf32, #tpu.memory_space<vmem>>) attributes {dimension_semantics = [#tpu.dimension_semantics<parallel>], iteration_bounds = array<i64: 2>, scalar_prefetch = 0 : i64, scratch_operands = 0 : i64, tpu.core_type = #tpu.core_type<tc>, window_params = [{transform_indices = @transform_0, window_bounds = array<i64: 1, 32, 32>}, {pipeline_mode = #tpu.pipeline_mode<synchronous>, transform_indices = @transform_1, window_bounds = array<i64: 2, 3, 32, 224>}, {pipeline_mode = #tpu.pipeline_mode<synchronous>, transform_indices = @transform_2, window_bounds = array<i64: 2, 14, 28>}, {pipeline_mode = #tpu.pipeline_mode<synchronous>, transform_indices = @transform_3, window_bounds = array<i64: 1, 224>}, {transform_indices = @transform_4, window_bounds = array<i64: 1, 14, 224>}]} {
    %c0 = arith.constant 0 : index
    %c0_0 = arith.constant 0 : index
    %c0_1 = arith.constant 0 : index
    %0 = vector.load %arg1[%c0, %c0_0, %c0_1] : memref<1x32x32xf32, #tpu.memory_space<vmem>>, vector<1x32x32xf32>
    %1 = vector.shape_cast %0 : vector<1x32x32xf32> to vector<32x32xf32>
    %2 = vector.extract_strided_slice %1 {offsets = [0, 0], sizes = [28, 32], strides = [1, 1]} : vector<32x32xf32> to vector<28x32xf32>
    %c0_2 = arith.constant 0 : index
    %c0_3 = arith.constant 0 : index
    %c0_4 = arith.constant 0 : index
    %c0_5 = arith.constant 0 : index
    %3 = vector.load %arg2[%c0_2, %c0_3, %c0_4, %c0_5] : memref<2x3x32x224xf32, #tpu.memory_space<vmem>>, vector<1x1x32x224xf32>
    %4 = vector.shape_cast %3 : vector<1x1x32x224xf32> to vector<32x224xf32>
    %cst = arith.constant dense<0.000000e+00> : vector<28x224xf32>
    %5 = tpu.matmul %2, %4, %cst {dimension_numbers = #tpu.dot_dimension_numbers<[1], [0], [0], [1], [0, 0, 1, 1], [], []>} : vector<28x32xf32>, vector<32x224xf32>, vector<28x224xf32> -> vector<28x224xf32>
    %6 = vector.extract_strided_slice %1 {offsets = [1, 0], sizes = [28, 32], strides = [1, 1]} : vector<32x32xf32> to vector<28x32xf32>
    %c0_6 = arith.constant 0 : index
    %c1 = arith.constant 1 : index
    %c0_7 = arith.constant 0 : index
    %c0_8 = arith.constant 0 : index
    %7 = vector.load %arg2[%c0_6, %c1, %c0_7, %c0_8] : memref<2x3x32x224xf32, #tpu.memory_space<vmem>>, vector<1x1x32x224xf32>
    %8 = vector.shape_cast %7 : vector<1x1x32x224xf32> to vector<32x224xf32>
    %cst_9 = arith.constant dense<0.000000e+00> : vector<28x224xf32>
    %9 = tpu.matmul %6, %8, %cst_9 {dimension_numbers = #tpu.dot_dimension_numbers<[1], [0], [0], [1], [0, 0, 1, 1], [], []>} : vector<28x32xf32>, vector<32x224xf32>, vector<28x224xf32> -> vector<28x224xf32>
    %10 = arith.addf %5, %9 : vector<28x224xf32>
    %11 = vector.extract_strided_slice %1 {offsets = [2, 0], sizes = [28, 32], strides = [1, 1]} : vector<32x32xf32> to vector<28x32xf32>
    %c0_10 = arith.constant 0 : index
    %c2 = arith.constant 2 : index
    %c0_11 = arith.constant 0 : index
    %c0_12 = arith.constant 0 : index
    %12 = vector.load %arg2[%c0_10, %c2, %c0_11, %c0_12] : memref<2x3x32x224xf32, #tpu.memory_space<vmem>>, vector<1x1x32x224xf32>
    %13 = vector.shape_cast %12 : vector<1x1x32x224xf32> to vector<32x224xf32>
    %cst_13 = arith.constant dense<0.000000e+00> : vector<28x224xf32>
    %14 = tpu.matmul %11, %13, %cst_13 {dimension_numbers = #tpu.dot_dimension_numbers<[1], [0], [0], [1], [0, 0, 1, 1], [], []>} : vector<28x32xf32>, vector<32x224xf32>, vector<28x224xf32> -> vector<28x224xf32>
    %15 = arith.addf %10, %14 : vector<28x224xf32>
    %16 = vector.extract_strided_slice %1 {offsets = [0, 0], sizes = [28, 32], strides = [1, 1]} : vector<32x32xf32> to vector<28x32xf32>
    %c1_14 = arith.constant 1 : index
    %c0_15 = arith.constant 0 : index
    %c0_16 = arith.constant 0 : index
    %c0_17 = arith.constant 0 : index
    %17 = vector.load %arg2[%c1_14, %c0_15, %c0_16, %c0_17] : memref<2x3x32x224xf32, #tpu.memory_space<vmem>>, vector<1x1x32x224xf32>
    %18 = vector.shape_cast %17 : vector<1x1x32x224xf32> to vector<32x224xf32>
    %cst_18 = arith.constant dense<0.000000e+00> : vector<28x224xf32>
    %19 = tpu.matmul %16, %18, %cst_18 {dimension_numbers = #tpu.dot_dimension_numbers<[1], [0], [0], [1], [0, 0, 1, 1], [], []>} : vector<28x32xf32>, vector<32x224xf32>, vector<28x224xf32> -> vector<28x224xf32>
    %20 = vector.extract_strided_slice %1 {offsets = [1, 0], sizes = [28, 32], strides = [1, 1]} : vector<32x32xf32> to vector<28x32xf32>
    %c1_19 = arith.constant 1 : index
    %c1_20 = arith.constant 1 : index
    %c0_21 = arith.constant 0 : index
    %c0_22 = arith.constant 0 : index
    %21 = vector.load %arg2[%c1_19, %c1_20, %c0_21, %c0_22] : memref<2x3x32x224xf32, #tpu.memory_space<vmem>>, vector<1x1x32x224xf32>
    %22 = vector.shape_cast %21 : vector<1x1x32x224xf32> to vector<32x224xf32>
    %cst_23 = arith.constant dense<0.000000e+00> : vector<28x224xf32>
    %23 = tpu.matmul %20, %22, %cst_23 {dimension_numbers = #tpu.dot_dimension_numbers<[1], [0], [0], [1], [0, 0, 1, 1], [], []>} : vector<28x32xf32>, vector<32x224xf32>, vector<28x224xf32> -> vector<28x224xf32>
    %24 = arith.addf %19, %23 : vector<28x224xf32>
    %25 = vector.extract_strided_slice %1 {offsets = [2, 0], sizes = [28, 32], strides = [1, 1]} : vector<32x32xf32> to vector<28x32xf32>
    %c1_24 = arith.constant 1 : index
    %c2_25 = arith.constant 2 : index
    %c0_26 = arith.constant 0 : index
    %c0_27 = arith.constant 0 : index
    %26 = vector.load %arg2[%c1_24, %c2_25, %c0_26, %c0_27] : memref<2x3x32x224xf32, #tpu.memory_space<vmem>>, vector<1x1x32x224xf32>
    %27 = vector.shape_cast %26 : vector<1x1x32x224xf32> to vector<32x224xf32>
    %cst_28 = arith.constant dense<0.000000e+00> : vector<28x224xf32>
    %28 = tpu.matmul %25, %27, %cst_28 {dimension_numbers = #tpu.dot_dimension_numbers<[1], [0], [0], [1], [0, 0, 1, 1], [], []>} : vector<28x32xf32>, vector<32x224xf32>, vector<28x224xf32> -> vector<28x224xf32>
    %29 = arith.addf %24, %28 : vector<28x224xf32>
    %30 = arith.maximumf %15, %29 : vector<28x224xf32>
    %c0_29 = arith.constant 0 : index
    %c0_30 = arith.constant 0 : index
    %c0_31 = arith.constant 0 : index
    %31 = vector.load %arg3[%c0_29, %c0_30, %c0_31] : memref<2x14x28xf32, #tpu.memory_space<vmem>>, vector<1x14x28xf32>
    %32 = vector.shape_cast %31 : vector<1x14x28xf32> to vector<14x28xf32>
    %cst_32 = arith.constant dense<0.000000e+00> : vector<14x224xf32>
    %33 = tpu.matmul %32, %30, %cst_32 {dimension_numbers = #tpu.dot_dimension_numbers<[1], [0], [0], [1], [0, 0, 1, 1], [], []>} : vector<14x28xf32>, vector<28x224xf32>, vector<14x224xf32> -> vector<14x224xf32>
    %c1_33 = arith.constant 1 : index
    %c0_34 = arith.constant 0 : index
    %c0_35 = arith.constant 0 : index
    %34 = vector.load %arg3[%c1_33, %c0_34, %c0_35] : memref<2x14x28xf32, #tpu.memory_space<vmem>>, vector<1x14x28xf32>
    %35 = vector.shape_cast %34 : vector<1x14x28xf32> to vector<14x28xf32>
    %cst_36 = arith.constant dense<0.000000e+00> : vector<14x224xf32>
    %36 = tpu.matmul %35, %30, %cst_36 {dimension_numbers = #tpu.dot_dimension_numbers<[1], [0], [0], [1], [0, 0, 1, 1], [], []>} : vector<14x28xf32>, vector<28x224xf32>, vector<14x224xf32> -> vector<14x224xf32>
    %37 = arith.maximumf %33, %36 : vector<14x224xf32>
    %c0_37 = arith.constant 0 : index
    %c0_38 = arith.constant 0 : index
    %38 = vector.load %arg4[%c0_37, %c0_38] : memref<1x224xf32, #tpu.memory_space<vmem>>, vector<1x224xf32>
    %39 = vector.broadcast %38 : vector<1x224xf32> to vector<14x224xf32>
    %40 = arith.addf %37, %39 : vector<14x224xf32>
    %cst_39 = arith.constant 0.000000e+00 : f32
    %41 = vector.broadcast %cst_39 : f32 to vector<14x224xf32>
    %42 = arith.maximumf %40, %41 : vector<14x224xf32>
    %c0_40 = arith.constant 0 : index
    %c0_41 = arith.constant 0 : index
    %c0_42 = arith.constant 0 : index
    %43 = vector.load %arg5[%c0_40, %c0_41, %c0_42] : memref<1x14x224xf32, #tpu.memory_space<vmem>>, vector<1x14x224xf32>
    %44 = vector.shape_cast %43 : vector<1x14x224xf32> to vector<14x224xf32>
    %45 = vector.shape_cast %42 : vector<14x224xf32> to vector<1x14x224xf32>
    tpu.vector_store %arg5[%c0_40, %c0_41, %c0_42], %45 {strides = array<i32>} : memref<1x14x224xf32, #tpu.memory_space<vmem>>, vector<1x14x224xf32>,
    return
  }
  func.func @transform_0(%arg0: i32) -> (i32, i32, i32) {
    %c0_i32 = arith.constant 0 : i32
    %c0_i32_0 = arith.constant 0 : i32
    %c0_i32_1 = arith.constant 0 : i32
    return %arg0, %c0_i32, %c0_i32_0 : i32, i32, i32
  }
  func.func @transform_1(%arg0: i32) -> (i32, i32, i32, i32) {
    %c0_i32 = arith.constant 0 : i32
    %c0_i32_0 = arith.constant 0 : i32
    %c0_i32_1 = arith.constant 0 : i32
    %c0_i32_2 = arith.constant 0 : i32
    %c0_i32_3 = arith.constant 0 : i32
    return %c0_i32, %c0_i32_0, %c0_i32_1, %c0_i32_2 : i32, i32, i32, i32
  }
  func.func @transform_2(%arg0: i32) -> (i32, i32, i32) {
    %c0_i32 = arith.constant 0 : i32
    %c0_i32_0 = arith.constant 0 : i32
    %c0_i32_1 = arith.constant 0 : i32
    %c0_i32_2 = arith.constant 0 : i32
    return %c0_i32, %c0_i32_0, %c0_i32_1 : i32, i32, i32
  }
  func.func @transform_3(%arg0: i32) -> (i32, i32) {
    %c0_i32 = arith.constant 0 : i32
    %c0_i32_0 = arith.constant 0 : i32
    %c0_i32_1 = arith.constant 0 : i32
    return %c0_i32, %c0_i32_0 : i32, i32
  }
  func.func @transform_4(%arg0: i32) -> (i32, i32, i32) {
    %c0_i32 = arith.constant 0 : i32
    %c0_i32_0 = arith.constant 0 : i32
    %c0_i32_1 = arith.constant 0 : i32
    return %arg0, %c0_i32, %c0_i32_0 : i32, i32, i32
  }
}

module attributes {stable_mosaic.version = 11 : i64} {
  func.func @_conv_relu_pool_kernel(%arg0: i32, %arg1: memref<1x16x256xf32, #tpu.memory_space<vmem>>, %arg2: memref<2x3x256x224xf32, #tpu.memory_space<vmem>>, %arg3: memref<2x7x14xf32, #tpu.memory_space<vmem>>, %arg4: memref<1x224xf32, #tpu.memory_space<vmem>>, %arg5: memref<1x7x224xf32, #tpu.memory_space<vmem>>) attributes {dimension_semantics = [#tpu.dimension_semantics<parallel>], iteration_bounds = array<i64: 2>, scalar_prefetch = 0 : i64, scratch_operands = 0 : i64, tpu.core_type = #tpu.core_type<tc>, window_params = [{transform_indices = @transform_0, window_bounds = array<i64: 1, 16, 256>}, {pipeline_mode = #tpu.pipeline_mode<synchronous>, transform_indices = @transform_1, window_bounds = array<i64: 2, 3, 256, 224>}, {pipeline_mode = #tpu.pipeline_mode<synchronous>, transform_indices = @transform_2, window_bounds = array<i64: 2, 7, 14>}, {pipeline_mode = #tpu.pipeline_mode<synchronous>, transform_indices = @transform_3, window_bounds = array<i64: 1, 224>}, {transform_indices = @transform_4, window_bounds = array<i64: 1, 7, 224>}]} {
    %c0 = arith.constant 0 : index
    %c0_0 = arith.constant 0 : index
    %c0_1 = arith.constant 0 : index
    %0 = vector.load %arg1[%c0, %c0_0, %c0_1] : memref<1x16x256xf32, #tpu.memory_space<vmem>>, vector<1x16x256xf32>
    %1 = vector.shape_cast %0 : vector<1x16x256xf32> to vector<16x256xf32>
    %2 = vector.extract_strided_slice %1 {offsets = [0, 0], sizes = [14, 256], strides = [1, 1]} : vector<16x256xf32> to vector<14x256xf32>
    %c0_2 = arith.constant 0 : index
    %c0_3 = arith.constant 0 : index
    %c0_4 = arith.constant 0 : index
    %c0_5 = arith.constant 0 : index
    %3 = vector.load %arg2[%c0_2, %c0_3, %c0_4, %c0_5] : memref<2x3x256x224xf32, #tpu.memory_space<vmem>>, vector<1x1x256x224xf32>
    %4 = vector.shape_cast %3 : vector<1x1x256x224xf32> to vector<256x224xf32>
    %cst = arith.constant dense<0.000000e+00> : vector<14x224xf32>
    %5 = tpu.matmul %2, %4, %cst {dimension_numbers = #tpu.dot_dimension_numbers<[1], [0], [0], [1], [0, 0, 1, 1], [], []>} : vector<14x256xf32>, vector<256x224xf32>, vector<14x224xf32> -> vector<14x224xf32>
    %6 = vector.extract_strided_slice %1 {offsets = [1, 0], sizes = [14, 256], strides = [1, 1]} : vector<16x256xf32> to vector<14x256xf32>
    %c0_6 = arith.constant 0 : index
    %c1 = arith.constant 1 : index
    %c0_7 = arith.constant 0 : index
    %c0_8 = arith.constant 0 : index
    %7 = vector.load %arg2[%c0_6, %c1, %c0_7, %c0_8] : memref<2x3x256x224xf32, #tpu.memory_space<vmem>>, vector<1x1x256x224xf32>
    %8 = vector.shape_cast %7 : vector<1x1x256x224xf32> to vector<256x224xf32>
    %cst_9 = arith.constant dense<0.000000e+00> : vector<14x224xf32>
    %9 = tpu.matmul %6, %8, %cst_9 {dimension_numbers = #tpu.dot_dimension_numbers<[1], [0], [0], [1], [0, 0, 1, 1], [], []>} : vector<14x256xf32>, vector<256x224xf32>, vector<14x224xf32> -> vector<14x224xf32>
    %10 = arith.addf %5, %9 : vector<14x224xf32>
    %11 = vector.extract_strided_slice %1 {offsets = [2, 0], sizes = [14, 256], strides = [1, 1]} : vector<16x256xf32> to vector<14x256xf32>
    %c0_10 = arith.constant 0 : index
    %c2 = arith.constant 2 : index
    %c0_11 = arith.constant 0 : index
    %c0_12 = arith.constant 0 : index
    %12 = vector.load %arg2[%c0_10, %c2, %c0_11, %c0_12] : memref<2x3x256x224xf32, #tpu.memory_space<vmem>>, vector<1x1x256x224xf32>
    %13 = vector.shape_cast %12 : vector<1x1x256x224xf32> to vector<256x224xf32>
    %cst_13 = arith.constant dense<0.000000e+00> : vector<14x224xf32>
    %14 = tpu.matmul %11, %13, %cst_13 {dimension_numbers = #tpu.dot_dimension_numbers<[1], [0], [0], [1], [0, 0, 1, 1], [], []>} : vector<14x256xf32>, vector<256x224xf32>, vector<14x224xf32> -> vector<14x224xf32>
    %15 = arith.addf %10, %14 : vector<14x224xf32>
    %16 = vector.extract_strided_slice %1 {offsets = [0, 0], sizes = [14, 256], strides = [1, 1]} : vector<16x256xf32> to vector<14x256xf32>
    %c1_14 = arith.constant 1 : index
    %c0_15 = arith.constant 0 : index
    %c0_16 = arith.constant 0 : index
    %c0_17 = arith.constant 0 : index
    %17 = vector.load %arg2[%c1_14, %c0_15, %c0_16, %c0_17] : memref<2x3x256x224xf32, #tpu.memory_space<vmem>>, vector<1x1x256x224xf32>
    %18 = vector.shape_cast %17 : vector<1x1x256x224xf32> to vector<256x224xf32>
    %cst_18 = arith.constant dense<0.000000e+00> : vector<14x224xf32>
    %19 = tpu.matmul %16, %18, %cst_18 {dimension_numbers = #tpu.dot_dimension_numbers<[1], [0], [0], [1], [0, 0, 1, 1], [], []>} : vector<14x256xf32>, vector<256x224xf32>, vector<14x224xf32> -> vector<14x224xf32>
    %20 = vector.extract_strided_slice %1 {offsets = [1, 0], sizes = [14, 256], strides = [1, 1]} : vector<16x256xf32> to vector<14x256xf32>
    %c1_19 = arith.constant 1 : index
    %c1_20 = arith.constant 1 : index
    %c0_21 = arith.constant 0 : index
    %c0_22 = arith.constant 0 : index
    %21 = vector.load %arg2[%c1_19, %c1_20, %c0_21, %c0_22] : memref<2x3x256x224xf32, #tpu.memory_space<vmem>>, vector<1x1x256x224xf32>
    %22 = vector.shape_cast %21 : vector<1x1x256x224xf32> to vector<256x224xf32>
    %cst_23 = arith.constant dense<0.000000e+00> : vector<14x224xf32>
    %23 = tpu.matmul %20, %22, %cst_23 {dimension_numbers = #tpu.dot_dimension_numbers<[1], [0], [0], [1], [0, 0, 1, 1], [], []>} : vector<14x256xf32>, vector<256x224xf32>, vector<14x224xf32> -> vector<14x224xf32>
    %24 = arith.addf %19, %23 : vector<14x224xf32>
    %25 = vector.extract_strided_slice %1 {offsets = [2, 0], sizes = [14, 256], strides = [1, 1]} : vector<16x256xf32> to vector<14x256xf32>
    %c1_24 = arith.constant 1 : index
    %c2_25 = arith.constant 2 : index
    %c0_26 = arith.constant 0 : index
    %c0_27 = arith.constant 0 : index
    %26 = vector.load %arg2[%c1_24, %c2_25, %c0_26, %c0_27] : memref<2x3x256x224xf32, #tpu.memory_space<vmem>>, vector<1x1x256x224xf32>
    %27 = vector.shape_cast %26 : vector<1x1x256x224xf32> to vector<256x224xf32>
    %cst_28 = arith.constant dense<0.000000e+00> : vector<14x224xf32>
    %28 = tpu.matmul %25, %27, %cst_28 {dimension_numbers = #tpu.dot_dimension_numbers<[1], [0], [0], [1], [0, 0, 1, 1], [], []>} : vector<14x256xf32>, vector<256x224xf32>, vector<14x224xf32> -> vector<14x224xf32>
    %29 = arith.addf %24, %28 : vector<14x224xf32>
    %30 = arith.maximumf %15, %29 : vector<14x224xf32>
    %c0_29 = arith.constant 0 : index
    %c0_30 = arith.constant 0 : index
    %c0_31 = arith.constant 0 : index
    %31 = vector.load %arg3[%c0_29, %c0_30, %c0_31] : memref<2x7x14xf32, #tpu.memory_space<vmem>>, vector<1x7x14xf32>
    %32 = vector.shape_cast %31 : vector<1x7x14xf32> to vector<7x14xf32>
    %cst_32 = arith.constant dense<0.000000e+00> : vector<7x224xf32>
    %33 = tpu.matmul %32, %30, %cst_32 {dimension_numbers = #tpu.dot_dimension_numbers<[1], [0], [0], [1], [0, 0, 1, 1], [], []>} : vector<7x14xf32>, vector<14x224xf32>, vector<7x224xf32> -> vector<7x224xf32>
    %c1_33 = arith.constant 1 : index
    %c0_34 = arith.constant 0 : index
    %c0_35 = arith.constant 0 : index
    %34 = vector.load %arg3[%c1_33, %c0_34, %c0_35] : memref<2x7x14xf32, #tpu.memory_space<vmem>>, vector<1x7x14xf32>
    %35 = vector.shape_cast %34 : vector<1x7x14xf32> to vector<7x14xf32>
    %cst_36 = arith.constant dense<0.000000e+00> : vector<7x224xf32>
    %36 = tpu.matmul %35, %30, %cst_36 {dimension_numbers = #tpu.dot_dimension_numbers<[1], [0], [0], [1], [0, 0, 1, 1], [], []>} : vector<7x14xf32>, vector<14x224xf32>, vector<7x224xf32> -> vector<7x224xf32>
    %37 = arith.maximumf %33, %36 : vector<7x224xf32>
    %c0_37 = arith.constant 0 : index
    %c0_38 = arith.constant 0 : index
    %38 = vector.load %arg4[%c0_37, %c0_38] : memref<1x224xf32, #tpu.memory_space<vmem>>, vector<1x224xf32>
    %39 = vector.broadcast %38 : vector<1x224xf32> to vector<7x224xf32>
    %40 = arith.addf %37, %39 : vector<7x224xf32>
    %cst_39 = arith.constant 0.000000e+00 : f32
    %41 = vector.broadcast %cst_39 : f32 to vector<7x224xf32>
    %42 = arith.maximumf %40, %41 : vector<7x224xf32>
    %c0_40 = arith.constant 0 : index
    %c0_41 = arith.constant 0 : index
    %c0_42 = arith.constant 0 : index
    %43 = vector.load %arg5[%c0_40, %c0_41, %c0_42] : memref<1x7x224xf32, #tpu.memory_space<vmem>>, vector<1x7x224xf32>
    %44 = vector.shape_cast %43 : vector<1x7x224xf32> to vector<7x224xf32>
    %45 = vector.shape_cast %42 : vector<7x224xf32> to vector<1x7x224xf32>
    tpu.vector_store %arg5[%c0_40, %c0_41, %c0_42], %45 {strides = array<i32>} : memref<1x7x224xf32, #tpu.memory_space<vmem>>, vector<1x7x224xf32>,
    return
  }
  func.func @transform_0(%arg0: i32) -> (i32, i32, i32) {
    %c0_i32 = arith.constant 0 : i32
    %c0_i32_0 = arith.constant 0 : i32
    %c0_i32_1 = arith.constant 0 : i32
    return %arg0, %c0_i32, %c0_i32_0 : i32, i32, i32
  }
  func.func @transform_1(%arg0: i32) -> (i32, i32, i32, i32) {
    %c0_i32 = arith.constant 0 : i32
    %c0_i32_0 = arith.constant 0 : i32
    %c0_i32_1 = arith.constant 0 : i32
    %c0_i32_2 = arith.constant 0 : i32
    %c0_i32_3 = arith.constant 0 : i32
    return %c0_i32, %c0_i32_0, %c0_i32_1, %c0_i32_2 : i32, i32, i32, i32
  }
  func.func @transform_2(%arg0: i32) -> (i32, i32, i32) {
    %c0_i32 = arith.constant 0 : i32
    %c0_i32_0 = arith.constant 0 : i32
    %c0_i32_1 = arith.constant 0 : i32
    %c0_i32_2 = arith.constant 0 : i32
    return %c0_i32, %c0_i32_0, %c0_i32_1 : i32, i32, i32
  }
  func.func @transform_3(%arg0: i32) -> (i32, i32) {
    %c0_i32 = arith.constant 0 : i32
    %c0_i32_0 = arith.constant 0 : i32
    %c0_i32_1 = arith.constant 0 : i32
    return %c0_i32, %c0_i32_0 : i32, i32
  }
  func.func @transform_4(%arg0: i32) -> (i32, i32, i32) {
    %c0_i32 = arith.constant 0 : i32
    %c0_i32_0 = arith.constant 0 : i32
    %c0_i32_1 = arith.constant 0 : i32
    return %arg0, %c0_i32, %c0_i32_0 : i32, i32, i32
  }
}

module attributes {stable_mosaic.version = 11 : i64} {
  func.func @_mlp_kernel(%arg0: i32, %arg1: memref<2x1568xf32, #tpu.memory_space<vmem>>, %arg2: memref<1568x32xf32, #tpu.memory_space<vmem>>, %arg3: memref<1x32xf32, #tpu.memory_space<vmem>>, %arg4: memref<32x16xf32, #tpu.memory_space<vmem>>, %arg5: memref<1x16xf32, #tpu.memory_space<vmem>>, %arg6: memref<16x10xf32, #tpu.memory_space<vmem>>, %arg7: memref<1x10xf32, #tpu.memory_space<vmem>>, %arg8: memref<2x10xf32, #tpu.memory_space<vmem>>) attributes {dimension_semantics = [#tpu.dimension_semantics<parallel>], iteration_bounds = array<i64: 1>, scalar_prefetch = 0 : i64, scratch_operands = 0 : i64, tpu.core_type = #tpu.core_type<tc>, window_params = [{transform_indices = @transform_0, window_bounds = array<i64: 2, 1568>}, {pipeline_mode = #tpu.pipeline_mode<synchronous>, transform_indices = @transform_1, window_bounds = array<i64: 1568, 32>}, {pipeline_mode = #tpu.pipeline_mode<synchronous>, transform_indices = @transform_2, window_bounds = array<i64: 1, 32>}, {pipeline_mode = #tpu.pipeline_mode<synchronous>, transform_indices = @transform_3, window_bounds = array<i64: 32, 16>}, {pipeline_mode = #tpu.pipeline_mode<synchronous>, transform_indices = @transform_4, window_bounds = array<i64: 1, 16>}, {pipeline_mode = #tpu.pipeline_mode<synchronous>, transform_indices = @transform_5, window_bounds = array<i64: 16, 10>}, {pipeline_mode = #tpu.pipeline_mode<synchronous>, transform_indices = @transform_6, window_bounds = array<i64: 1, 10>}, {transform_indices = @transform_7, window_bounds = array<i64: 2, 10>}]} {
    %c0 = arith.constant 0 : index
    %c0_0 = arith.constant 0 : index
    %0 = vector.load %arg1[%c0, %c0_0] : memref<2x1568xf32, #tpu.memory_space<vmem>>, vector<2x1568xf32>
    %c0_1 = arith.constant 0 : index
    %c0_2 = arith.constant 0 : index
    %1 = vector.load %arg2[%c0_1, %c0_2] : memref<1568x32xf32, #tpu.memory_space<vmem>>, vector<1568x32xf32>
    %cst = arith.constant dense<0.000000e+00> : vector<2x32xf32>
    %2 = tpu.matmul %0, %1, %cst {dimension_numbers = #tpu.dot_dimension_numbers<[1], [0], [0], [1], [0, 0, 1, 1], [], []>} : vector<2x1568xf32>, vector<1568x32xf32>, vector<2x32xf32> -> vector<2x32xf32>
    %c0_3 = arith.constant 0 : index
    %c0_4 = arith.constant 0 : index
    %3 = vector.load %arg3[%c0_3, %c0_4] : memref<1x32xf32, #tpu.memory_space<vmem>>, vector<1x32xf32>
    %4 = vector.broadcast %3 : vector<1x32xf32> to vector<2x32xf32>
    %5 = arith.addf %2, %4 : vector<2x32xf32>
    %cst_5 = arith.constant 0.000000e+00 : f32
    %6 = vector.broadcast %cst_5 : f32 to vector<2x32xf32>
    %7 = arith.maximumf %5, %6 : vector<2x32xf32>
    %c0_6 = arith.constant 0 : index
    %c0_7 = arith.constant 0 : index
    %8 = vector.load %arg4[%c0_6, %c0_7] : memref<32x16xf32, #tpu.memory_space<vmem>>, vector<32x16xf32>
    %cst_8 = arith.constant dense<0.000000e+00> : vector<2x16xf32>
    %9 = tpu.matmul %7, %8, %cst_8 {dimension_numbers = #tpu.dot_dimension_numbers<[1], [0], [0], [1], [0, 0, 1, 1], [], []>} : vector<2x32xf32>, vector<32x16xf32>, vector<2x16xf32> -> vector<2x16xf32>
    %c0_9 = arith.constant 0 : index
    %c0_10 = arith.constant 0 : index
    %10 = vector.load %arg5[%c0_9, %c0_10] : memref<1x16xf32, #tpu.memory_space<vmem>>, vector<1x16xf32>
    %11 = vector.broadcast %10 : vector<1x16xf32> to vector<2x16xf32>
    %12 = arith.addf %9, %11 : vector<2x16xf32>
    %cst_11 = arith.constant 0.000000e+00 : f32
    %13 = vector.broadcast %cst_11 : f32 to vector<2x16xf32>
    %14 = arith.maximumf %12, %13 : vector<2x16xf32>
    %c0_12 = arith.constant 0 : index
    %c0_13 = arith.constant 0 : index
    %15 = vector.load %arg6[%c0_12, %c0_13] : memref<16x10xf32, #tpu.memory_space<vmem>>, vector<16x10xf32>
    %cst_14 = arith.constant dense<0.000000e+00> : vector<2x10xf32>
    %16 = tpu.matmul %14, %15, %cst_14 {dimension_numbers = #tpu.dot_dimension_numbers<[1], [0], [0], [1], [0, 0, 1, 1], [], []>} : vector<2x16xf32>, vector<16x10xf32>, vector<2x10xf32> -> vector<2x10xf32>
    %c0_15 = arith.constant 0 : index
    %c0_16 = arith.constant 0 : index
    %17 = vector.load %arg7[%c0_15, %c0_16] : memref<1x10xf32, #tpu.memory_space<vmem>>, vector<1x10xf32>
    %18 = vector.broadcast %17 : vector<1x10xf32> to vector<2x10xf32>
    %19 = arith.addf %16, %18 : vector<2x10xf32>
    %c0_17 = arith.constant 0 : index
    %c0_18 = arith.constant 0 : index
    %20 = vector.load %arg8[%c0_17, %c0_18] : memref<2x10xf32, #tpu.memory_space<vmem>>, vector<2x10xf32>
    tpu.vector_store %arg8[%c0_17, %c0_18], %19 {strides = array<i32>} : memref<2x10xf32, #tpu.memory_space<vmem>>, vector<2x10xf32>,
    return
  }
  func.func @transform_0(%arg0: i32) -> (i32, i32) {
    %c0_i32 = arith.constant 0 : i32
    %c0_i32_0 = arith.constant 0 : i32
    return %arg0, %c0_i32 : i32, i32
  }
  func.func @transform_1(%arg0: i32) -> (i32, i32) {
    %c0_i32 = arith.constant 0 : i32
    %c0_i32_0 = arith.constant 0 : i32
    %c0_i32_1 = arith.constant 0 : i32
    return %c0_i32, %c0_i32_0 : i32, i32
  }
  func.func @transform_2(%arg0: i32) -> (i32, i32) {
    %c0_i32 = arith.constant 0 : i32
    %c0_i32_0 = arith.constant 0 : i32
    %c0_i32_1 = arith.constant 0 : i32
    return %c0_i32, %c0_i32_0 : i32, i32
  }
  func.func @transform_3(%arg0: i32) -> (i32, i32) {
    %c0_i32 = arith.constant 0 : i32
    %c0_i32_0 = arith.constant 0 : i32
    %c0_i32_1 = arith.constant 0 : i32
    return %c0_i32, %c0_i32_0 : i32, i32
  }
  func.func @transform_4(%arg0: i32) -> (i32, i32) {
    %c0_i32 = arith.constant 0 : i32
    %c0_i32_0 = arith.constant 0 : i32
    %c0_i32_1 = arith.constant 0 : i32
    return %c0_i32, %c0_i32_0 : i32, i32
  }
  func.func @transform_5(%arg0: i32) -> (i32, i32) {
    %c0_i32 = arith.constant 0 : i32
    %c0_i32_0 = arith.constant 0 : i32
    %c0_i32_1 = arith.constant 0 : i32
    return %c0_i32, %c0_i32_0 : i32, i32
  }
  func.func @transform_6(%arg0: i32) -> (i32, i32) {
    %c0_i32 = arith.constant 0 : i32
    %c0_i32_0 = arith.constant 0 : i32
    %c0_i32_1 = arith.constant 0 : i32
    return %c0_i32, %c0_i32_0 : i32, i32
  }
  func.func @transform_7(%arg0: i32) -> (i32, i32) {
    %c0_i32 = arith.constant 0 : i32
    %c0_i32_0 = arith.constant 0 : i32
    return %arg0, %c0_i32 : i32, i32
  }
}

</mosaic_0001>

<llo_original>
// kernel: conv_classifier_v1_forward.3
$region0: #{conv_classifier_v1_forward.3}
  #allocation0 [shape = 'u32[]', space=smem, size = 0x4, offset = 0x4, fixed_abs, tag = 'smem constant byte address 0x4 - core index']
  #allocation1 [shape = 'u32[144,128]{1,0:T(1,128)}', space=vmem, size = 0x12000, scoped, tag = 'internal scratch']
  %s0 = inlined_call_operand.vmem [shape: f32[2,32,32], index: 0, kind: input, shape index: {}]
  %s1 = inlined_call_operand.hbm [shape: f32[2,3,32,224], index: 1, kind: input, shape index: {}]
  %s2 = inlined_call_operand.vmem [shape: f32[2,14,28], index: 2, kind: input, shape index: {}]
  %s3 = inlined_call_operand.hbm [shape: f32[1,224], index: 3, kind: input, shape index: {}]
  %s4 = inlined_call_operand.vmem [shape: f32[2,14,224], index: 4, kind: output, shape index: {}]
  %s5 = sld [smem:[#allocation0]]
  $region57: #{conv_classifier_v1_forward.3} parent=0
    _
  %s7 = ssub.s32 1, %s5
  %s8 = scalar_select 0, %s7, %s5
  $region1: #{conv_classifier_v1_forward.3} parent=0
    #allocation2 [shape = 'u8[196608]{0}', space=vmem, size = 0x30000, scoped, tag = 'input window, operand 1, single buffered']
    #allocation3 [shape = 's32[2]{0}', space=sflag, size = 0x8, scoped, tag = 'scoped memory for conv_classifier_v1_forward.3']
    #allocation4 [shape = 'u8[1024]{0}', space=vmem, size = 0x400, scoped, tag = 'input window, operand 3, single buffered']
    #allocation5 [shape = 's32[1]{0}', space=sflag, size = 0x4, scoped, tag = 'scoped memory for conv_classifier_v1_forward.3']
    %9 = vsyncpa [#allocation3], 0
    %10 = vsyncpa [#allocation5], 0
    loop: start=0, step=1, limit=4
    $region2: #{conv_classifier_v1_forward.3} parent=1 // loop_pre_header
      _
    $region3: #{conv_classifier_v1_forward.3} parent=1 // loop_header
      %s12 = sphi 0, %s16
      %p13 = scmp.ge.s32.totalorder %s12, 4
      %s22 = sphi 0, %s24
      %s25 = sphi 0, %s22
      %s26 = sphi 0, %s25
      %s42 = sphi 0, %s26
      %s46 = sphi 0, %s46
      %s48 = sphi 0, %s46
      %s49 = sphi 0, %s48
      %s63 = sphi 0, %s49
      %s67 = sphi 0, %s67
      %s69 = sphi 0, %s67
      %s70 = sphi 0, %s69
      %s84 = sphi 0, %s70
      %s88 = sphi 0, %s88
      %s90 = sphi 0, %s88
      %s91 = sphi 0, %s90
      %s105 = sphi 0, %s91
      %s111 = sphi 0, %s113
      %s114 = sphi 0, %s111
      %s115 = sphi 0, %s114
      %s131 = sphi 0, %s115
    $region4: #{conv_classifier_v1_forward.3} parent=1 // loop_header_branch
      %15 = sbr.rel (%p13) target = $region8
    $region5: #{conv_classifier_v1_forward.3} parent=1 // loop_body
      %s17 = ssub.s32 %s12, 1
      %s18 = ssub.s32 %s12, 2
      %s19 = sadd.s32 %s12, 1
      %s20 = ssub.s32 %s12, %s19
      %p21 = scmp.eq.s32.totalorder %s20, 0
      %s23 = sadd.s32 %s22, 1
      %s24 = scalar_select %p21, %s22, %s23
      %p27 = pneg %p21
      %p28 = scmp.eq.s32.totalorder %s12, 1
      %p29 = por %p27, %p28
      %p30 = scmp.ne.s32.totalorder %s22, %s25
      %p31 = scmp.eq.s32.totalorder %s12, 0
      %p32 = por %p30, %p31
      %p33 = scmp.ne.s32.totalorder %s22, %s25
      %p34 = scmp.eq.s32.totalorder %s17, 1
      %p35 = por %p33, %p34
      %p36 = scmp.ne.s32.totalorder %s25, %s26
      %p37 = scmp.eq.s32.totalorder %s17, 0
      %p38 = por %p36, %p37
      %p39 = scmp.ne.s32.totalorder %s25, %s26
      %p40 = scmp.eq.s32.totalorder %s18, 1
      %p41 = por %p39, %p40
      %p43 = scmp.ne.s32.totalorder %s26, %s42
      %p44 = scmp.eq.s32.totalorder %s18, 0
      %p45 = por %p43, %p44
      %s47 = sadd.s32 %s46, 1
      %p50 = scmp.eq.s32.totalorder %s12, 1
      %p51 = scmp.ne.s32.totalorder %s46, %s48
      %p52 = scmp.eq.s32.totalorder %s12, 0
      %p53 = por %p51, %p52
      %p54 = scmp.ne.s32.totalorder %s46, %s48
      %p55 = scmp.eq.s32.totalorder %s17, 1
      %p56 = por %p54, %p55
      %p57 = scmp.ne.s32.totalorder %s48, %s49
      %p58 = scmp.eq.s32.totalorder %s17, 0
      %p59 = por %p57, %p58
      %p60 = scmp.ne.s32.totalorder %s48, %s49
      %p61 = scmp.eq.s32.totalorder %s18, 1
      %p62 = por %p60, %p61
      %p64 = scmp.ne.s32.totalorder %s49, %s63
      %p65 = scmp.eq.s32.totalorder %s18, 0
      %p66 = por %p64, %p65
      %s68 = sadd.s32 %s67, 1
      %p71 = scmp.eq.s32.totalorder %s12, 1
      %p72 = scmp.ne.s32.totalorder %s67, %s69
      %p73 = scmp.eq.s32.totalorder %s12, 0
      %p74 = por %p72, %p73
      %p75 = scmp.ne.s32.totalorder %s67, %s69
      %p76 = scmp.eq.s32.totalorder %s17, 1
      %p77 = por %p75, %p76
      %p78 = scmp.ne.s32.totalorder %s69, %s70
      %p79 = scmp.eq.s32.totalorder %s17, 0
      %p80 = por %p78, %p79
      %p81 = scmp.ne.s32.totalorder %s69, %s70
      %p82 = scmp.eq.s32.totalorder %s18, 1
      %p83 = por %p81, %p82
      %p85 = scmp.ne.s32.totalorder %s70, %s84
      %p86 = scmp.eq.s32.totalorder %s18, 0
      %p87 = por %p85, %p86
      %s89 = sadd.s32 %s88, 1
      %p92 = scmp.eq.s32.totalorder %s12, 1
      %p93 = scmp.ne.s32.totalorder %s88, %s90
      %p94 = scmp.eq.s32.totalorder %s12, 0
      %p95 = por %p93, %p94
      %p96 = scmp.ne.s32.totalorder %s88, %s90
      %p97 = scmp.eq.s32.totalorder %s17, 1
      %p98 = por %p96, %p97
      %p99 = scmp.ne.s32.totalorder %s90, %s91
      %p100 = scmp.eq.s32.totalorder %s17, 0
      %p101 = por %p99, %p100
      %p102 = scmp.ne.s32.totalorder %s90, %s91
      %p103 = scmp.eq.s32.totalorder %s18, 1
      %p104 = por %p102, %p103
      %p106 = scmp.ne.s32.totalorder %s91, %s105
      %p107 = scmp.eq.s32.totalorder %s18, 0
      %p108 = por %p106, %p107
      %s109 = ssub.s32 %s12, %s19
      %p110 = scmp.eq.s32.totalorder %s109, 0
      %s112 = sadd.s32 %s111, 1
      %s113 = scalar_select %p110, %s111, %s112
      %p116 = pneg %p110
      %p117 = scmp.eq.s32.totalorder %s12, 1
      %p118 = por %p116, %p117
      %p119 = scmp.ne.s32.totalorder %s111, %s114
      %p120 = scmp.eq.s32.totalorder %s12, 0
      %p121 = por %p119, %p120
      %p122 = scmp.ne.s32.totalorder %s111, %s114
      %p123 = scmp.eq.s32.totalorder %s17, 1
      %p124 = por %p122, %p123
      %p125 = scmp.ne.s32.totalorder %s114, %s115
      %p126 = scmp.eq.s32.totalorder %s17, 0
      %p127 = por %p125, %p126
      %p128 = scmp.ne.s32.totalorder %s114, %s115
      %p129 = scmp.eq.s32.totalorder %s18, 1
      %p130 = por %p128, %p129
      %p132 = scmp.ne.s32.totalorder %s115, %s131
      %p133 = scmp.eq.s32.totalorder %s18, 0
      %p134 = por %p132, %p133
      %p135 = scmp.le.s32.totalorder 1, %s12
      %p136 = scmp.lt.s32.totalorder %s12, 3
      %p137 = pnand %p135, %p136
      %p138 = pneg %p137
      // Predicated region
      $region9: #{conv_classifier_v1_forward.3} parent=5 // pred_check
        _
      $region10: #{conv_classifier_v1_forward.3} parent=5 // pred_check_branch
        %140 = sbr.rel (%p137) target = $region12
      $region11: #{conv_classifier_v1_forward.3} parent=5 // pred_region
        %s141 = ssub.s32 %s12, 1
        // Predicated region
        $region13: #{conv_classifier_v1_forward.3} parent=11 // pred_check
          %p142 = pneg %p59
        $region14: #{conv_classifier_v1_forward.3} parent=11 // pred_check_branch
          %144 = sbr.rel (%p142) target = $region16
        $region15: #{conv_classifier_v1_forward.3} parent=11 // pred_region
          %s146 = ssub.s32 6144, 6144
          %147 = vsyncadd [#allocation3], %s146
          %s148 = sshll.u32 [#allocation2], 4
          %s149 = int_to_ptr.vmem [resolvable:$true] %s148
          %154 = dma.hbm_to_vmem [thread:$0]  %s1, 6144, %s149, [#allocation3], 256, 256, 16
        $region16: #{conv_classifier_v1_forward.3} parent=11 // pred_fallthru
          _
        // Predicated region
        $region17: #{conv_classifier_v1_forward.3} parent=11 // pred_check
          %p155 = pneg %p80
        $region18: #{conv_classifier_v1_forward.3} parent=11 // pred_check_branch
          %157 = sbr.rel (%p155) target = $region20
        $region19: #{conv_classifier_v1_forward.3} parent=11 // pred_region
          _
        $region20: #{conv_classifier_v1_forward.3} parent=11 // pred_fallthru
          _
        // Predicated region
        $region21: #{conv_classifier_v1_forward.3} parent=11 // pred_check
          %p158 = pneg %p101
        $region22: #{conv_classifier_v1_forward.3} parent=11 // pred_check_branch
          %160 = sbr.rel (%p158) target = $region24
        $region23: #{conv_classifier_v1_forward.3} parent=11 // pred_region
          %s162 = ssub.s32 32, 32
          %163 = vsyncadd [#allocation5], %s162
          %s165 = sshll.u32 [#allocation4], 4
          %s166 = int_to_ptr.vmem [resolvable:$true] %s165
          %168 = dma.hbm_to_vmem [thread:$0]  %s3, 32, %s166, [#allocation5]
        $region24: #{conv_classifier_v1_forward.3} parent=11 // pred_fallthru
          _
      $region12: #{conv_classifier_v1_forward.3} parent=5 // pred_fallthru
        _
      %p169 = scmp.lt.s32.totalorder %s12, 2
      // Predicated region
      $region25: #{conv_classifier_v1_forward.3} parent=5 // pred_check
        %p170 = pneg %p169
      $region26: #{conv_classifier_v1_forward.3} parent=5 // pred_check_branch
        %172 = sbr.rel (%p170) target = $region28
      $region27: #{conv_classifier_v1_forward.3} parent=5 // pred_region
        // Predicated region
        $region29: #{conv_classifier_v1_forward.3} parent=27 // pred_check
          %p173 = pneg %p32
        $region30: #{conv_classifier_v1_forward.3} parent=27 // pred_check_branch
          %175 = sbr.rel (%p173) target = $region32
        $region31: #{conv_classifier_v1_forward.3} parent=27 // pred_region
          %p176 = scmp.lt.s32.totalorder %s12, 1
          %s177 = scalar_select %p176, %s12, 1
          %s178 = smul.addr %s177, 4
          %s179 = smul.addr %s178, 8
          %s180 = scalar_lea.vmem %s0, %s179
        $region32: #{conv_classifier_v1_forward.3} parent=27 // pred_fallthru
          _
      $region28: #{conv_classifier_v1_forward.3} parent=5 // pred_fallthru
        _
      %p181 = scmp.le.s32.totalorder 1, %s12
      %p182 = scmp.lt.s32.totalorder %s12, 3
      %p183 = pnand %p181, %p182
      %p184 = pneg %p183
      // Predicated region
      $region33: #{conv_classifier_v1_forward.3} parent=5 // pred_check
        _
      $region34: #{conv_classifier_v1_forward.3} parent=5 // pred_check_branch
        %186 = sbr.rel (%p183) target = $region36
      $region35: #{conv_classifier_v1_forward.3} parent=5 // pred_region
        %s187 = ssub.s32 %s12, 1
        // Predicated region
        $region37: #{conv_classifier_v1_forward.3} parent=35 // pred_check
          %p188 = pneg %p59
        $region38: #{conv_classifier_v1_forward.3} parent=35 // pred_check_branch
          %190 = sbr.rel (%p188) target = $region40
        $region39: #{conv_classifier_v1_forward.3} parent=35 // pred_region
          %191 = dma.done [#allocation3], 6144
        $region40: #{conv_classifier_v1_forward.3} parent=35 // pred_fallthru
          _
        // Predicated region
        $region41: #{conv_classifier_v1_forward.3} parent=35 // pred_check
          %p192 = pneg %p101
        $region42: #{conv_classifier_v1_forward.3} parent=35 // pred_check_branch
          %194 = sbr.rel (%p192) target = $region44
        $region43: #{conv_classifier_v1_forward.3} parent=35 // pred_region
          %195 = dma.done [#allocation5], 32
        $region44: #{conv_classifier_v1_forward.3} parent=35 // pred_fallthru
          _
        %p196 = scmp.lt.s32.totalorder %s17, 1
        %s197 = scalar_select %p196, %s17, 1
        %s198 = smul.addr %s197, 4
        %s199 = smul.addr %s198, 8
        %s200 = scalar_lea.vmem %s0, %s199
        %p201 = pneg %p38
        %p202 = pneg %p35
        %p203 = pneg %p59
        %p204 = pneg %p56
        %p205 = pneg %p80
        %p206 = pneg %p77
        %p207 = pneg %p101
        %p208 = pneg %p98
        %p209 = pneg %p127
        %p210 = pneg %p124
        %p211 = scmp.lt.s32.totalorder %s17, 1
        %s212 = scalar_select %p211, %s17, 1
        %s213 = smul.addr %s212, 4
        %s214 = smul.addr %s213, 8
        %s215 = scalar_lea.vmem %s4, %s214
        %p216 = scmp.lt.s32.totalorder %s17, 1
        %s217 = scalar_select %p216, %s17, 1
        %s218 = smul.addr %s217, 4
        %s219 = smul.addr %s218, 8
        %s220 = scalar_lea.vmem %s0, %s219
        %p221 = scmp.lt.s32.totalorder %s17, 1
        %s222 = scalar_select %p221, %s17, 1
        %s223 = smul.addr %s222, 4
        %s224 = smul.addr %s223, 8
        %s225 = scalar_lea.vmem %s4, %s224
        %v226 = vld [vmem:[%s220] sm:$0xff]
        %v227 = vld [vmem:[%s220 + $0x8] sm:$0xff]
        %v228 = vld [vmem:[%s220 + $0x10] sm:$0xff]
        %v229 = vld [vmem:[%s220 + $0x18] sm:$0xff]
        %v230 = vld [vmem:[#allocation2] sm:$0xff]
        %v231 = vld [vmem:[#allocation2 + $0x8] sm:$0xff]
        %v232 = vld [vmem:[#allocation2 + $0x10] sm:$0xff]
        %v233 = vld [vmem:[#allocation2 + $0x18] sm:$0xff]
        %v234 = vld [vmem:[#allocation2 + $0x20] sm:$0xff]
        %v235 = vld [vmem:[#allocation2 + $0x28] sm:$0xff]
        %v236 = vld [vmem:[#allocation2 + $0x30] sm:$0xff]
        %v237 = vld [vmem:[#allocation2 + $0x38] sm:$0xff]
        %s238 = scalar_lea.vmem [#allocation2], 64
        %v239 = vld [vmem:[%s238] sm:$0xff]
        %v240 = vld [vmem:[%s238 + $0x8] sm:$0xff]
        %v241 = vld [vmem:[%s238 + $0x10] sm:$0xff]
        %v242 = vld [vmem:[%s238 + $0x18] sm:$0xff]
        %v243 = vld [vmem:[%s238 + $0x20] sm:$0xff]
        %v244 = vld [vmem:[%s238 + $0x28] sm:$0xff]
        %v245 = vld [vmem:[%s238 + $0x30] sm:$0xff]
        %v246 = vld [vmem:[%s238 + $0x38] sm:$0xff]
        %vm251 = vcmask 1046528
        %v252 = vrot.slane %v226, 1
        %v253 = vrot.slane %v227, 1
        %v254 = vsel %vm251, %v252, %v253
        %v255 = vrot.slane %v228, 1
        %v256 = vsel %vm251, %v253, %v255
        %v257 = vrot.slane %v229, 1
        %v258 = vsel %vm251, %v255, %v257
        %vm259 = vcmask 261120
        %v260 = vsel %vm259, %v254, 0
        %v262 = vsel %vm259, %v256, 0
        %v264 = vsel %vm259, %v258, 0
        %v266 = vsel %vm259, %v257, 0
        %268 = vmatprep.subr.mxu0 %v240
        %269 = vmatpush1.msra.mxu0 %v239
        %270 = vmatprep.subr.mxu0 %v242
        %271 = vmatpush1.msra.mxu0 %v241
        %272 = vmatprep.subr.mxu0 %v244
        %273 = vmatpush1.msra.mxu0 %v243
        %274 = vmatprep.subr.mxu0 %v246
        %275 = vmatpush1.msra.mxu0 %v245
        %276 = vmatprep.subr.mxu0 0.0
        %277 = vmatpush1.msra.mxu0 0.0
        %278 = vmatprep.subr.mxu0 0.0
        %279 = vmatpush1.msra.mxu0 0.0
        %280 = vmatprep.subr.mxu0 0.0
        %281 = vmatpush1.msra.mxu0 0.0
        %282 = vmatprep.subr.mxu0 0.0
        %283 = vmatpush1.msra.mxu0 0.0
        %284 = vmatprep.subr.mxu0 0.0
        %285 = vmatpush1.msra.mxu0 0.0
        %286 = vmatprep.subr.mxu0 0.0
        %287 = vmatpush1.msra.mxu0 0.0
        %288 = vmatprep.subr.mxu0 0.0
        %289 = vmatpush1.msra.mxu0 0.0
        %290 = vmatprep.subr.mxu0 0.0
        %291 = vmatpush1.msra.mxu0 0.0
        %292 = vmatprep.subr.mxu0 0.0
        %293 = vmatpush1.msra.mxu0 0.0
        %294 = vmatprep.subr.mxu0 0.0
        %295 = vmatpush1.msra.mxu0 0.0
        %296 = vmatprep.subr.mxu0 0.0
        %297 = vmatpush1.msra.mxu0 0.0
        %298 = vmatprep.subr.mxu0 0.0
        %299 = vmatpush1.msra.mxu0 0.0
        %300 = vmatprep.subr.mxu0 0.0
        %301 = vmatpush1.msra.mxu0 0.0
        %302 = vmatprep.subr.mxu0 0.0
        %303 = vmatpush1.msra.mxu0 0.0
        %304 = vmatprep.subr.mxu0 0.0
        %305 = vmatpush1.msra.mxu0 0.0
        %306 = vmatprep.subr.mxu0 0.0
        %307 = vmatpush1.msra.mxu0 0.0
        %308 = vmatprep.subr.mxu0 0.0
        %309 = vmatpush1.msra.mxu0 0.0
        %310 = vmatprep.subr.mxu0 0.0
        %311 = vmatpush1.msra.mxu0 0.0
        %312 = vmatprep.subr.mxu0 0.0
        %313 = vmatpush1.msra.mxu0 0.0
        %314 = vmatprep.subr.mxu0 0.0
        %315 = vmatpush1.msra.mxu0 0.0
        %316 = vmatprep.subr.mxu0 0.0
        %317 = vmatpush1.msra.mxu0 0.0
        %318 = vmatprep.subr.mxu0 0.0
        %319 = vmatpush1.msra.mxu0 0.0
        %320 = vmatprep.subr.mxu0 0.0
        %321 = vmatpush1.msra.mxu0 0.0
        %322 = vmatprep.subr.mxu0 0.0
        %323 = vmatpush1.msra.mxu0 0.0
        %324 = vmatprep.subr.mxu0 0.0
        %325 = vmatpush1.msra.mxu0 0.0
        %326 = vmatprep.subr.mxu0 0.0
        %327 = vmatpush1.msra.mxu0 0.0
        %328 = vmatprep.subr.mxu0 0.0
        %329 = vmatpush1.msra.mxu0 0.0
        %330 = vmatprep.subr.mxu0 0.0
        %331 = vmatpush1.msra.mxu0 0.0
        %332 = vmatprep.mubr.f32.mxu0 0.0
        %333 = vmatmul.mubr.f32.gmra.mrb[0].mxu0 %v260
        %v334 = vpop.f32.mrb[0].mxu0
        %v335 = vadd.f32 0.0, %v334
        %v336 = vpop.f32.mrb[0].mxu0
        %v337 = vadd.f32 0.0, %v336
        %338 = vmatprep.mubr.f32.mxu0 0.0
        %339 = vmatmul.mubr.f32.gmra.mrb[0].mxu0 %v262
        %v340 = vpop.f32.mrb[0].mxu0
        %v341 = vadd.f32 0.0, %v340
        %v342 = vpop.f32.mrb[0].mxu0
        %v343 = vadd.f32 0.0, %v342
        %344 = vmatprep.mubr.f32.mxu0 0.0
        %345 = vmatmul.mubr.f32.gmra.mrb[0].mxu0 %v264
        %v346 = vpop.f32.mrb[0].mxu0
        %v347 = vadd.f32 0.0, %v346
        %v348 = vpop.f32.mrb[0].mxu0
        %v349 = vadd.f32 0.0, %v348
        %350 = vmatprep.mubr.f32.mxu0 0.0
        %351 = vmatmul.mubr.f32.gmra.mrb[0].mxu0 %v266
        %v352 = vpop.f32.mrb[0].mxu0
        %v353 = vadd.f32 0.0, %v352
        %v354 = vpop.f32.mrb[0].mxu0
        %v355 = vadd.f32 0.0, %v354
        %356 = vdwg.mxu0
        %v357 = vsel %vm259, %v226, 0
        %v359 = vsel %vm259, %v227, 0
        %v361 = vsel %vm259, %v228, 0
        %v363 = vsel %vm259, %v229, 0
        %365 = vmatprep.subr.mxu0 %v231
        %366 = vmatpush1.msra.mxu0 %v230
        %367 = vmatprep.subr.mxu0 %v233
        %368 = vmatpush1.msra.mxu0 %v232
        %369 = vmatprep.subr.mxu0 %v235
        %370 = vmatpush1.msra.mxu0 %v234
        %371 = vmatprep.subr.mxu0 %v237
        %372 = vmatpush1.msra.mxu0 %v236
        %373 = vmatprep.subr.mxu0 0.0
        %374 = vmatpush1.msra.mxu0 0.0
        %375 = vmatprep.subr.mxu0 0.0
        %376 = vmatpush1.msra.mxu0 0.0
        %377 = vmatprep.subr.mxu0 0.0
        %378 = vmatpush1.msra.mxu0 0.0
        %379 = vmatprep.subr.mxu0 0.0
        %380 = vmatpush1.msra.mxu0 0.0
        %381 = vmatprep.subr.mxu0 0.0
        %382 = vmatpush1.msra.mxu0 0.0
        %383 = vmatprep.subr.mxu0 0.0
        %384 = vmatpush1.msra.mxu0 0.0
        %385 = vmatprep.subr.mxu0 0.0
        %386 = vmatpush1.msra.mxu0 0.0
        %387 = vmatprep.subr.mxu0 0.0
        %388 = vmatpush1.msra.mxu0 0.0
        %389 = vmatprep.subr.mxu0 0.0
        %390 = vmatpush1.msra.mxu0 0.0
        %391 = vmatprep.subr.mxu0 0.0
        %392 = vmatpush1.msra.mxu0 0.0
        %393 = vmatprep.subr.mxu0 0.0
        %394 = vmatpush1.msra.mxu0 0.0
        %395 = vmatprep.subr.mxu0 0.0
        %396 = vmatpush1.msra.mxu0 0.0
        %397 = vmatprep.subr.mxu0 0.0
        %398 = vmatpush1.msra.mxu0 0.0
        %399 = vmatprep.subr.mxu0 0.0
        %400 = vmatpush1.msra.mxu0 0.0
        %401 = vmatprep.subr.mxu0 0.0
        %402 = vmatpush1.msra.mxu0 0.0
        %403 = vmatprep.subr.mxu0 0.0
        %404 = vmatpush1.msra.mxu0 0.0
        %405 = vmatprep.subr.mxu0 0.0
        %406 = vmatpush1.msra.mxu0 0.0
        %407 = vmatprep.subr.mxu0 0.0
        %408 = vmatpush1.msra.mxu0 0.0
        %409 = vmatprep.subr.mxu0 0.0
        %410 = vmatpush1.msra.mxu0 0.0
        %411 = vmatprep.subr.mxu0 0.0
        %412 = vmatpush1.msra.mxu0 0.0
        %413 = vmatprep.subr.mxu0 0.0
        %414 = vmatpush1.msra.mxu0 0.0
        %415 = vmatprep.subr.mxu0 0.0
        %416 = vmatpush1.msra.mxu0 0.0
        %417 = vmatprep.subr.mxu0 0.0
        %418 = vmatpush1.msra.mxu0 0.0
        %419 = vmatprep.subr.mxu0 0.0
        %420 = vmatpush1.msra.mxu0 0.0
        %421 = vmatprep.subr.mxu0 0.0
        %422 = vmatpush1.msra.mxu0 0.0
        %423 = vmatprep.subr.mxu0 0.0
        %424 = vmatpush1.msra.mxu0 0.0
        %425 = vmatprep.subr.mxu0 0.0
        %426 = vmatpush1.msra.mxu0 0.0
        %427 = vmatprep.subr.mxu0 0.0
        %428 = vmatpush1.msra.mxu0 0.0
        %429 = vmatprep.mubr.f32.mxu0 0.0
        %430 = vmatmul.mubr.f32.gmra.mrb[0].mxu0 %v357
        %v431 = vpop.f32.mrb[0].mxu0
        %v432 = vadd.f32 %v335, %v431
        %v433 = vpop.f32.mrb[0].mxu0
        %v434 = vadd.f32 %v337, %v433
        %435 = vmatprep.mubr.f32.mxu0 0.0
        %436 = vmatmul.mubr.f32.gmra.mrb[0].mxu0 %v359
        %v437 = vpop.f32.mrb[0].mxu0
        %v438 = vadd.f32 %v341, %v437
        %v439 = vpop.f32.mrb[0].mxu0
        %v440 = vadd.f32 %v343, %v439
        %441 = vmatprep.mubr.f32.mxu0 0.0
        %442 = vmatmul.mubr.f32.gmra.mrb[0].mxu0 %v361
        %v443 = vpop.f32.mrb[0].mxu0
        %v444 = vadd.f32 %v347, %v443
        %v445 = vpop.f32.mrb[0].mxu0
        %v446 = vadd.f32 %v349, %v445
        %447 = vmatprep.mubr.f32.mxu0 0.0
        %448 = vmatmul.mubr.f32.gmra.mrb[0].mxu0 %v363
        %v449 = vpop.f32.mrb[0].mxu0
        %v450 = vadd.f32 %v353, %v449
        %v451 = vpop.f32.mrb[0].mxu0
        %v452 = vadd.f32 %v355, %v451
        %453 = vdwg.mxu0
        %s454 = scalar_lea.vmem [#allocation2], 128
        %v455 = vld [vmem:[%s454] sm:$0xff]
        %v456 = vld [vmem:[%s454 + $0x8] sm:$0xff]
        %v457 = vld [vmem:[%s454 + $0x10] sm:$0xff]
        %v458 = vld [vmem:[%s454 + $0x18] sm:$0xff]
        %v459 = vld [vmem:[%s454 + $0x20] sm:$0xff]
        %v460 = vld [vmem:[%s454 + $0x28] sm:$0xff]
        %v461 = vld [vmem:[%s454 + $0x30] sm:$0xff]
        %v462 = vld [vmem:[%s454 + $0x38] sm:$0xff]
        %vm463 = vcmask 1045504
        %v464 = vrot.slane %v226, 2
        %v465 = vrot.slane %v227, 2
        %v466 = vsel %vm463, %v464, %v465
        %v467 = vrot.slane %v228, 2
        %v468 = vsel %vm463, %v465, %v467
        %v469 = vrot.slane %v229, 2
        %v470 = vsel %vm463, %v467, %v469
        %v471 = vsel %vm259, %v466, 0
        %v473 = vsel %vm259, %v468, 0
        %v475 = vsel %vm259, %v470, 0
        %v477 = vsel %vm259, %v469, 0
        %479 = vmatprep.subr.mxu0 %v456
        %480 = vmatpush1.msra.mxu0 %v455
        %481 = vmatprep.subr.mxu0 %v458
        %482 = vmatpush1.msra.mxu0 %v457
        %483 = vmatprep.subr.mxu0 %v460
        %484 = vmatpush1.msra.mxu0 %v459
        %485 = vmatprep.subr.mxu0 %v462
        %486 = vmatpush1.msra.mxu0 %v461
        %487 = vmatprep.subr.mxu0 0.0
        %488 = vmatpush1.msra.mxu0 0.0
        %489 = vmatprep.subr.mxu0 0.0
        %490 = vmatpush1.msra.mxu0 0.0
        %491 = vmatprep.subr.mxu0 0.0
        %492 = vmatpush1.msra.mxu0 0.0
        %493 = vmatprep.subr.mxu0 0.0
        %494 = vmatpush1.msra.mxu0 0.0
        %495 = vmatprep.subr.mxu0 0.0
        %496 = vmatpush1.msra.mxu0 0.0
        %497 = vmatprep.subr.mxu0 0.0
        %498 = vmatpush1.msra.mxu0 0.0
        %499 = vmatprep.subr.mxu0 0.0
        %500 = vmatpush1.msra.mxu0 0.0
        %501 = vmatprep.subr.mxu0 0.0
        %502 = vmatpush1.msra.mxu0 0.0
        %503 = vmatprep.subr.mxu0 0.0
        %504 = vmatpush1.msra.mxu0 0.0
        %505 = vmatprep.subr.mxu0 0.0
        %506 = vmatpush1.msra.mxu0 0.0
        %507 = vmatprep.subr.mxu0 0.0
        %508 = vmatpush1.msra.mxu0 0.0
        %509 = vmatprep.subr.mxu0 0.0
        %510 = vmatpush1.msra.mxu0 0.0
        %511 = vmatprep.subr.mxu0 0.0
        %512 = vmatpush1.msra.mxu0 0.0
        %513 = vmatprep.subr.mxu0 0.0
        %514 = vmatpush1.msra.mxu0 0.0
        %515 = vmatprep.subr.mxu0 0.0
        %516 = vmatpush1.msra.mxu0 0.0
        %517 = vmatprep.subr.mxu0 0.0
        %518 = vmatpush1.msra.mxu0 0.0
        %519 = vmatprep.subr.mxu0 0.0
        %520 = vmatpush1.msra.mxu0 0.0
        %521 = vmatprep.subr.mxu0 0.0
        %522 = vmatpush1.msra.mxu0 0.0
        %523 = vmatprep.subr.mxu0 0.0
        %524 = vmatpush1.msra.mxu0 0.0
        %525 = vmatprep.subr.mxu0 0.0
        %526 = vmatpush1.msra.mxu0 0.0
        %527 = vmatprep.subr.mxu0 0.0
        %528 = vmatpush1.msra.mxu0 0.0
        %529 = vmatprep.subr.mxu0 0.0
        %530 = vmatpush1.msra.mxu0 0.0
        %531 = vmatprep.subr.mxu0 0.0
        %532 = vmatpush1.msra.mxu0 0.0
        %533 = vmatprep.subr.mxu0 0.0
        %534 = vmatpush1.msra.mxu0 0.0
        %535 = vmatprep.subr.mxu0 0.0
        %536 = vmatpush1.msra.mxu0 0.0
        %537 = vmatprep.subr.mxu0 0.0
        %538 = vmatpush1.msra.mxu0 0.0
        %539 = vmatprep.subr.mxu0 0.0
        %540 = vmatpush1.msra.mxu0 0.0
        %541 = vmatprep.subr.mxu0 0.0
        %542 = vmatpush1.msra.mxu0 0.0
        %543 = vmatprep.mubr.f32.mxu0 0.0
        %544 = vmatmul.mubr.f32.gmra.mrb[0].mxu0 %v471
        %v545 = vpop.f32.mrb[0].mxu0
        %v546 = vadd.f32 0.0, %v545
        %v547 = vpop.f32.mrb[0].mxu0
        %v548 = vadd.f32 0.0, %v547
        %549 = vmatprep.mubr.f32.mxu0 0.0
        %550 = vmatmul.mubr.f32.gmra.mrb[0].mxu0 %v473
        %v551 = vpop.f32.mrb[0].mxu0
        %v552 = vadd.f32 0.0, %v551
        %v553 = vpop.f32.mrb[0].mxu0
        %v554 = vadd.f32 0.0, %v553
        %555 = vmatprep.mubr.f32.mxu0 0.0
        %556 = vmatmul.mubr.f32.gmra.mrb[0].mxu0 %v475
        %v557 = vpop.f32.mrb[0].mxu0
        %v558 = vadd.f32 0.0, %v557
        %v559 = vpop.f32.mrb[0].mxu0
        %v560 = vadd.f32 0.0, %v559
        %561 = vmatprep.mubr.f32.mxu0 0.0
        %562 = vmatmul.mubr.f32.gmra.mrb[0].mxu0 %v477
        %v563 = vpop.f32.mrb[0].mxu0
        %v564 = vadd.f32 0.0, %v563
        %v565 = vpop.f32.mrb[0].mxu0
        %v566 = vadd.f32 0.0, %v565
        %567 = vdwg.mxu0
        %v568 = vadd.f32 %v432, %v546
        %v569 = vadd.f32 %v434, %v548
        %v570 = vadd.f32 %v438, %v552
        %v571 = vadd.f32 %v440, %v554
        %v572 = vadd.f32 %v444, %v558
        %v573 = vadd.f32 %v446, %v560
        %v574 = vadd.f32 %v450, %v564
        %v575 = vadd.f32 %v452, %v566
        %s576 = scalar_lea.vmem [#allocation2], 192
        %v577 = vld [vmem:[%s576] sm:$0xff]
        %v578 = vld [vmem:[%s576 + $0x8] sm:$0xff]
        %v579 = vld [vmem:[%s576 + $0x10] sm:$0xff]
        %v580 = vld [vmem:[%s576 + $0x18] sm:$0xff]
        %v581 = vld [vmem:[%s576 + $0x20] sm:$0xff]
        %v582 = vld [vmem:[%s576 + $0x28] sm:$0xff]
        %v583 = vld [vmem:[%s576 + $0x30] sm:$0xff]
        %v584 = vld [vmem:[%s576 + $0x38] sm:$0xff]
        %s585 = scalar_lea.vmem [#allocation2], 256
        %v586 = vld [vmem:[%s585] sm:$0xff]
        %v587 = vld [vmem:[%s585 + $0x8] sm:$0xff]
        %v588 = vld [vmem:[%s585 + $0x10] sm:$0xff]
        %v589 = vld [vmem:[%s585 + $0x18] sm:$0xff]
        %v590 = vld [vmem:[%s585 + $0x20] sm:$0xff]
        %v591 = vld [vmem:[%s585 + $0x28] sm:$0xff]
        %v592 = vld [vmem:[%s585 + $0x30] sm:$0xff]
        %v593 = vld [vmem:[%s585 + $0x38] sm:$0xff]
        %594 = vmatprep.subr.mxu0 %v587
        %595 = vmatpush1.msra.mxu0 %v586
        %596 = vmatprep.subr.mxu0 %v589
        %597 = vmatpush1.msra.mxu0 %v588
        %598 = vmatprep.subr.mxu0 %v591
        %599 = vmatpush1.msra.mxu0 %v590
        %600 = vmatprep.subr.mxu0 %v593
        %601 = vmatpush1.msra.mxu0 %v592
        %602 = vmatprep.subr.mxu0 0.0
        %603 = vmatpush1.msra.mxu0 0.0
        %604 = vmatprep.subr.mxu0 0.0
        %605 = vmatpush1.msra.mxu0 0.0
        %606 = vmatprep.subr.mxu0 0.0
        %607 = vmatpush1.msra.mxu0 0.0
        %608 = vmatprep.subr.mxu0 0.0
        %609 = vmatpush1.msra.mxu0 0.0
        %610 = vmatprep.subr.mxu0 0.0
        %611 = vmatpush1.msra.mxu0 0.0
        %612 = vmatprep.subr.mxu0 0.0
        %613 = vmatpush1.msra.mxu0 0.0
        %614 = vmatprep.subr.mxu0 0.0
        %615 = vmatpush1.msra.mxu0 0.0
        %616 = vmatprep.subr.mxu0 0.0
        %617 = vmatpush1.msra.mxu0 0.0
        %618 = vmatprep.subr.mxu0 0.0
        %619 = vmatpush1.msra.mxu0 0.0
        %620 = vmatprep.subr.mxu0 0.0
        %621 = vmatpush1.msra.mxu0 0.0
        %622 = vmatprep.subr.mxu0 0.0
        %623 = vmatpush1.msra.mxu0 0.0
        %624 = vmatprep.subr.mxu0 0.0
        %625 = vmatpush1.msra.mxu0 0.0
        %626 = vmatprep.subr.mxu0 0.0
        %627 = vmatpush1.msra.mxu0 0.0
        %628 = vmatprep.subr.mxu0 0.0
        %629 = vmatpush1.msra.mxu0 0.0
        %630 = vmatprep.subr.mxu0 0.0
        %631 = vmatpush1.msra.mxu0 0.0
        %632 = vmatprep.subr.mxu0 0.0
        %633 = vmatpush1.msra.mxu0 0.0
        %634 = vmatprep.subr.mxu0 0.0
        %635 = vmatpush1.msra.mxu0 0.0
        %636 = vmatprep.subr.mxu0 0.0
        %637 = vmatpush1.msra.mxu0 0.0
        %638 = vmatprep.subr.mxu0 0.0
        %639 = vmatpush1.msra.mxu0 0.0
        %640 = vmatprep.subr.mxu0 0.0
        %641 = vmatpush1.msra.mxu0 0.0
        %642 = vmatprep.subr.mxu0 0.0
        %643 = vmatpush1.msra.mxu0 0.0
        %644 = vmatprep.subr.mxu0 0.0
        %645 = vmatpush1.msra.mxu0 0.0
        %646 = vmatprep.subr.mxu0 0.0
        %647 = vmatpush1.msra.mxu0 0.0
        %648 = vmatprep.subr.mxu0 0.0
        %649 = vmatpush1.msra.mxu0 0.0
        %650 = vmatprep.subr.mxu0 0.0
        %651 = vmatpush1.msra.mxu0 0.0
        %652 = vmatprep.subr.mxu0 0.0
        %653 = vmatpush1.msra.mxu0 0.0
        %654 = vmatprep.subr.mxu0 0.0
        %655 = vmatpush1.msra.mxu0 0.0
        %656 = vmatprep.subr.mxu0 0.0
        %657 = vmatpush1.msra.mxu0 0.0
        %658 = vmatprep.mubr.f32.mxu0 0.0
        %659 = vmatmul.mubr.f32.gmra.mrb[0].mxu0 %v260
        %v660 = vpop.f32.mrb[0].mxu0
        %v661 = vadd.f32 0.0, %v660
        %v662 = vpop.f32.mrb[0].mxu0
        %v663 = vadd.f32 0.0, %v662
        %664 = vmatprep.mubr.f32.mxu0 0.0
        %665 = vmatmul.mubr.f32.gmra.mrb[0].mxu0 %v262
        %v666 = vpop.f32.mrb[0].mxu0
        %v667 = vadd.f32 0.0, %v666
        %v668 = vpop.f32.mrb[0].mxu0
        %v669 = vadd.f32 0.0, %v668
        %670 = vmatprep.mubr.f32.mxu0 0.0
        %671 = vmatmul.mubr.f32.gmra.mrb[0].mxu0 %v264
        %v672 = vpop.f32.mrb[0].mxu0
        %v673 = vadd.f32 0.0, %v672
        %v674 = vpop.f32.mrb[0].mxu0
        %v675 = vadd.f32 0.0, %v674
        %676 = vmatprep.mubr.f32.mxu0 0.0
        %677 = vmatmul.mubr.f32.gmra.mrb[0].mxu0 %v266
        %v678 = vpop.f32.mrb[0].mxu0
        %v679 = vadd.f32 0.0, %v678
        %v680 = vpop.f32.mrb[0].mxu0
        %v681 = vadd.f32 0.0, %v680
        %682 = vdwg.mxu0
        %683 = vmatprep.subr.mxu0 %v578
        %684 = vmatpush1.msra.mxu0 %v577
        %685 = vmatprep.subr.mxu0 %v580
        %686 = vmatpush1.msra.mxu0 %v579
        %687 = vmatprep.subr.mxu0 %v582
        %688 = vmatpush1.msra.mxu0 %v581
        %689 = vmatprep.subr.mxu0 %v584
        %690 = vmatpush1.msra.mxu0 %v583
        %691 = vmatprep.subr.mxu0 0.0
        %692 = vmatpush1.msra.mxu0 0.0
        %693 = vmatprep.subr.mxu0 0.0
        %694 = vmatpush1.msra.mxu0 0.0
        %695 = vmatprep.subr.mxu0 0.0
        %696 = vmatpush1.msra.mxu0 0.0
        %697 = vmatprep.subr.mxu0 0.0
        %698 = vmatpush1.msra.mxu0 0.0
        %699 = vmatprep.subr.mxu0 0.0
        %700 = vmatpush1.msra.mxu0 0.0
        %701 = vmatprep.subr.mxu0 0.0
        %702 = vmatpush1.msra.mxu0 0.0
        %703 = vmatprep.subr.mxu0 0.0
        %704 = vmatpush1.msra.mxu0 0.0
        %705 = vmatprep.subr.mxu0 0.0
        %706 = vmatpush1.msra.mxu0 0.0
        %707 = vmatprep.subr.mxu0 0.0
        %708 = vmatpush1.msra.mxu0 0.0
        %709 = vmatprep.subr.mxu0 0.0
        %710 = vmatpush1.msra.mxu0 0.0
        %711 = vmatprep.subr.mxu0 0.0
        %712 = vmatpush1.msra.mxu0 0.0
        %713 = vmatprep.subr.mxu0 0.0
        %714 = vmatpush1.msra.mxu0 0.0
        %715 = vmatprep.subr.mxu0 0.0
        %716 = vmatpush1.msra.mxu0 0.0
        %717 = vmatprep.subr.mxu0 0.0
        %718 = vmatpush1.msra.mxu0 0.0
        %719 = vmatprep.subr.mxu0 0.0
        %720 = vmatpush1.msra.mxu0 0.0
        %721 = vmatprep.subr.mxu0 0.0
        %722 = vmatpush1.msra.mxu0 0.0
        %723 = vmatprep.subr.mxu0 0.0
        %724 = vmatpush1.msra.mxu0 0.0
        %725 = vmatprep.subr.mxu0 0.0
        %726 = vmatpush1.msra.mxu0 0.0
        %727 = vmatprep.subr.mxu0 0.0
        %728 = vmatpush1.msra.mxu0 0.0
        %729 = vmatprep.subr.mxu0 0.0
        %730 = vmatpush1.msra.mxu0 0.0
        %731 = vmatprep.subr.mxu0 0.0
        %732 = vmatpush1.msra.mxu0 0.0
        %733 = vmatprep.subr.mxu0 0.0
        %734 = vmatpush1.msra.mxu0 0.0
        %735 = vmatprep.subr.mxu0 0.0
        %736 = vmatpush1.msra.mxu0 0.0
        %737 = vmatprep.subr.mxu0 0.0
        %738 = vmatpush1.msra.mxu0 0.0
        %739 = vmatprep.subr.mxu0 0.0
        %740 = vmatpush1.msra.mxu0 0.0
        %741 = vmatprep.subr.mxu0 0.0
        %742 = vmatpush1.msra.mxu0 0.0
        %743 = vmatprep.subr.mxu0 0.0
        %744 = vmatpush1.msra.mxu0 0.0
        %745 = vmatprep.subr.mxu0 0.0
        %746 = vmatpush1.msra.mxu0 0.0
        %747 = vmatprep.mubr.f32.mxu0 0.0
        %748 = vmatmul.mubr.f32.gmra.mrb[0].mxu0 %v357
        %v749 = vpop.f32.mrb[0].mxu0
        %v750 = vadd.f32 %v661, %v749
        %v751 = vpop.f32.mrb[0].mxu0
        %v752 = vadd.f32 %v663, %v751
        %753 = vmatprep.mubr.f32.mxu0 0.0
        %754 = vmatmul.mubr.f32.gmra.mrb[0].mxu0 %v359
        %v755 = vpop.f32.mrb[0].mxu0
        %v756 = vadd.f32 %v667, %v755
        %v757 = vpop.f32.mrb[0].mxu0
        %v758 = vadd.f32 %v669, %v757
        %759 = vmatprep.mubr.f32.mxu0 0.0
        %760 = vmatmul.mubr.f32.gmra.mrb[0].mxu0 %v361
        %v761 = vpop.f32.mrb[0].mxu0
        %v762 = vadd.f32 %v673, %v761
        %v763 = vpop.f32.mrb[0].mxu0
        %v764 = vadd.f32 %v675, %v763
        %765 = vmatprep.mubr.f32.mxu0 0.0
        %766 = vmatmul.mubr.f32.gmra.mrb[0].mxu0 %v363
        %v767 = vpop.f32.mrb[0].mxu0
        %v768 = vadd.f32 %v679, %v767
        %v769 = vpop.f32.mrb[0].mxu0
        %v770 = vadd.f32 %v681, %v769
        %771 = vdwg.mxu0
        %s772 = scalar_lea.vmem [#allocation2], 320
        %v773 = vld [vmem:[%s772] sm:$0xff]
        %v774 = vld [vmem:[%s772 + $0x8] sm:$0xff]
        %v775 = vld [vmem:[%s772 + $0x10] sm:$0xff]
        %v776 = vld [vmem:[%s772 + $0x18] sm:$0xff]
        %v777 = vld [vmem:[%s772 + $0x20] sm:$0xff]
        %v778 = vld [vmem:[%s772 + $0x28] sm:$0xff]
        %v779 = vld [vmem:[%s772 + $0x30] sm:$0xff]
        %v780 = vld [vmem:[%s772 + $0x38] sm:$0xff]
        %781 = vmatprep.subr.mxu0 %v774
        %782 = vmatpush1.msra.mxu0 %v773
        %783 = vmatprep.subr.mxu0 %v776
        %784 = vmatpush1.msra.mxu0 %v775
        %785 = vmatprep.subr.mxu0 %v778
        %786 = vmatpush1.msra.mxu0 %v777
        %787 = vmatprep.subr.mxu0 %v780
        %788 = vmatpush1.msra.mxu0 %v779
        %789 = vmatprep.subr.mxu0 0.0
        %790 = vmatpush1.msra.mxu0 0.0
        %791 = vmatprep.subr.mxu0 0.0
        %792 = vmatpush1.msra.mxu0 0.0
        %793 = vmatprep.subr.mxu0 0.0
        %794 = vmatpush1.msra.mxu0 0.0
        %795 = vmatprep.subr.mxu0 0.0
        %796 = vmatpush1.msra.mxu0 0.0
        %797 = vmatprep.subr.mxu0 0.0
        %798 = vmatpush1.msra.mxu0 0.0
        %799 = vmatprep.subr.mxu0 0.0
        %800 = vmatpush1.msra.mxu0 0.0
        %801 = vmatprep.subr.mxu0 0.0
        %802 = vmatpush1.msra.mxu0 0.0
        %803 = vmatprep.subr.mxu0 0.0
        %804 = vmatpush1.msra.mxu0 0.0
        %805 = vmatprep.subr.mxu0 0.0
        %806 = vmatpush1.msra.mxu0 0.0
        %807 = vmatprep.subr.mxu0 0.0
        %808 = vmatpush1.msra.mxu0 0.0
        %809 = vmatprep.subr.mxu0 0.0
        %810 = vmatpush1.msra.mxu0 0.0
        %811 = vmatprep.subr.mxu0 0.0
        %812 = vmatpush1.msra.mxu0 0.0
        %813 = vmatprep.subr.mxu0 0.0
        %814 = vmatpush1.msra.mxu0 0.0
        %815 = vmatprep.subr.mxu0 0.0
        %816 = vmatpush1.msra.mxu0 0.0
        %817 = vmatprep.subr.mxu0 0.0
        %818 = vmatpush1.msra.mxu0 0.0
        %819 = vmatprep.subr.mxu0 0.0
        %820 = vmatpush1.msra.mxu0 0.0
        %821 = vmatprep.subr.mxu0 0.0
        %822 = vmatpush1.msra.mxu0 0.0
        %823 = vmatprep.subr.mxu0 0.0
        %824 = vmatpush1.msra.mxu0 0.0
        %825 = vmatprep.subr.mxu0 0.0
        %826 = vmatpush1.msra.mxu0 0.0
        %827 = vmatprep.subr.mxu0 0.0
        %828 = vmatpush1.msra.mxu0 0.0
        %829 = vmatprep.subr.mxu0 0.0
        %830 = vmatpush1.msra.mxu0 0.0
        %831 = vmatprep.subr.mxu0 0.0
        %832 = vmatpush1.msra.mxu0 0.0
        %833 = vmatprep.subr.mxu0 0.0
        %834 = vmatpush1.msra.mxu0 0.0
        %835 = vmatprep.subr.mxu0 0.0
        %836 = vmatpush1.msra.mxu0 0.0
        %837 = vmatprep.subr.mxu0 0.0
        %838 = vmatpush1.msra.mxu0 0.0
        %839 = vmatprep.subr.mxu0 0.0
        %840 = vmatpush1.msra.mxu0 0.0
        %841 = vmatprep.subr.mxu0 0.0
        %842 = vmatpush1.msra.mxu0 0.0
        %843 = vmatprep.subr.mxu0 0.0
        %844 = vmatpush1.msra.mxu0 0.0
        %845 = vmatprep.mubr.f32.mxu0 0.0
        %846 = vmatmul.mubr.f32.gmra.mrb[0].mxu0 %v471
        %v847 = vpop.f32.mrb[0].mxu0
        %v848 = vadd.f32 0.0, %v847
        %v849 = vpop.f32.mrb[0].mxu0
        %v850 = vadd.f32 0.0, %v849
        %851 = vmatprep.mubr.f32.mxu0 0.0
        %852 = vmatmul.mubr.f32.gmra.mrb[0].mxu0 %v473
        %v853 = vpop.f32.mrb[0].mxu0
        %v854 = vadd.f32 0.0, %v853
        %v855 = vpop.f32.mrb[0].mxu0
        %v856 = vadd.f32 0.0, %v855
        %857 = vmatprep.mubr.f32.mxu0 0.0
        %858 = vmatmul.mubr.f32.gmra.mrb[0].mxu0 %v475
        %v859 = vpop.f32.mrb[0].mxu0
        %v860 = vadd.f32 0.0, %v859
        %v861 = vpop.f32.mrb[0].mxu0
        %v862 = vadd.f32 0.0, %v861
        %863 = vmatprep.mubr.f32.mxu0 0.0
        %864 = vmatmul.mubr.f32.gmra.mrb[0].mxu0 %v477
        %v865 = vpop.f32.mrb[0].mxu0
        %v866 = vadd.f32 0.0, %v865
        %v867 = vpop.f32.mrb[0].mxu0
        %v868 = vadd.f32 0.0, %v867
        %869 = vdwg.mxu0
        %v870 = vadd.f32 %v750, %v848
        %v871 = vadd.f32 %v752, %v850
        %v872 = vadd.f32 %v756, %v854
        %v873 = vadd.f32 %v758, %v856
        %v874 = vadd.f32 %v762, %v860
        %v875 = vadd.f32 %v764, %v862
        %v876 = vadd.f32 %v768, %v866
        %v877 = vadd.f32 %v770, %v868
        %v878 = vmax.f32 %v568, %v870
        %v879 = vmax.f32 %v569, %v871
        %v880 = vmax.f32 %v570, %v872
        %v881 = vmax.f32 %v571, %v873
        %v882 = vmax.f32 %v572, %v874
        %v883 = vmax.f32 %v573, %v875
        %v884 = vmax.f32 %v574, %v876
        %v885 = vmax.f32 %v575, %v877
        %v886 = vld [vmem:[%s2] sm:$0xff]
        %v887 = vld [vmem:[%s2 + $0x8] sm:$0x3f]
        %vm888 = vcmask 228352
        %v890 = vsel %vm888, %v886, 0
        %v893 = vsel %vm888, %v887, 0
        %vm895 = vcmask 1043456
        %v897 = vsel %vm895, %v884, 0
        %v900 = vsel %vm895, %v885, 0
        %902 = vmatprep.subr.mxu0 %v879
        %903 = vmatpush1.msra.mxu0 %v878
        %904 = vmatprep.subr.mxu0 %v881
        %905 = vmatpush1.msra.mxu0 %v880
        %906 = vmatprep.subr.mxu0 %v883
        %907 = vmatpush1.msra.mxu0 %v882
        %908 = vmatprep.subr.mxu0 %v900
        %909 = vmatpush1.msra.mxu0 %v897
        %910 = vmatprep.subr.mxu0 0.0
        %911 = vmatpush1.msra.mxu0 0.0
        %912 = vmatprep.subr.mxu0 0.0
        %913 = vmatpush1.msra.mxu0 0.0
        %914 = vmatprep.subr.mxu0 0.0
        %915 = vmatpush1.msra.mxu0 0.0
        %916 = vmatprep.subr.mxu0 0.0
        %917 = vmatpush1.msra.mxu0 0.0
        %918 = vmatprep.subr.mxu0 0.0
        %919 = vmatpush1.msra.mxu0 0.0
        %920 = vmatprep.subr.mxu0 0.0
        %921 = vmatpush1.msra.mxu0 0.0
        %922 = vmatprep.subr.mxu0 0.0
        %923 = vmatpush1.msra.mxu0 0.0
        %924 = vmatprep.subr.mxu0 0.0
        %925 = vmatpush1.msra.mxu0 0.0
        %926 = vmatprep.subr.mxu0 0.0
        %927 = vmatpush1.msra.mxu0 0.0
        %928 = vmatprep.subr.mxu0 0.0
        %929 = vmatpush1.msra.mxu0 0.0
        %930 = vmatprep.subr.mxu0 0.0
        %931 = vmatpush1.msra.mxu0 0.0
        %932 = vmatprep.subr.mxu0 0.0
        %933 = vmatpush1.msra.mxu0 0.0
        %934 = vmatprep.subr.mxu0 0.0
        %935 = vmatpush1.msra.mxu0 0.0
        %936 = vmatprep.subr.mxu0 0.0
        %937 = vmatpush1.msra.mxu0 0.0
        %938 = vmatprep.subr.mxu0 0.0
        %939 = vmatpush1.msra.mxu0 0.0
        %940 = vmatprep.subr.mxu0 0.0
        %941 = vmatpush1.msra.mxu0 0.0
        %942 = vmatprep.subr.mxu0 0.0
        %943 = vmatpush1.msra.mxu0 0.0
        %944 = vmatprep.subr.mxu0 0.0
        %945 = vmatpush1.msra.mxu0 0.0
        %946 = vmatprep.subr.mxu0 0.0
        %947 = vmatpush1.msra.mxu0 0.0
        %948 = vmatprep.subr.mxu0 0.0
        %949 = vmatpush1.msra.mxu0 0.0
        %950 = vmatprep.subr.mxu0 0.0
        %951 = vmatpush1.msra.mxu0 0.0
        %952 = vmatprep.subr.mxu0 0.0
        %953 = vmatpush1.msra.mxu0 0.0
        %954 = vmatprep.subr.mxu0 0.0
        %955 = vmatpush1.msra.mxu0 0.0
        %956 = vmatprep.subr.mxu0 0.0
        %957 = vmatpush1.msra.mxu0 0.0
        %958 = vmatprep.subr.mxu0 0.0
        %959 = vmatpush1.msra.mxu0 0.0
        %960 = vmatprep.subr.mxu0 0.0
        %961 = vmatpush1.msra.mxu0 0.0
        %962 = vmatprep.subr.mxu0 0.0
        %963 = vmatpush1.msra.mxu0 0.0
        %964 = vmatprep.subr.mxu0 0.0
        %965 = vmatpush1.msra.mxu0 0.0
        %966 = vmatprep.mubr.f32.mxu0 0.0
        %967 = vmatmul.mubr.f32.gmra.mrb[0].mxu0 %v890
        %v968 = vpop.f32.mrb[0].mxu0
        %v969 = vadd.f32 0.0, %v968
        %v970 = vpop.f32.mrb[0].mxu0
        %v971 = vadd.f32 0.0, %v970
        %972 = vmatprep.mubr.f32.mxu0 0.0
        %973 = vmatmul.mubr.f32.gmra.mrb[0].mxu0 %v893
        %v974 = vpop.f32.mrb[0].mxu0
        %v975 = vadd.f32 0.0, %v974
        %v976 = vpop.f32.mrb[0].mxu0
        %v977 = vadd.f32 0.0, %v976
        %978 = vdwg.mxu0
        %s979 = scalar_lea.vmem %s2, 16
        %v980 = vld [vmem:[%s979] sm:$0xff]
        %v981 = vld [vmem:[%s979 + $0x8] sm:$0x3f]
        %v983 = vsel %vm888, %v980, 0
        %v986 = vsel %vm888, %v981, 0
        %988 = vmatprep.subr.mxu0 %v879
        %989 = vmatpush1.msra.mxu0 %v878
        %990 = vmatprep.subr.mxu0 %v881
        %991 = vmatpush1.msra.mxu0 %v880
        %992 = vmatprep.subr.mxu0 %v883
        %993 = vmatpush1.msra.mxu0 %v882
        %994 = vmatprep.subr.mxu0 %v900
        %995 = vmatpush1.msra.mxu0 %v897
        %996 = vmatprep.subr.mxu0 0.0
        %997 = vmatpush1.msra.mxu0 0.0
        %998 = vmatprep.subr.mxu0 0.0
        %999 = vmatpush1.msra.mxu0 0.0
        %1000 = vmatprep.subr.mxu0 0.0
        %1001 = vmatpush1.msra.mxu0 0.0
        %1002 = vmatprep.subr.mxu0 0.0
        %1003 = vmatpush1.msra.mxu0 0.0
        %1004 = vmatprep.subr.mxu0 0.0
        %1005 = vmatpush1.msra.mxu0 0.0
        %1006 = vmatprep.subr.mxu0 0.0
        %1007 = vmatpush1.msra.mxu0 0.0
        %1008 = vmatprep.subr.mxu0 0.0
        %1009 = vmatpush1.msra.mxu0 0.0
        %1010 = vmatprep.subr.mxu0 0.0
        %1011 = vmatpush1.msra.mxu0 0.0
        %1012 = vmatprep.subr.mxu0 0.0
        %1013 = vmatpush1.msra.mxu0 0.0
        %1014 = vmatprep.subr.mxu0 0.0
        %1015 = vmatpush1.msra.mxu0 0.0
        %1016 = vmatprep.subr.mxu0 0.0
        %1017 = vmatpush1.msra.mxu0 0.0
        %1018 = vmatprep.subr.mxu0 0.0
        %1019 = vmatpush1.msra.mxu0 0.0
        %1020 = vmatprep.subr.mxu0 0.0
        %1021 = vmatpush1.msra.mxu0 0.0
        %1022 = vmatprep.subr.mxu0 0.0
        %1023 = vmatpush1.msra.mxu0 0.0
        %1024 = vmatprep.subr.mxu0 0.0
        %1025 = vmatpush1.msra.mxu0 0.0
        %1026 = vmatprep.subr.mxu0 0.0
        %1027 = vmatpush1.msra.mxu0 0.0
        %1028 = vmatprep.subr.mxu0 0.0
        %1029 = vmatpush1.msra.mxu0 0.0
        %1030 = vmatprep.subr.mxu0 0.0
        %1031 = vmatpush1.msra.mxu0 0.0
        %1032 = vmatprep.subr.mxu0 0.0
        %1033 = vmatpush1.msra.mxu0 0.0
        %1034 = vmatprep.subr.mxu0 0.0
        %1035 = vmatpush1.msra.mxu0 0.0
        %1036 = vmatprep.subr.mxu0 0.0
        %1037 = vmatpush1.msra.mxu0 0.0
        %1038 = vmatprep.subr.mxu0 0.0
        %1039 = vmatpush1.msra.mxu0 0.0
        %1040 = vmatprep.subr.mxu0 0.0
        %1041 = vmatpush1.msra.mxu0 0.0
        %1042 = vmatprep.subr.mxu0 0.0
        %1043 = vmatpush1.msra.mxu0 0.0
        %1044 = vmatprep.subr.mxu0 0.0
        %1045 = vmatpush1.msra.mxu0 0.0
        %1046 = vmatprep.subr.mxu0 0.0
        %1047 = vmatpush1.msra.mxu0 0.0
        %1048 = vmatprep.subr.mxu0 0.0
        %1049 = vmatpush1.msra.mxu0 0.0
        %1050 = vmatprep.subr.mxu0 0.0
        %1051 = vmatpush1.msra.mxu0 0.0
        %1052 = vmatprep.mubr.f32.mxu0 0.0
        %1053 = vmatmul.mubr.f32.gmra.mrb[0].mxu0 %v983
        %v1054 = vpop.f32.mrb[0].mxu0
        %v1055 = vadd.f32 0.0, %v1054
        %v1056 = vpop.f32.mrb[0].mxu0
        %v1057 = vadd.f32 0.0, %v1056
        %1058 = vmatprep.mubr.f32.mxu0 0.0
        %1059 = vmatmul.mubr.f32.gmra.mrb[0].mxu0 %v986
        %v1060 = vpop.f32.mrb[0].mxu0
        %v1061 = vadd.f32 0.0, %v1060
        %v1062 = vpop.f32.mrb[0].mxu0
        %v1063 = vadd.f32 0.0, %v1062
        %1064 = vdwg.mxu0
        %v1065 = vmax.f32 %v969, %v1055
        %v1066 = vmax.f32 %v971, %v1057
        %v1067 = vmax.f32 %v975, %v1061
        %v1068 = vmax.f32 %v977, %v1063
        %v1069 = vld [vmem:[#allocation4] sm:$0x3]
        %v1071 = vlaneseq
        %v1072 = vshrl.u32 %v1071, 7
        %v1073 = vsub.s32 0, %v1072
        %v1074 = vrot.slane %v1069, %v1073
        %v1075 = vlaneseq
        %v1076 = vshrl.u32 %v1075, 7
        %v1077 = vsub.s32 1, %v1076
        %v1078 = vrot.slane %v1069, %v1077
        %v1081 = vadd.f32 %v1065, %v1074
        %v1082 = vadd.f32 %v1066, %v1078
        %v1083 = vadd.f32 %v1067, %v1074
        %v1084 = vadd.f32 %v1068, %v1078
        %v1085 = vmax.f32 %v1081, 0.0
        %v1086 = vmax.f32 %v1082, 0.0
        %v1087 = vmax.f32 %v1083, 0.0
        %v1088 = vmax.f32 %v1084, 0.0
        %1089 = vst [vmem:[%s225] sm:$0xff] %v1085
        %vm1090 = vcmask 785408
        %1091 = vst.msk [vmem:[%s225 + $0x8] sm:$0xff] %vm1090, %v1086
        %1092 = vst [vmem:[%s225 + $0x10] sm:$0x3f] %v1087
        %vm1093 = vcmask 783360
        %1094 = vst.msk [vmem:[%s225 + $0x18] sm:$0x3f] %vm1093, %v1088
        %p1095 = scmp.lt.s32.totalorder %s17, 1
        %s1096 = scalar_select %p1095, %s17, 1
        %s1097 = smul.addr %s1096, 4
        %s1098 = smul.addr %s1097, 8
        %s1099 = scalar_lea.vmem %s4, %s1098
        // Predicated region
        $region45: #{conv_classifier_v1_forward.3} parent=35 // pred_check
          %p1100 = pneg %p124
        $region46: #{conv_classifier_v1_forward.3} parent=35 // pred_check_branch
          %1102 = sbr.rel (%p1100) target = $region48
        $region47: #{conv_classifier_v1_forward.3} parent=35 // pred_region
          _
        $region48: #{conv_classifier_v1_forward.3} parent=35 // pred_fallthru
          _
      $region36: #{conv_classifier_v1_forward.3} parent=5 // pred_fallthru
        _
      %p1103 = scmp.le.s32.totalorder 2, %s12
      // Predicated region
      $region49: #{conv_classifier_v1_forward.3} parent=5 // pred_check
        %p1104 = pneg %p1103
      $region50: #{conv_classifier_v1_forward.3} parent=5 // pred_check_branch
        %1106 = sbr.rel (%p1104) target = $region52
      $region51: #{conv_classifier_v1_forward.3} parent=5 // pred_region
        %s1107 = ssub.s32 %s12, 2
        // Predicated region
        $region53: #{conv_classifier_v1_forward.3} parent=51 // pred_check
          %p1108 = pneg %p130
        $region54: #{conv_classifier_v1_forward.3} parent=51 // pred_check_branch
          %1110 = sbr.rel (%p1108) target = $region56
        $region55: #{conv_classifier_v1_forward.3} parent=51 // pred_region
          %p1111 = scmp.lt.s32.totalorder %s18, 1
          %s1112 = scalar_select %p1111, %s18, 1
          %s1113 = smul.addr %s1112, 4
          %s1114 = smul.addr %s1113, 8
          %s1115 = scalar_lea.vmem %s4, %s1114
        $region56: #{conv_classifier_v1_forward.3} parent=51 // pred_fallthru
          _
      $region52: #{conv_classifier_v1_forward.3} parent=5 // pred_fallthru
        _
    $region6: #{conv_classifier_v1_forward.3} parent=1 // loop_footer
      %s16 = sadd.s32 1, %s12
    $region7: #{conv_classifier_v1_forward.3} parent=1 // loop_footer_branch
      %11 = sbr.rel target = $region3
    $region8: #{conv_classifier_v1_forward.3} parent=1 // loop_exit
      _
    %1116 = vsyncpa [#allocation3], 1
    %s1117 = scalar_lea.sflag [#allocation3], 1
    %1118 = vsyncpa %s1117, 1
    %1119 = vsyncpa [#allocation5], 1

// kernel: conv_classifier_v1_forward.5
$region0: #{conv_classifier_v1_forward.5}
  #allocation0 [shape = 'u32[]', space=smem, size = 0x4, offset = 0x4, fixed_abs, tag = 'smem constant byte address 0x4 - core index']
  #allocation1 [shape = 'u32[144,128]{1,0:T(1,128)}', space=vmem, size = 0x12000, scoped, tag = 'internal scratch']
  %s0 = inlined_call_operand.vmem [shape: f32[2,1568], index: 0, kind: input, shape index: {}]
  %s1 = inlined_call_operand.vmem [shape: f32[1568,32], index: 1, kind: input, shape index: {}]
  %s2 = inlined_call_operand.vmem [shape: f32[1,32], index: 2, kind: input, shape index: {}]
  %s3 = inlined_call_operand.vmem [shape: f32[32,16], index: 3, kind: input, shape index: {}]
  %s4 = inlined_call_operand.vmem [shape: f32[1,16], index: 4, kind: input, shape index: {}]
  %s5 = inlined_call_operand.vmem [shape: f32[16,10], index: 5, kind: input, shape index: {}]
  %s6 = inlined_call_operand.vmem [shape: f32[1,10], index: 6, kind: input, shape index: {}]
  %s7 = inlined_call_operand.hbm [shape: f32[2,10], index: 7, kind: output, shape index: {}]
  %s8 = sld [smem:[#allocation0]]
  $region38: #{conv_classifier_v1_forward.5} parent=0
    _
  %s10 = ssub.s32 1, %s8
  %s11 = scalar_select 0, %s10, %s8
  $region1: #{conv_classifier_v1_forward.5} parent=0
    #allocation2 [shape = 'u8[1024]{0}', space=vmem, size = 0x400, scoped, tag = 'output window, operand 0, single buffered']
    #allocation3 [shape = 's32[1]{0}', space=sflag, size = 0x4, scoped, tag = 'scoped memory for conv_classifier_v1_forward.5']
    %12 = vsyncpa [#allocation3], 0
    // Predicated region
    $region2: #{conv_classifier_v1_forward.5} parent=1 // pred_check
      _
    $region3: #{conv_classifier_v1_forward.5} parent=1 // pred_check_branch
      %14 = sbr.rel (0) target = $region5
    $region4: #{conv_classifier_v1_forward.5} parent=1 // pred_region
      _
    $region5: #{conv_classifier_v1_forward.5} parent=1 // pred_fallthru
      _
    // Predicated region
    $region6: #{conv_classifier_v1_forward.5} parent=1 // pred_check
      _
    $region7: #{conv_classifier_v1_forward.5} parent=1 // pred_check_branch
      %16 = sbr.rel (0) target = $region9
    $region8: #{conv_classifier_v1_forward.5} parent=1 // pred_region
      _
    $region9: #{conv_classifier_v1_forward.5} parent=1 // pred_fallthru
      _
    // Predicated region
    $region10: #{conv_classifier_v1_forward.5} parent=1 // pred_check
      _
    $region11: #{conv_classifier_v1_forward.5} parent=1 // pred_check_branch
      %18 = sbr.rel (0) target = $region13
    $region12: #{conv_classifier_v1_forward.5} parent=1 // pred_region
      _
    $region13: #{conv_classifier_v1_forward.5} parent=1 // pred_fallthru
      _
    // Predicated region
    $region14: #{conv_classifier_v1_forward.5} parent=1 // pred_check
      _
    $region15: #{conv_classifier_v1_forward.5} parent=1 // pred_check_branch
      %20 = sbr.rel (0) target = $region17
    $region16: #{conv_classifier_v1_forward.5} parent=1 // pred_region
      _
    $region17: #{conv_classifier_v1_forward.5} parent=1 // pred_fallthru
      _
    // Predicated region
    $region18: #{conv_classifier_v1_forward.5} parent=1 // pred_check
      _
    $region19: #{conv_classifier_v1_forward.5} parent=1 // pred_check_branch
      %22 = sbr.rel (0) target = $region21
    $region20: #{conv_classifier_v1_forward.5} parent=1 // pred_region
      _
    $region21: #{conv_classifier_v1_forward.5} parent=1 // pred_fallthru
      _
    // Predicated region
    $region22: #{conv_classifier_v1_forward.5} parent=1 // pred_check
      _
    $region23: #{conv_classifier_v1_forward.5} parent=1 // pred_check_branch
      %24 = sbr.rel (0) target = $region25
    $region24: #{conv_classifier_v1_forward.5} parent=1 // pred_region
      _
    $region25: #{conv_classifier_v1_forward.5} parent=1 // pred_fallthru
      _
    // Predicated region
    $region26: #{conv_classifier_v1_forward.5} parent=1 // pred_check
      _
    $region27: #{conv_classifier_v1_forward.5} parent=1 // pred_check_branch
      %26 = sbr.rel (0) target = $region29
    $region28: #{conv_classifier_v1_forward.5} parent=1 // pred_region
      _
    $region29: #{conv_classifier_v1_forward.5} parent=1 // pred_fallthru
      _
    %v27 = vld [vmem:[%s0] sm:$0xff]
    %v28 = vld [vmem:[%s0 + $0x8] sm:$0xff]
    %v29 = vld [vmem:[%s0 + $0x10] sm:$0xff]
    %v30 = vld [vmem:[%s0 + $0x18] sm:$0x3]
    %v31 = vld [vmem:[%s1] sm:$0xff]
    %v32 = vld [vmem:[%s1 + $0x8] sm:$0xff]
    %v33 = vld [vmem:[%s1 + $0x10] sm:$0xff]
    %v34 = vld [vmem:[%s1 + $0x18] sm:$0xff]
    %v35 = vld [vmem:[%s1 + $0x20] sm:$0xff]
    %v36 = vld [vmem:[%s1 + $0x28] sm:$0xff]
    %v37 = vld [vmem:[%s1 + $0x30] sm:$0xff]
    %v38 = vld [vmem:[%s1 + $0x38] sm:$0xff]
    %v39 = vld [vmem:[%s1 + $0x40] sm:$0xff]
    %v40 = vld [vmem:[%s1 + $0x48] sm:$0xff]
    %v41 = vld [vmem:[%s1 + $0x50] sm:$0xff]
    %v42 = vld [vmem:[%s1 + $0x58] sm:$0xff]
    %v43 = vld [vmem:[%s1 + $0x60] sm:$0xff]
    %v44 = vld [vmem:[%s1 + $0x68] sm:$0xff]
    %v45 = vld [vmem:[%s1 + $0x70] sm:$0xff]
    %v46 = vld [vmem:[%s1 + $0x78] sm:$0xff]
    %v47 = vld [vmem:[%s1 + $0x80] sm:$0xff]
    %v48 = vld [vmem:[%s1 + $0x88] sm:$0xff]
    %v49 = vld [vmem:[%s1 + $0x90] sm:$0xff]
    %v50 = vld [vmem:[%s1 + $0x98] sm:$0xff]
    %v51 = vld [vmem:[%s1 + $0xa0] sm:$0xff]
    %v52 = vld [vmem:[%s1 + $0xa8] sm:$0xff]
    %v53 = vld [vmem:[%s1 + $0xb0] sm:$0xff]
    %v54 = vld [vmem:[%s1 + $0xb8] sm:$0xff]
    %v55 = vld [vmem:[%s1 + $0xc0] sm:$0xff]
    %v56 = vld [vmem:[%s1 + $0xc8] sm:$0xff]
    %v57 = vld [vmem:[%s1 + $0xd0] sm:$0xff]
    %v58 = vld [vmem:[%s1 + $0xd8] sm:$0xff]
    %v59 = vld [vmem:[%s1 + $0xe0] sm:$0xff]
    %v60 = vld [vmem:[%s1 + $0xe8] sm:$0xff]
    %v61 = vld [vmem:[%s1 + $0xf0] sm:$0xff]
    %v62 = vld [vmem:[%s1 + $0xf8] sm:$0xff]
    %v63 = vld [vmem:[%s1 + $0x100] sm:$0xff]
    %v64 = vld [vmem:[%s1 + $0x108] sm:$0xff]
    %v65 = vld [vmem:[%s1 + $0x110] sm:$0xff]
    %v66 = vld [vmem:[%s1 + $0x118] sm:$0xff]
    %v67 = vld [vmem:[%s1 + $0x120] sm:$0xff]
    %v68 = vld [vmem:[%s1 + $0x128] sm:$0xff]
    %v69 = vld [vmem:[%s1 + $0x130] sm:$0xff]
    %v70 = vld [vmem:[%s1 + $0x138] sm:$0xff]
    %v71 = vld [vmem:[%s1 + $0x140] sm:$0xff]
    %v72 = vld [vmem:[%s1 + $0x148] sm:$0xff]
    %v73 = vld [vmem:[%s1 + $0x150] sm:$0xff]
    %v74 = vld [vmem:[%s1 + $0x158] sm:$0xff]
    %v75 = vld [vmem:[%s1 + $0x160] sm:$0xff]
    %v76 = vld [vmem:[%s1 + $0x168] sm:$0xff]
    %v77 = vld [vmem:[%s1 + $0x170] sm:$0xff]
    %v78 = vld [vmem:[%s1 + $0x178] sm:$0xff]
    %v79 = vld [vmem:[%s1 + $0x180] sm:$0xff]
    %v80 = vld [vmem:[%s1 + $0x188] sm:$0xff]
    %v81 = vld [vmem:[%s1 + $0x190] sm:$0xff]
    %v82 = vld [vmem:[%s1 + $0x198] sm:$0xff]
    %v83 = vld [vmem:[%s1 + $0x1a0] sm:$0xff]
    %v84 = vld [vmem:[%s1 + $0x1a8] sm:$0xff]
    %v85 = vld [vmem:[%s1 + $0x1b0] sm:$0xff]
    %v86 = vld [vmem:[%s1 + $0x1b8] sm:$0xff]
    %v87 = vld [vmem:[%s1 + $0x1c0] sm:$0xff]
    %v88 = vld [vmem:[%s1 + $0x1c8] sm:$0xff]
    %v89 = vld [vmem:[%s1 + $0x1d0] sm:$0xff]
    %v90 = vld [vmem:[%s1 + $0x1d8] sm:$0xff]
    %v91 = vld [vmem:[%s1 + $0x1e0] sm:$0xff]
    %v92 = vld [vmem:[%s1 + $0x1e8] sm:$0xff]
    %v93 = vld [vmem:[%s1 + $0x1f0] sm:$0xff]
    %v94 = vld [vmem:[%s1 + $0x1f8] sm:$0xff]
    %v95 = vld [vmem:[%s1 + $0x200] sm:$0xff]
    %v96 = vld [vmem:[%s1 + $0x208] sm:$0xff]
    %v97 = vld [vmem:[%s1 + $0x210] sm:$0xff]
    %v98 = vld [vmem:[%s1 + $0x218] sm:$0xff]
    %v99 = vld [vmem:[%s1 + $0x220] sm:$0xff]
    %v100 = vld [vmem:[%s1 + $0x228] sm:$0xff]
    %v101 = vld [vmem:[%s1 + $0x230] sm:$0xff]
    %v102 = vld [vmem:[%s1 + $0x238] sm:$0xff]
    %v103 = vld [vmem:[%s1 + $0x240] sm:$0xff]
    %v104 = vld [vmem:[%s1 + $0x248] sm:$0xff]
    %v105 = vld [vmem:[%s1 + $0x250] sm:$0xff]
    %v106 = vld [vmem:[%s1 + $0x258] sm:$0xff]
    %v107 = vld [vmem:[%s1 + $0x260] sm:$0xff]
    %v108 = vld [vmem:[%s1 + $0x268] sm:$0xff]
    %v109 = vld [vmem:[%s1 + $0x270] sm:$0xff]
    %v110 = vld [vmem:[%s1 + $0x278] sm:$0xff]
    %v111 = vld [vmem:[%s1 + $0x280] sm:$0xff]
    %v112 = vld [vmem:[%s1 + $0x288] sm:$0xff]
    %v113 = vld [vmem:[%s1 + $0x290] sm:$0xff]
    %v114 = vld [vmem:[%s1 + $0x298] sm:$0xff]
    %v115 = vld [vmem:[%s1 + $0x2a0] sm:$0xff]
    %v116 = vld [vmem:[%s1 + $0x2a8] sm:$0xff]
    %v117 = vld [vmem:[%s1 + $0x2b0] sm:$0xff]
    %v118 = vld [vmem:[%s1 + $0x2b8] sm:$0xff]
    %v119 = vld [vmem:[%s1 + $0x2c0] sm:$0xff]
    %v120 = vld [vmem:[%s1 + $0x2c8] sm:$0xff]
    %v121 = vld [vmem:[%s1 + $0x2d0] sm:$0xff]
    %v122 = vld [vmem:[%s1 + $0x2d8] sm:$0xff]
    %v123 = vld [vmem:[%s1 + $0x2e0] sm:$0xff]
    %v124 = vld [vmem:[%s1 + $0x2e8] sm:$0xff]
    %v125 = vld [vmem:[%s1 + $0x2f0] sm:$0xff]
    %v126 = vld [vmem:[%s1 + $0x2f8] sm:$0xff]
    %v127 = vld [vmem:[%s1 + $0x300] sm:$0xff]
    %v128 = vld [vmem:[%s1 + $0x308] sm:$0xff]
    %v129 = vld [vmem:[%s1 + $0x310] sm:$0xff]
    %v130 = vld [vmem:[%s1 + $0x318] sm:$0xff]
    %v131 = vld [vmem:[%s1 + $0x320] sm:$0xff]
    %v132 = vld [vmem:[%s1 + $0x328] sm:$0xff]
    %v133 = vld [vmem:[%s1 + $0x330] sm:$0xff]
    %v134 = vld [vmem:[%s1 + $0x338] sm:$0xff]
    %v135 = vld [vmem:[%s1 + $0x340] sm:$0xff]
    %v136 = vld [vmem:[%s1 + $0x348] sm:$0xff]
    %v137 = vld [vmem:[%s1 + $0x350] sm:$0xff]
    %v138 = vld [vmem:[%s1 + $0x358] sm:$0xff]
    %v139 = vld [vmem:[%s1 + $0x360] sm:$0xff]
    %v140 = vld [vmem:[%s1 + $0x368] sm:$0xff]
    %v141 = vld [vmem:[%s1 + $0x370] sm:$0xff]
    %v142 = vld [vmem:[%s1 + $0x378] sm:$0xff]
    %v143 = vld [vmem:[%s1 + $0x380] sm:$0xff]
    %v144 = vld [vmem:[%s1 + $0x388] sm:$0xff]
    %v145 = vld [vmem:[%s1 + $0x390] sm:$0xff]
    %v146 = vld [vmem:[%s1 + $0x398] sm:$0xff]
    %v147 = vld [vmem:[%s1 + $0x3a0] sm:$0xff]
    %v148 = vld [vmem:[%s1 + $0x3a8] sm:$0xff]
    %v149 = vld [vmem:[%s1 + $0x3b0] sm:$0xff]
    %v150 = vld [vmem:[%s1 + $0x3b8] sm:$0xff]
    %v151 = vld [vmem:[%s1 + $0x3c0] sm:$0xff]
    %v152 = vld [vmem:[%s1 + $0x3c8] sm:$0xff]
    %v153 = vld [vmem:[%s1 + $0x3d0] sm:$0xff]
    %v154 = vld [vmem:[%s1 + $0x3d8] sm:$0xff]
    %v155 = vld [vmem:[%s1 + $0x3e0] sm:$0xff]
    %v156 = vld [vmem:[%s1 + $0x3e8] sm:$0xff]
    %v157 = vld [vmem:[%s1 + $0x3f0] sm:$0xff]
    %v158 = vld [vmem:[%s1 + $0x3f8] sm:$0xff]
    %v159 = vld [vmem:[%s1 + $0x400] sm:$0xff]
    %v160 = vld [vmem:[%s1 + $0x408] sm:$0xff]
    %v161 = vld [vmem:[%s1 + $0x410] sm:$0xff]
    %v162 = vld [vmem:[%s1 + $0x418] sm:$0xff]
    %v163 = vld [vmem:[%s1 + $0x420] sm:$0xff]
    %v164 = vld [vmem:[%s1 + $0x428] sm:$0xff]
    %v165 = vld [vmem:[%s1 + $0x430] sm:$0xff]
    %v166 = vld [vmem:[%s1 + $0x438] sm:$0xff]
    %v167 = vld [vmem:[%s1 + $0x440] sm:$0xff]
    %v168 = vld [vmem:[%s1 + $0x448] sm:$0xff]
    %v169 = vld [vmem:[%s1 + $0x450] sm:$0xff]
    %v170 = vld [vmem:[%s1 + $0x458] sm:$0xff]
    %v171 = vld [vmem:[%s1 + $0x460] sm:$0xff]
    %v172 = vld [vmem:[%s1 + $0x468] sm:$0xff]
    %v173 = vld [vmem:[%s1 + $0x470] sm:$0xff]
    %v174 = vld [vmem:[%s1 + $0x478] sm:$0xff]
    %v175 = vld [vmem:[%s1 + $0x480] sm:$0xff]
    %v176 = vld [vmem:[%s1 + $0x488] sm:$0xff]
    %v177 = vld [vmem:[%s1 + $0x490] sm:$0xff]
    %v178 = vld [vmem:[%s1 + $0x498] sm:$0xff]
    %v179 = vld [vmem:[%s1 + $0x4a0] sm:$0xff]
    %v180 = vld [vmem:[%s1 + $0x4a8] sm:$0xff]
    %v181 = vld [vmem:[%s1 + $0x4b0] sm:$0xff]
    %v182 = vld [vmem:[%s1 + $0x4b8] sm:$0xff]
    %v183 = vld [vmem:[%s1 + $0x4c0] sm:$0xff]
    %v184 = vld [vmem:[%s1 + $0x4c8] sm:$0xff]
    %v185 = vld [vmem:[%s1 + $0x4d0] sm:$0xff]
    %v186 = vld [vmem:[%s1 + $0x4d8] sm:$0xff]
    %v187 = vld [vmem:[%s1 + $0x4e0] sm:$0xff]
    %v188 = vld [vmem:[%s1 + $0x4e8] sm:$0xff]
    %v189 = vld [vmem:[%s1 + $0x4f0] sm:$0xff]
    %v190 = vld [vmem:[%s1 + $0x4f8] sm:$0xff]
    %v191 = vld [vmem:[%s1 + $0x500] sm:$0xff]
    %v192 = vld [vmem:[%s1 + $0x508] sm:$0xff]
    %v193 = vld [vmem:[%s1 + $0x510] sm:$0xff]
    %v194 = vld [vmem:[%s1 + $0x518] sm:$0xff]
    %v195 = vld [vmem:[%s1 + $0x520] sm:$0xff]
    %v196 = vld [vmem:[%s1 + $0x528] sm:$0xff]
    %v197 = vld [vmem:[%s1 + $0x530] sm:$0xff]
    %v198 = vld [vmem:[%s1 + $0x538] sm:$0xff]
    %v199 = vld [vmem:[%s1 + $0x540] sm:$0xff]
    %v200 = vld [vmem:[%s1 + $0x548] sm:$0xff]
    %v201 = vld [vmem:[%s1 + $0x550] sm:$0xff]
    %v202 = vld [vmem:[%s1 + $0x558] sm:$0xff]
    %v203 = vld [vmem:[%s1 + $0x560] sm:$0xff]
    %v204 = vld [vmem:[%s1 + $0x568] sm:$0xff]
    %v205 = vld [vmem:[%s1 + $0x570] sm:$0xff]
    %v206 = vld [vmem:[%s1 + $0x578] sm:$0xff]
    %v207 = vld [vmem:[%s1 + $0x580] sm:$0xff]
    %v208 = vld [vmem:[%s1 + $0x588] sm:$0xff]
    %v209 = vld [vmem:[%s1 + $0x590] sm:$0xff]
    %v210 = vld [vmem:[%s1 + $0x598] sm:$0xff]
    %v211 = vld [vmem:[%s1 + $0x5a0] sm:$0xff]
    %v212 = vld [vmem:[%s1 + $0x5a8] sm:$0xff]
    %v213 = vld [vmem:[%s1 + $0x5b0] sm:$0xff]
    %v214 = vld [vmem:[%s1 + $0x5b8] sm:$0xff]
    %v215 = vld [vmem:[%s1 + $0x5c0] sm:$0xff]
    %v216 = vld [vmem:[%s1 + $0x5c8] sm:$0xff]
    %v217 = vld [vmem:[%s1 + $0x5d0] sm:$0xff]
    %v218 = vld [vmem:[%s1 + $0x5d8] sm:$0xff]
    %v219 = vld [vmem:[%s1 + $0x5e0] sm:$0xff]
    %v220 = vld [vmem:[%s1 + $0x5e8] sm:$0xff]
    %v221 = vld [vmem:[%s1 + $0x5f0] sm:$0xff]
    %v222 = vld [vmem:[%s1 + $0x5f8] sm:$0xff]
    %v223 = vld [vmem:[%s1 + $0x600] sm:$0xff]
    %v224 = vld [vmem:[%s1 + $0x608] sm:$0xff]
    %v225 = vld [vmem:[%s1 + $0x610] sm:$0xff]
    %v226 = vld [vmem:[%s1 + $0x618] sm:$0xff]
    %v227 = vld [vmem:[%s2] sm:$0x1]
    %v229 = vlaneseq
    %v230 = vshrl.u32 %v229, 7
    %v231 = vsub.s32 0, %v230
    %v232 = vrot.slane %v227, %v231
    %v238 = vcombine.high %v27, %v27
    %v240 = vunpack.c.l.s4 1983009808
    %v241 = vunpack.c.0.s8 %v240
    %v242 = vlaneseq
    %v243 = vshrl.u32 %v242, 7
    %v244 = vsub.s32 %v241, %v243
    %v245 = vrot.slane %v27, %v244
    %v247 = vunpack.c.l.s4 1983009808
    %v248 = vunpack.c.0.s8 %v247
    %v249 = vlaneseq
    %v250 = vshrl.u32 %v249, 7
    %v251 = vsub.s32 %v248, %v250
    %v252 = vrot.slane %v238, %v251
    %v253 = vcombine.high %v245, %v245
    %v254 = vcombine.high %v252, %v252
    %v255 = vcombine.high %v28, %v28
    %v257 = vunpack.c.l.s4 1983009808
    %v258 = vunpack.c.0.s8 %v257
    %v259 = vlaneseq
    %v260 = vshrl.u32 %v259, 7
    %v261 = vsub.s32 %v258, %v260
    %v262 = vrot.slane %v28, %v261
    %v264 = vunpack.c.l.s4 1983009808
    %v265 = vunpack.c.0.s8 %v264
    %v266 = vlaneseq
    %v267 = vshrl.u32 %v266, 7
    %v268 = vsub.s32 %v265, %v267
    %v269 = vrot.slane %v255, %v268
    %v270 = vcombine.high %v262, %v262
    %v271 = vcombine.high %v269, %v269
    %v272 = vcombine.high %v29, %v29
    %v274 = vunpack.c.l.s4 1983009808
    %v275 = vunpack.c.0.s8 %v274
    %v276 = vlaneseq
    %v277 = vshrl.u32 %v276, 7
    %v278 = vsub.s32 %v275, %v277
    %v279 = vrot.slane %v29, %v278
    %v281 = vunpack.c.l.s4 1983009808
    %v282 = vunpack.c.0.s8 %v281
    %v283 = vlaneseq
    %v284 = vshrl.u32 %v283, 7
    %v285 = vsub.s32 %v282, %v284
    %v286 = vrot.slane %v272, %v285
    %v287 = vcombine.high %v279, %v279
    %v288 = vcombine.high %v286, %v286
    %v290 = vunpack.c.l.s4 1983009808
    %v291 = vunpack.c.0.s8 %v290
    %v292 = vlaneseq
    %v293 = vshrl.u32 %v292, 7
    %v294 = vsub.s32 %v291, %v293
    %v295 = vrot.slane %v30, %v294
    %vm308 = vcmask 261120
    %v309 = vsel %vm308, %v295, 0
    %311 = vmatprep.subr.mxu0 0.0
    %312 = vmatpush1.msra.mxu0 %v31
    %313 = vmatprep.subr.mxu0 0.0
    %314 = vmatpush1.msra.mxu0 %v32
    %315 = vmatprep.subr.mxu0 0.0
    %316 = vmatpush1.msra.mxu0 %v33
    %317 = vmatprep.subr.mxu0 0.0
    %318 = vmatpush1.msra.mxu0 %v34
    %319 = vmatprep.subr.mxu0 0.0
    %320 = vmatpush1.msra.mxu0 %v35
    %321 = vmatprep.subr.mxu0 0.0
    %322 = vmatpush1.msra.mxu0 %v36
    %323 = vmatprep.subr.mxu0 0.0
    %324 = vmatpush1.msra.mxu0 %v37
    %325 = vmatprep.subr.mxu0 0.0
    %326 = vmatpush1.msra.mxu0 %v38
    %327 = vmatprep.subr.mxu0 0.0
    %328 = vmatpush1.msra.mxu0 %v39
    %329 = vmatprep.subr.mxu0 0.0
    %330 = vmatpush1.msra.mxu0 %v40
    %331 = vmatprep.subr.mxu0 0.0
    %332 = vmatpush1.msra.mxu0 %v41
    %333 = vmatprep.subr.mxu0 0.0
    %334 = vmatpush1.msra.mxu0 %v42
    %335 = vmatprep.subr.mxu0 0.0
    %336 = vmatpush1.msra.mxu0 %v43
    %337 = vmatprep.subr.mxu0 0.0
    %338 = vmatpush1.msra.mxu0 %v44
    %339 = vmatprep.subr.mxu0 0.0
    %340 = vmatpush1.msra.mxu0 %v45
    %341 = vmatprep.subr.mxu0 0.0
    %342 = vmatpush1.msra.mxu0 %v46
    %343 = vmatprep.subr.mxu0 0.0
    %344 = vmatpush1.msra.mxu0 %v47
    %345 = vmatprep.subr.mxu0 0.0
    %346 = vmatpush1.msra.mxu0 %v48
    %347 = vmatprep.subr.mxu0 0.0
    %348 = vmatpush1.msra.mxu0 %v49
    %349 = vmatprep.subr.mxu0 0.0
    %350 = vmatpush1.msra.mxu0 %v50
    %351 = vmatprep.subr.mxu0 0.0
    %352 = vmatpush1.msra.mxu0 %v51
    %353 = vmatprep.subr.mxu0 0.0
    %354 = vmatpush1.msra.mxu0 %v52
    %355 = vmatprep.subr.mxu0 0.0
    %356 = vmatpush1.msra.mxu0 %v53
    %357 = vmatprep.subr.mxu0 0.0
    %358 = vmatpush1.msra.mxu0 %v54
    %359 = vmatprep.subr.mxu0 0.0
    %360 = vmatpush1.msra.mxu0 %v55
    %361 = vmatprep.subr.mxu0 0.0
    %362 = vmatpush1.msra.mxu0 %v56
    %363 = vmatprep.subr.mxu0 0.0
    %364 = vmatpush1.msra.mxu0 %v57
    %365 = vmatprep.subr.mxu0 0.0
    %366 = vmatpush1.msra.mxu0 %v58
    %367 = vmatprep.subr.mxu0 0.0
    %368 = vmatpush1.msra.mxu0 %v59
    %369 = vmatprep.subr.mxu0 0.0
    %370 = vmatpush1.msra.mxu0 %v60
    %371 = vmatprep.subr.mxu0 0.0
    %372 = vmatpush1.msra.mxu0 %v61
    %373 = vmatprep.subr.mxu0 0.0
    %374 = vmatpush1.msra.mxu0 %v62
    %375 = vmatprep.mubr.f32.mxu0 %v253
    %376 = vmatmul.mubr.f32.gmra.mrb[0].mxu0 %v245
    %v377 = vpop.f32.mrb[0].mxu0
    %v378 = vadd.f32 %v232, %v377
    %v379 = vpop.f32.mrb[0].mxu0
    %380 = vdwg.mxu0
    %381 = vmatprep.subr.mxu0 0.0
    %382 = vmatpush1.msra.mxu0 %v63
    %383 = vmatprep.subr.mxu0 0.0
    %384 = vmatpush1.msra.mxu0 %v64
    %385 = vmatprep.subr.mxu0 0.0
    %386 = vmatpush1.msra.mxu0 %v65
    %387 = vmatprep.subr.mxu0 0.0
    %388 = vmatpush1.msra.mxu0 %v66
    %389 = vmatprep.subr.mxu0 0.0
    %390 = vmatpush1.msra.mxu0 %v67
    %391 = vmatprep.subr.mxu0 0.0
    %392 = vmatpush1.msra.mxu0 %v68
    %393 = vmatprep.subr.mxu0 0.0
    %394 = vmatpush1.msra.mxu0 %v69
    %395 = vmatprep.subr.mxu0 0.0
    %396 = vmatpush1.msra.mxu0 %v70
    %397 = vmatprep.subr.mxu0 0.0
    %398 = vmatpush1.msra.mxu0 %v71
    %399 = vmatprep.subr.mxu0 0.0
    %400 = vmatpush1.msra.mxu0 %v72
    %401 = vmatprep.subr.mxu0 0.0
    %402 = vmatpush1.msra.mxu0 %v73
    %403 = vmatprep.subr.mxu0 0.0
    %404 = vmatpush1.msra.mxu0 %v74
    %405 = vmatprep.subr.mxu0 0.0
    %406 = vmatpush1.msra.mxu0 %v75
    %407 = vmatprep.subr.mxu0 0.0
    %408 = vmatpush1.msra.mxu0 %v76
    %409 = vmatprep.subr.mxu0 0.0
    %410 = vmatpush1.msra.mxu0 %v77
    %411 = vmatprep.subr.mxu0 0.0
    %412 = vmatpush1.msra.mxu0 %v78
    %413 = vmatprep.subr.mxu0 0.0
    %414 = vmatpush1.msra.mxu0 %v79
    %415 = vmatprep.subr.mxu0 0.0
    %416 = vmatpush1.msra.mxu0 %v80
    %417 = vmatprep.subr.mxu0 0.0
    %418 = vmatpush1.msra.mxu0 %v81
    %419 = vmatprep.subr.mxu0 0.0
    %420 = vmatpush1.msra.mxu0 %v82
    %421 = vmatprep.subr.mxu0 0.0
    %422 = vmatpush1.msra.mxu0 %v83
    %423 = vmatprep.subr.mxu0 0.0
    %424 = vmatpush1.msra.mxu0 %v84
    %425 = vmatprep.subr.mxu0 0.0
    %426 = vmatpush1.msra.mxu0 %v85
    %427 = vmatprep.subr.mxu0 0.0
    %428 = vmatpush1.msra.mxu0 %v86
    %429 = vmatprep.subr.mxu0 0.0
    %430 = vmatpush1.msra.mxu0 %v87
    %431 = vmatprep.subr.mxu0 0.0
    %432 = vmatpush1.msra.mxu0 %v88
    %433 = vmatprep.subr.mxu0 0.0
    %434 = vmatpush1.msra.mxu0 %v89
    %435 = vmatprep.subr.mxu0 0.0
    %436 = vmatpush1.msra.mxu0 %v90
    %437 = vmatprep.subr.mxu0 0.0
    %438 = vmatpush1.msra.mxu0 %v91
    %439 = vmatprep.subr.mxu0 0.0
    %440 = vmatpush1.msra.mxu0 %v92
    %441 = vmatprep.subr.mxu0 0.0
    %442 = vmatpush1.msra.mxu0 %v93
    %443 = vmatprep.subr.mxu0 0.0
    %444 = vmatpush1.msra.mxu0 %v94
    %445 = vmatprep.mubr.f32.mxu0 %v254
    %446 = vmatmul.mubr.f32.gmra.mrb[0].mxu0 %v252
    %v447 = vpop.f32.mrb[0].mxu0
    %v448 = vadd.f32 %v378, %v447
    %v449 = vpop.f32.mrb[0].mxu0
    %450 = vdwg.mxu0
    %451 = vmatprep.subr.mxu0 0.0
    %452 = vmatpush1.msra.mxu0 %v95
    %453 = vmatprep.subr.mxu0 0.0
    %454 = vmatpush1.msra.mxu0 %v96
    %455 = vmatprep.subr.mxu0 0.0
    %456 = vmatpush1.msra.mxu0 %v97
    %457 = vmatprep.subr.mxu0 0.0
    %458 = vmatpush1.msra.mxu0 %v98
    %459 = vmatprep.subr.mxu0 0.0
    %460 = vmatpush1.msra.mxu0 %v99
    %461 = vmatprep.subr.mxu0 0.0
    %462 = vmatpush1.msra.mxu0 %v100
    %463 = vmatprep.subr.mxu0 0.0
    %464 = vmatpush1.msra.mxu0 %v101
    %465 = vmatprep.subr.mxu0 0.0
    %466 = vmatpush1.msra.mxu0 %v102
    %467 = vmatprep.subr.mxu0 0.0
    %468 = vmatpush1.msra.mxu0 %v103
    %469 = vmatprep.subr.mxu0 0.0
    %470 = vmatpush1.msra.mxu0 %v104
    %471 = vmatprep.subr.mxu0 0.0
    %472 = vmatpush1.msra.mxu0 %v105
    %473 = vmatprep.subr.mxu0 0.0
    %474 = vmatpush1.msra.mxu0 %v106
    %475 = vmatprep.subr.mxu0 0.0
    %476 = vmatpush1.msra.mxu0 %v107
    %477 = vmatprep.subr.mxu0 0.0
    %478 = vmatpush1.msra.mxu0 %v108
    %479 = vmatprep.subr.mxu0 0.0
    %480 = vmatpush1.msra.mxu0 %v109
    %481 = vmatprep.subr.mxu0 0.0
    %482 = vmatpush1.msra.mxu0 %v110
    %483 = vmatprep.subr.mxu0 0.0
    %484 = vmatpush1.msra.mxu0 %v111
    %485 = vmatprep.subr.mxu0 0.0
    %486 = vmatpush1.msra.mxu0 %v112
    %487 = vmatprep.subr.mxu0 0.0
    %488 = vmatpush1.msra.mxu0 %v113
    %489 = vmatprep.subr.mxu0 0.0
    %490 = vmatpush1.msra.mxu0 %v114
    %491 = vmatprep.subr.mxu0 0.0
    %492 = vmatpush1.msra.mxu0 %v115
    %493 = vmatprep.subr.mxu0 0.0
    %494 = vmatpush1.msra.mxu0 %v116
    %495 = vmatprep.subr.mxu0 0.0
    %496 = vmatpush1.msra.mxu0 %v117
    %497 = vmatprep.subr.mxu0 0.0
    %498 = vmatpush1.msra.mxu0 %v118
    %499 = vmatprep.subr.mxu0 0.0
    %500 = vmatpush1.msra.mxu0 %v119
    %501 = vmatprep.subr.mxu0 0.0
    %502 = vmatpush1.msra.mxu0 %v120
    %503 = vmatprep.subr.mxu0 0.0
    %504 = vmatpush1.msra.mxu0 %v121
    %505 = vmatprep.subr.mxu0 0.0
    %506 = vmatpush1.msra.mxu0 %v122
    %507 = vmatprep.subr.mxu0 0.0
    %508 = vmatpush1.msra.mxu0 %v123
    %509 = vmatprep.subr.mxu0 0.0
    %510 = vmatpush1.msra.mxu0 %v124
    %511 = vmatprep.subr.mxu0 0.0
    %512 = vmatpush1.msra.mxu0 %v125
    %513 = vmatprep.subr.mxu0 0.0
    %514 = vmatpush1.msra.mxu0 %v126
    %515 = vmatprep.mubr.f32.mxu0 %v270
    %516 = vmatmul.mubr.f32.gmra.mrb[0].mxu0 %v262
    %v517 = vpop.f32.mrb[0].mxu0
    %v518 = vadd.f32 %v448, %v517
    %v519 = vpop.f32.mrb[0].mxu0
    %520 = vdwg.mxu0
    %521 = vmatprep.subr.mxu0 0.0
    %522 = vmatpush1.msra.mxu0 %v127
    %523 = vmatprep.subr.mxu0 0.0
    %524 = vmatpush1.msra.mxu0 %v128
    %525 = vmatprep.subr.mxu0 0.0
    %526 = vmatpush1.msra.mxu0 %v129
    %527 = vmatprep.subr.mxu0 0.0
    %528 = vmatpush1.msra.mxu0 %v130
    %529 = vmatprep.subr.mxu0 0.0
    %530 = vmatpush1.msra.mxu0 %v131
    %531 = vmatprep.subr.mxu0 0.0
    %532 = vmatpush1.msra.mxu0 %v132
    %533 = vmatprep.subr.mxu0 0.0
    %534 = vmatpush1.msra.mxu0 %v133
    %535 = vmatprep.subr.mxu0 0.0
    %536 = vmatpush1.msra.mxu0 %v134
    %537 = vmatprep.subr.mxu0 0.0
    %538 = vmatpush1.msra.mxu0 %v135
    %539 = vmatprep.subr.mxu0 0.0
    %540 = vmatpush1.msra.mxu0 %v136
    %541 = vmatprep.subr.mxu0 0.0
    %542 = vmatpush1.msra.mxu0 %v137
    %543 = vmatprep.subr.mxu0 0.0
    %544 = vmatpush1.msra.mxu0 %v138
    %545 = vmatprep.subr.mxu0 0.0
    %546 = vmatpush1.msra.mxu0 %v139
    %547 = vmatprep.subr.mxu0 0.0
    %548 = vmatpush1.msra.mxu0 %v140
    %549 = vmatprep.subr.mxu0 0.0
    %550 = vmatpush1.msra.mxu0 %v141
    %551 = vmatprep.subr.mxu0 0.0
    %552 = vmatpush1.msra.mxu0 %v142
    %553 = vmatprep.subr.mxu0 0.0
    %554 = vmatpush1.msra.mxu0 %v143
    %555 = vmatprep.subr.mxu0 0.0
    %556 = vmatpush1.msra.mxu0 %v144
    %557 = vmatprep.subr.mxu0 0.0
    %558 = vmatpush1.msra.mxu0 %v145
    %559 = vmatprep.subr.mxu0 0.0
    %560 = vmatpush1.msra.mxu0 %v146
    %561 = vmatprep.subr.mxu0 0.0
    %562 = vmatpush1.msra.mxu0 %v147
    %563 = vmatprep.subr.mxu0 0.0
    %564 = vmatpush1.msra.mxu0 %v148
    %565 = vmatprep.subr.mxu0 0.0
    %566 = vmatpush1.msra.mxu0 %v149
    %567 = vmatprep.subr.mxu0 0.0
    %568 = vmatpush1.msra.mxu0 %v150
    %569 = vmatprep.subr.mxu0 0.0
    %570 = vmatpush1.msra.mxu0 %v151
    %571 = vmatprep.subr.mxu0 0.0
    %572 = vmatpush1.msra.mxu0 %v152
    %573 = vmatprep.subr.mxu0 0.0
    %574 = vmatpush1.msra.mxu0 %v153
    %575 = vmatprep.subr.mxu0 0.0
    %576 = vmatpush1.msra.mxu0 %v154
    %577 = vmatprep.subr.mxu0 0.0
    %578 = vmatpush1.msra.mxu0 %v155
    %579 = vmatprep.subr.mxu0 0.0
    %580 = vmatpush1.msra.mxu0 %v156
    %581 = vmatprep.subr.mxu0 0.0
    %582 = vmatpush1.msra.mxu0 %v157
    %583 = vmatprep.subr.mxu0 0.0
    %584 = vmatpush1.msra.mxu0 %v158
    %585 = vmatprep.mubr.f32.mxu0 %v271
    %586 = vmatmul.mubr.f32.gmra.mrb[0].mxu0 %v269
    %v587 = vpop.f32.mrb[0].mxu0
    %v588 = vadd.f32 %v518, %v587
    %v589 = vpop.f32.mrb[0].mxu0
    %590 = vdwg.mxu0
    %591 = vmatprep.subr.mxu0 0.0
    %592 = vmatpush1.msra.mxu0 %v159
    %593 = vmatprep.subr.mxu0 0.0
    %594 = vmatpush1.msra.mxu0 %v160
    %595 = vmatprep.subr.mxu0 0.0
    %596 = vmatpush1.msra.mxu0 %v161
    %597 = vmatprep.subr.mxu0 0.0
    %598 = vmatpush1.msra.mxu0 %v162
    %599 = vmatprep.subr.mxu0 0.0
    %600 = vmatpush1.msra.mxu0 %v163
    %601 = vmatprep.subr.mxu0 0.0
    %602 = vmatpush1.msra.mxu0 %v164
    %603 = vmatprep.subr.mxu0 0.0
    %604 = vmatpush1.msra.mxu0 %v165
    %605 = vmatprep.subr.mxu0 0.0
    %606 = vmatpush1.msra.mxu0 %v166
    %607 = vmatprep.subr.mxu0 0.0
    %608 = vmatpush1.msra.mxu0 %v167
    %609 = vmatprep.subr.mxu0 0.0
    %610 = vmatpush1.msra.mxu0 %v168
    %611 = vmatprep.subr.mxu0 0.0
    %612 = vmatpush1.msra.mxu0 %v169
    %613 = vmatprep.subr.mxu0 0.0
    %614 = vmatpush1.msra.mxu0 %v170
    %615 = vmatprep.subr.mxu0 0.0
    %616 = vmatpush1.msra.mxu0 %v171
    %617 = vmatprep.subr.mxu0 0.0
    %618 = vmatpush1.msra.mxu0 %v172
    %619 = vmatprep.subr.mxu0 0.0
    %620 = vmatpush1.msra.mxu0 %v173
    %621 = vmatprep.subr.mxu0 0.0
    %622 = vmatpush1.msra.mxu0 %v174
    %623 = vmatprep.subr.mxu0 0.0
    %624 = vmatpush1.msra.mxu0 %v175
    %625 = vmatprep.subr.mxu0 0.0
    %626 = vmatpush1.msra.mxu0 %v176
    %627 = vmatprep.subr.mxu0 0.0
    %628 = vmatpush1.msra.mxu0 %v177
    %629 = vmatprep.subr.mxu0 0.0
    %630 = vmatpush1.msra.mxu0 %v178
    %631 = vmatprep.subr.mxu0 0.0
    %632 = vmatpush1.msra.mxu0 %v179
    %633 = vmatprep.subr.mxu0 0.0
    %634 = vmatpush1.msra.mxu0 %v180
    %635 = vmatprep.subr.mxu0 0.0
    %636 = vmatpush1.msra.mxu0 %v181
    %637 = vmatprep.subr.mxu0 0.0
    %638 = vmatpush1.msra.mxu0 %v182
    %639 = vmatprep.subr.mxu0 0.0
    %640 = vmatpush1.msra.mxu0 %v183
    %641 = vmatprep.subr.mxu0 0.0
    %642 = vmatpush1.msra.mxu0 %v184
    %643 = vmatprep.subr.mxu0 0.0
    %644 = vmatpush1.msra.mxu0 %v185
    %645 = vmatprep.subr.mxu0 0.0
    %646 = vmatpush1.msra.mxu0 %v186
    %647 = vmatprep.subr.mxu0 0.0
    %648 = vmatpush1.msra.mxu0 %v187
    %649 = vmatprep.subr.mxu0 0.0
    %650 = vmatpush1.msra.mxu0 %v188
    %651 = vmatprep.subr.mxu0 0.0
    %652 = vmatpush1.msra.mxu0 %v189
    %653 = vmatprep.subr.mxu0 0.0
    %654 = vmatpush1.msra.mxu0 %v190
    %655 = vmatprep.mubr.f32.mxu0 %v287
    %656 = vmatmul.mubr.f32.gmra.mrb[0].mxu0 %v279
    %v657 = vpop.f32.mrb[0].mxu0
    %v658 = vadd.f32 %v588, %v657
    %v659 = vpop.f32.mrb[0].mxu0
    %660 = vdwg.mxu0
    %661 = vmatprep.subr.mxu0 0.0
    %662 = vmatpush1.msra.mxu0 %v191
    %663 = vmatprep.subr.mxu0 0.0
    %664 = vmatpush1.msra.mxu0 %v192
    %665 = vmatprep.subr.mxu0 0.0
    %666 = vmatpush1.msra.mxu0 %v193
    %667 = vmatprep.subr.mxu0 0.0
    %668 = vmatpush1.msra.mxu0 %v194
    %669 = vmatprep.subr.mxu0 0.0
    %670 = vmatpush1.msra.mxu0 %v195
    %671 = vmatprep.subr.mxu0 0.0
    %672 = vmatpush1.msra.mxu0 %v196
    %673 = vmatprep.subr.mxu0 0.0
    %674 = vmatpush1.msra.mxu0 %v197
    %675 = vmatprep.subr.mxu0 0.0
    %676 = vmatpush1.msra.mxu0 %v198
    %677 = vmatprep.subr.mxu0 0.0
    %678 = vmatpush1.msra.mxu0 %v199
    %679 = vmatprep.subr.mxu0 0.0
    %680 = vmatpush1.msra.mxu0 %v200
    %681 = vmatprep.subr.mxu0 0.0
    %682 = vmatpush1.msra.mxu0 %v201
    %683 = vmatprep.subr.mxu0 0.0
    %684 = vmatpush1.msra.mxu0 %v202
    %685 = vmatprep.subr.mxu0 0.0
    %686 = vmatpush1.msra.mxu0 %v203
    %687 = vmatprep.subr.mxu0 0.0
    %688 = vmatpush1.msra.mxu0 %v204
    %689 = vmatprep.subr.mxu0 0.0
    %690 = vmatpush1.msra.mxu0 %v205
    %691 = vmatprep.subr.mxu0 0.0
    %692 = vmatpush1.msra.mxu0 %v206
    %693 = vmatprep.subr.mxu0 0.0
    %694 = vmatpush1.msra.mxu0 %v207
    %695 = vmatprep.subr.mxu0 0.0
    %696 = vmatpush1.msra.mxu0 %v208
    %697 = vmatprep.subr.mxu0 0.0
    %698 = vmatpush1.msra.mxu0 %v209
    %699 = vmatprep.subr.mxu0 0.0
    %700 = vmatpush1.msra.mxu0 %v210
    %701 = vmatprep.subr.mxu0 0.0
    %702 = vmatpush1.msra.mxu0 %v211
    %703 = vmatprep.subr.mxu0 0.0
    %704 = vmatpush1.msra.mxu0 %v212
    %705 = vmatprep.subr.mxu0 0.0
    %706 = vmatpush1.msra.mxu0 %v213
    %707 = vmatprep.subr.mxu0 0.0
    %708 = vmatpush1.msra.mxu0 %v214
    %709 = vmatprep.subr.mxu0 0.0
    %710 = vmatpush1.msra.mxu0 %v215
    %711 = vmatprep.subr.mxu0 0.0
    %712 = vmatpush1.msra.mxu0 %v216
    %713 = vmatprep.subr.mxu0 0.0
    %714 = vmatpush1.msra.mxu0 %v217
    %715 = vmatprep.subr.mxu0 0.0
    %716 = vmatpush1.msra.mxu0 %v218
    %717 = vmatprep.subr.mxu0 0.0
    %718 = vmatpush1.msra.mxu0 %v219
    %719 = vmatprep.subr.mxu0 0.0
    %720 = vmatpush1.msra.mxu0 %v220
    %721 = vmatprep.subr.mxu0 0.0
    %722 = vmatpush1.msra.mxu0 %v221
    %723 = vmatprep.subr.mxu0 0.0
    %724 = vmatpush1.msra.mxu0 %v222
    %725 = vmatprep.mubr.f32.mxu0 %v288
    %726 = vmatmul.mubr.f32.gmra.mrb[0].mxu0 %v286
    %v727 = vpop.f32.mrb[0].mxu0
    %v728 = vadd.f32 %v658, %v727
    %v729 = vpop.f32.mrb[0].mxu0
    %730 = vdwg.mxu0
    %731 = vmatprep.subr.mxu0 0.0
    %732 = vmatpush1.msra.mxu0 %v223
    %733 = vmatprep.subr.mxu0 0.0
    %734 = vmatpush1.msra.mxu0 %v224
    %735 = vmatprep.subr.mxu0 0.0
    %736 = vmatpush1.msra.mxu0 %v225
    %737 = vmatprep.subr.mxu0 0.0
    %738 = vmatpush1.msra.mxu0 %v226
    %739 = vmatprep.subr.mxu0 0.0
    %740 = vmatpush1.msra.mxu0 0.0
    %741 = vmatprep.subr.mxu0 0.0
    %742 = vmatpush1.msra.mxu0 0.0
    %743 = vmatprep.subr.mxu0 0.0
    %744 = vmatpush1.msra.mxu0 0.0
    %745 = vmatprep.subr.mxu0 0.0
    %746 = vmatpush1.msra.mxu0 0.0
    %747 = vmatprep.subr.mxu0 0.0
    %748 = vmatpush1.msra.mxu0 0.0
    %749 = vmatprep.subr.mxu0 0.0
    %750 = vmatpush1.msra.mxu0 0.0
    %751 = vmatprep.subr.mxu0 0.0
    %752 = vmatpush1.msra.mxu0 0.0
    %753 = vmatprep.subr.mxu0 0.0
    %754 = vmatpush1.msra.mxu0 0.0
    %755 = vmatprep.subr.mxu0 0.0
    %756 = vmatpush1.msra.mxu0 0.0
    %757 = vmatprep.subr.mxu0 0.0
    %758 = vmatpush1.msra.mxu0 0.0
    %759 = vmatprep.subr.mxu0 0.0
    %760 = vmatpush1.msra.mxu0 0.0
    %761 = vmatprep.subr.mxu0 0.0
    %762 = vmatpush1.msra.mxu0 0.0
    %763 = vmatprep.subr.mxu0 0.0
    %764 = vmatpush1.msra.mxu0 0.0
    %765 = vmatprep.subr.mxu0 0.0
    %766 = vmatpush1.msra.mxu0 0.0
    %767 = vmatprep.subr.mxu0 0.0
    %768 = vmatpush1.msra.mxu0 0.0
    %769 = vmatprep.subr.mxu0 0.0
    %770 = vmatpush1.msra.mxu0 0.0
    %771 = vmatprep.subr.mxu0 0.0
    %772 = vmatpush1.msra.mxu0 0.0
    %773 = vmatprep.subr.mxu0 0.0
    %774 = vmatpush1.msra.mxu0 0.0
    %775 = vmatprep.subr.mxu0 0.0
    %776 = vmatpush1.msra.mxu0 0.0
    %777 = vmatprep.subr.mxu0 0.0
    %778 = vmatpush1.msra.mxu0 0.0
    %779 = vmatprep.subr.mxu0 0.0
    %780 = vmatpush1.msra.mxu0 0.0
    %781 = vmatprep.subr.mxu0 0.0
    %782 = vmatpush1.msra.mxu0 0.0
    %783 = vmatprep.subr.mxu0 0.0
    %784 = vmatpush1.msra.mxu0 0.0
    %785 = vmatprep.subr.mxu0 0.0
    %786 = vmatpush1.msra.mxu0 0.0
    %787 = vmatprep.subr.mxu0 0.0
    %788 = vmatpush1.msra.mxu0 0.0
    %789 = vmatprep.subr.mxu0 0.0
    %790 = vmatpush1.msra.mxu0 0.0
    %791 = vmatprep.subr.mxu0 0.0
    %792 = vmatpush1.msra.mxu0 0.0
    %793 = vmatprep.subr.mxu0 0.0
    %794 = vmatpush1.msra.mxu0 0.0
    %795 = vmatprep.mubr.f32.mxu0 0.0
    %796 = vmatmul.mubr.f32.gmra.mrb[0].mxu0 %v309
    %v797 = vpop.f32.mrb[0].mxu0
    %v798 = vadd.f32 %v728, %v797
    %v799 = vpop.f32.mrb[0].mxu0
    %800 = vdwg.mxu0
    %v801 = vmax.f32 %v798, 0.0
    %v802 = vld [vmem:[%s3] sm:$0xff]
    %v803 = vld [vmem:[%s3 + $0x8] sm:$0xff]
    %v804 = vld [vmem:[%s3 + $0x10] sm:$0xff]
    %v805 = vld [vmem:[%s3 + $0x18] sm:$0xff]
    %v806 = vld [vmem:[%s4] sm:$0x1]
    %v808 = vlaneseq
    %v809 = vshrl.u32 %v808, 7
    %v810 = vsub.s32 0, %v809
    %v811 = vrot.slane %v806, %v810
    %v814 = vsel %vm308, %v801, 0
    %816 = vmatprep.subr.mxu0 0.0
    %817 = vmatpush1.msra.mxu0 %v802
    %818 = vmatprep.subr.mxu0 0.0
    %819 = vmatpush1.msra.mxu0 %v803
    %820 = vmatprep.subr.mxu0 0.0
    %821 = vmatpush1.msra.mxu0 %v804
    %822 = vmatprep.subr.mxu0 0.0
    %823 = vmatpush1.msra.mxu0 %v805
    %824 = vmatprep.subr.mxu0 0.0
    %825 = vmatpush1.msra.mxu0 0.0
    %826 = vmatprep.subr.mxu0 0.0
    %827 = vmatpush1.msra.mxu0 0.0
    %828 = vmatprep.subr.mxu0 0.0
    %829 = vmatpush1.msra.mxu0 0.0
    %830 = vmatprep.subr.mxu0 0.0
    %831 = vmatpush1.msra.mxu0 0.0
    %832 = vmatprep.subr.mxu0 0.0
    %833 = vmatpush1.msra.mxu0 0.0
    %834 = vmatprep.subr.mxu0 0.0
    %835 = vmatpush1.msra.mxu0 0.0
    %836 = vmatprep.subr.mxu0 0.0
    %837 = vmatpush1.msra.mxu0 0.0
    %838 = vmatprep.subr.mxu0 0.0
    %839 = vmatpush1.msra.mxu0 0.0
    %840 = vmatprep.subr.mxu0 0.0
    %841 = vmatpush1.msra.mxu0 0.0
    %842 = vmatprep.subr.mxu0 0.0
    %843 = vmatpush1.msra.mxu0 0.0
    %844 = vmatprep.subr.mxu0 0.0
    %845 = vmatpush1.msra.mxu0 0.0
    %846 = vmatprep.subr.mxu0 0.0
    %847 = vmatpush1.msra.mxu0 0.0
    %848 = vmatprep.subr.mxu0 0.0
    %849 = vmatpush1.msra.mxu0 0.0
    %850 = vmatprep.subr.mxu0 0.0
    %851 = vmatpush1.msra.mxu0 0.0
    %852 = vmatprep.subr.mxu0 0.0
    %853 = vmatpush1.msra.mxu0 0.0
    %854 = vmatprep.subr.mxu0 0.0
    %855 = vmatpush1.msra.mxu0 0.0
    %856 = vmatprep.subr.mxu0 0.0
    %857 = vmatpush1.msra.mxu0 0.0
    %858 = vmatprep.subr.mxu0 0.0
    %859 = vmatpush1.msra.mxu0 0.0
    %860 = vmatprep.subr.mxu0 0.0
    %861 = vmatpush1.msra.mxu0 0.0
    %862 = vmatprep.subr.mxu0 0.0
    %863 = vmatpush1.msra.mxu0 0.0
    %864 = vmatprep.subr.mxu0 0.0
    %865 = vmatpush1.msra.mxu0 0.0
    %866 = vmatprep.subr.mxu0 0.0
    %867 = vmatpush1.msra.mxu0 0.0
    %868 = vmatprep.subr.mxu0 0.0
    %869 = vmatpush1.msra.mxu0 0.0
    %870 = vmatprep.subr.mxu0 0.0
    %871 = vmatpush1.msra.mxu0 0.0
    %872 = vmatprep.subr.mxu0 0.0
    %873 = vmatpush1.msra.mxu0 0.0
    %874 = vmatprep.subr.mxu0 0.0
    %875 = vmatpush1.msra.mxu0 0.0
    %876 = vmatprep.subr.mxu0 0.0
    %877 = vmatpush1.msra.mxu0 0.0
    %878 = vmatprep.subr.mxu0 0.0
    %879 = vmatpush1.msra.mxu0 0.0
    %880 = vmatprep.mubr.f32.mxu0 0.0
    %881 = vmatmul.mubr.f32.gmra.mrb[0].mxu0 %v814
    %v882 = vpop.f32.mrb[0].mxu0
    %v883 = vadd.f32 %v811, %v882
    %v884 = vpop.f32.mrb[0].mxu0
    %885 = vdwg.mxu0
    %v886 = vmax.f32 %v883, 0.0
    %v887 = vld [vmem:[%s5] sm:$0xff]
    %v888 = vld [vmem:[%s5 + $0x8] sm:$0xff]
    %v889 = vld [vmem:[%s6] sm:$0x1]
    %v891 = vlaneseq
    %v892 = vshrl.u32 %v891, 7
    %v893 = vsub.s32 0, %v892
    %v894 = vrot.slane %v889, %v893
    %vm896 = vcmask 130048
    %v898 = vsel %vm896, %v886, 0
    %900 = vmatprep.subr.mxu0 0.0
    %901 = vmatpush1.msra.mxu0 %v887
    %902 = vmatprep.subr.mxu0 0.0
    %903 = vmatpush1.msra.mxu0 %v888
    %904 = vmatprep.subr.mxu0 0.0
    %905 = vmatpush1.msra.mxu0 0.0
    %906 = vmatprep.subr.mxu0 0.0
    %907 = vmatpush1.msra.mxu0 0.0
    %908 = vmatprep.subr.mxu0 0.0
    %909 = vmatpush1.msra.mxu0 0.0
    %910 = vmatprep.subr.mxu0 0.0
    %911 = vmatpush1.msra.mxu0 0.0
    %912 = vmatprep.subr.mxu0 0.0
    %913 = vmatpush1.msra.mxu0 0.0
    %914 = vmatprep.subr.mxu0 0.0
    %915 = vmatpush1.msra.mxu0 0.0
    %916 = vmatprep.subr.mxu0 0.0
    %917 = vmatpush1.msra.mxu0 0.0
    %918 = vmatprep.subr.mxu0 0.0
    %919 = vmatpush1.msra.mxu0 0.0
    %920 = vmatprep.subr.mxu0 0.0
    %921 = vmatpush1.msra.mxu0 0.0
    %922 = vmatprep.subr.mxu0 0.0
    %923 = vmatpush1.msra.mxu0 0.0
    %924 = vmatprep.subr.mxu0 0.0
    %925 = vmatpush1.msra.mxu0 0.0
    %926 = vmatprep.subr.mxu0 0.0
    %927 = vmatpush1.msra.mxu0 0.0
    %928 = vmatprep.subr.mxu0 0.0
    %929 = vmatpush1.msra.mxu0 0.0
    %930 = vmatprep.subr.mxu0 0.0
    %931 = vmatpush1.msra.mxu0 0.0
    %932 = vmatprep.subr.mxu0 0.0
    %933 = vmatpush1.msra.mxu0 0.0
    %934 = vmatprep.subr.mxu0 0.0
    %935 = vmatpush1.msra.mxu0 0.0
    %936 = vmatprep.subr.mxu0 0.0
    %937 = vmatpush1.msra.mxu0 0.0
    %938 = vmatprep.subr.mxu0 0.0
    %939 = vmatpush1.msra.mxu0 0.0
    %940 = vmatprep.subr.mxu0 0.0
    %941 = vmatpush1.msra.mxu0 0.0
    %942 = vmatprep.subr.mxu0 0.0
    %943 = vmatpush1.msra.mxu0 0.0
    %944 = vmatprep.subr.mxu0 0.0
    %945 = vmatpush1.msra.mxu0 0.0
    %946 = vmatprep.subr.mxu0 0.0
    %947 = vmatpush1.msra.mxu0 0.0
    %948 = vmatprep.subr.mxu0 0.0
    %949 = vmatpush1.msra.mxu0 0.0
    %950 = vmatprep.subr.mxu0 0.0
    %951 = vmatpush1.msra.mxu0 0.0
    %952 = vmatprep.subr.mxu0 0.0
    %953 = vmatpush1.msra.mxu0 0.0
    %954 = vmatprep.subr.mxu0 0.0
    %955 = vmatpush1.msra.mxu0 0.0
    %956 = vmatprep.subr.mxu0 0.0
    %957 = vmatpush1.msra.mxu0 0.0
    %958 = vmatprep.subr.mxu0 0.0
    %959 = vmatpush1.msra.mxu0 0.0
    %960 = vmatprep.subr.mxu0 0.0
    %961 = vmatpush1.msra.mxu0 0.0
    %962 = vmatprep.subr.mxu0 0.0
    %963 = vmatpush1.msra.mxu0 0.0
    %964 = vmatprep.mubr.f32.mxu0 0.0
    %965 = vmatmul.mubr.f32.gmra.mrb[0].mxu0 %v898
    %v966 = vpop.f32.mrb[0].mxu0
    %v967 = vadd.f32 %v894, %v966
    %v968 = vpop.f32.mrb[0].mxu0
    %969 = vdwg.mxu0
    %vm970 = vcmask 74752
    %971 = vst.msk [vmem:[#allocation2] sm:$0x3] %vm970, %v967
    // Predicated region
    $region30: #{conv_classifier_v1_forward.5} parent=1 // pred_check
      _
    $region31: #{conv_classifier_v1_forward.5} parent=1 // pred_check_branch
      %973 = sbr.rel (0) target = $region33
    $region32: #{conv_classifier_v1_forward.5} parent=1 // pred_region
      %s975 = ssub.s32 32, 32
      %976 = vsyncadd [#allocation3], %s975
      %s978 = sshll.u32 [#allocation2], 4
      %s979 = int_to_ptr.vmem [resolvable:$true] %s978
      %981 = dma.vmem_to_hbm [thread:$0]  %s979, 32, %s7, [#allocation3]
    $region33: #{conv_classifier_v1_forward.5} parent=1 // pred_fallthru
      _
    // Predicated region
    $region34: #{conv_classifier_v1_forward.5} parent=1 // pred_check
      _
    $region35: #{conv_classifier_v1_forward.5} parent=1 // pred_check_branch
      %983 = sbr.rel (0) target = $region37
    $region36: #{conv_classifier_v1_forward.5} parent=1 // pred_region
      %984 = dma.done [#allocation3], 32
    $region37: #{conv_classifier_v1_forward.5} parent=1 // pred_fallthru
      _
    %985 = vsyncpa [#allocation3], 1

// kernel: conv_classifier_v1_forward.4
$region0: #{conv_classifier_v1_forward.4}
  #allocation0 [shape = 'u32[]', space=smem, size = 0x4, offset = 0x4, fixed_abs, tag = 'smem constant byte address 0x4 - core index']
  #allocation1 [shape = 'u32[144,128]{1,0:T(1,128)}', space=vmem, size = 0x12000, scoped, tag = 'internal scratch']
  %s0 = inlined_call_operand.vmem [shape: f32[2,16,256], index: 0, kind: input, shape index: {}]
  %s1 = inlined_call_operand.vmem [shape: f32[2,3,256,224], index: 1, kind: input, shape index: {}]
  %s2 = inlined_call_operand.vmem [shape: f32[2,7,14], index: 2, kind: input, shape index: {}]
  %s3 = inlined_call_operand.vmem [shape: f32[1,224], index: 3, kind: input, shape index: {}]
  %s4 = inlined_call_operand.vmem [shape: f32[2,7,224], index: 4, kind: output, shape index: {}]
  %s5 = sld [smem:[#allocation0]]
  $region49: #{conv_classifier_v1_forward.4} parent=0
    _
  %s7 = ssub.s32 1, %s5
  %s8 = scalar_select 0, %s7, %s5
  loop: start=0, step=1, limit=4
  $region2: #{conv_classifier_v1_forward.4} parent=0 // loop_pre_header
    _
  $region3: #{conv_classifier_v1_forward.4} parent=0 // loop_header
    %s10 = sphi 0, %s14
    %p11 = scmp.ge.s32.totalorder %s10, 4
    %s20 = sphi 0, %s22
    %s23 = sphi 0, %s20
    %s24 = sphi 0, %s23
    %s40 = sphi 0, %s24
    %s44 = sphi 0, %s44
    %s46 = sphi 0, %s44
    %s47 = sphi 0, %s46
    %s61 = sphi 0, %s47
    %s65 = sphi 0, %s65
    %s67 = sphi 0, %s65
    %s68 = sphi 0, %s67
    %s82 = sphi 0, %s68
    %s86 = sphi 0, %s86
    %s88 = sphi 0, %s86
    %s89 = sphi 0, %s88
    %s103 = sphi 0, %s89
    %s109 = sphi 0, %s111
    %s112 = sphi 0, %s109
    %s113 = sphi 0, %s112
    %s129 = sphi 0, %s113
  $region4: #{conv_classifier_v1_forward.4} parent=0 // loop_header_branch
    %13 = sbr.rel (%p11) target = $region8
  $region5: #{conv_classifier_v1_forward.4} parent=0 // loop_body
    %s15 = ssub.s32 %s10, 1
    %s16 = ssub.s32 %s10, 2
    %s17 = sadd.s32 %s10, 1
    %s18 = ssub.s32 %s10, %s17
    %p19 = scmp.eq.s32.totalorder %s18, 0
    %s21 = sadd.s32 %s20, 1
    %s22 = scalar_select %p19, %s20, %s21
    %p25 = pneg %p19
    %p26 = scmp.eq.s32.totalorder %s10, 1
    %p27 = por %p25, %p26
    %p28 = scmp.ne.s32.totalorder %s20, %s23
    %p29 = scmp.eq.s32.totalorder %s10, 0
    %p30 = por %p28, %p29
    %p31 = scmp.ne.s32.totalorder %s20, %s23
    %p32 = scmp.eq.s32.totalorder %s15, 1
    %p33 = por %p31, %p32
    %p34 = scmp.ne.s32.totalorder %s23, %s24
    %p35 = scmp.eq.s32.totalorder %s15, 0
    %p36 = por %p34, %p35
    %p37 = scmp.ne.s32.totalorder %s23, %s24
    %p38 = scmp.eq.s32.totalorder %s16, 1
    %p39 = por %p37, %p38
    %p41 = scmp.ne.s32.totalorder %s24, %s40
    %p42 = scmp.eq.s32.totalorder %s16, 0
    %p43 = por %p41, %p42
    %s45 = sadd.s32 %s44, 1
    %p48 = scmp.eq.s32.totalorder %s10, 1
    %p49 = scmp.ne.s32.totalorder %s44, %s46
    %p50 = scmp.eq.s32.totalorder %s10, 0
    %p51 = por %p49, %p50
    %p52 = scmp.ne.s32.totalorder %s44, %s46
    %p53 = scmp.eq.s32.totalorder %s15, 1
    %p54 = por %p52, %p53
    %p55 = scmp.ne.s32.totalorder %s46, %s47
    %p56 = scmp.eq.s32.totalorder %s15, 0
    %p57 = por %p55, %p56
    %p58 = scmp.ne.s32.totalorder %s46, %s47
    %p59 = scmp.eq.s32.totalorder %s16, 1
    %p60 = por %p58, %p59
    %p62 = scmp.ne.s32.totalorder %s47, %s61
    %p63 = scmp.eq.s32.totalorder %s16, 0
    %p64 = por %p62, %p63
    %s66 = sadd.s32 %s65, 1
    %p69 = scmp.eq.s32.totalorder %s10, 1
    %p70 = scmp.ne.s32.totalorder %s65, %s67
    %p71 = scmp.eq.s32.totalorder %s10, 0
    %p72 = por %p70, %p71
    %p73 = scmp.ne.s32.totalorder %s65, %s67
    %p74 = scmp.eq.s32.totalorder %s15, 1
    %p75 = por %p73, %p74
    %p76 = scmp.ne.s32.totalorder %s67, %s68
    %p77 = scmp.eq.s32.totalorder %s15, 0
    %p78 = por %p76, %p77
    %p79 = scmp.ne.s32.totalorder %s67, %s68
    %p80 = scmp.eq.s32.totalorder %s16, 1
    %p81 = por %p79, %p80
    %p83 = scmp.ne.s32.totalorder %s68, %s82
    %p84 = scmp.eq.s32.totalorder %s16, 0
    %p85 = por %p83, %p84
    %s87 = sadd.s32 %s86, 1
    %p90 = scmp.eq.s32.totalorder %s10, 1
    %p91 = scmp.ne.s32.totalorder %s86, %s88
    %p92 = scmp.eq.s32.totalorder %s10, 0
    %p93 = por %p91, %p92
    %p94 = scmp.ne.s32.totalorder %s86, %s88
    %p95 = scmp.eq.s32.totalorder %s15, 1
    %p96 = por %p94, %p95
    %p97 = scmp.ne.s32.totalorder %s88, %s89
    %p98 = scmp.eq.s32.totalorder %s15, 0
    %p99 = por %p97, %p98
    %p100 = scmp.ne.s32.totalorder %s88, %s89
    %p101 = scmp.eq.s32.totalorder %s16, 1
    %p102 = por %p100, %p101
    %p104 = scmp.ne.s32.totalorder %s89, %s103
    %p105 = scmp.eq.s32.totalorder %s16, 0
    %p106 = por %p104, %p105
    %s107 = ssub.s32 %s10, %s17
    %p108 = scmp.eq.s32.totalorder %s107, 0
    %s110 = sadd.s32 %s109, 1
    %s111 = scalar_select %p108, %s109, %s110
    %p114 = pneg %p108
    %p115 = scmp.eq.s32.totalorder %s10, 1
    %p116 = por %p114, %p115
    %p117 = scmp.ne.s32.totalorder %s109, %s112
    %p118 = scmp.eq.s32.totalorder %s10, 0
    %p119 = por %p117, %p118
    %p120 = scmp.ne.s32.totalorder %s109, %s112
    %p121 = scmp.eq.s32.totalorder %s15, 1
    %p122 = por %p120, %p121
    %p123 = scmp.ne.s32.totalorder %s112, %s113
    %p124 = scmp.eq.s32.totalorder %s15, 0
    %p125 = por %p123, %p124
    %p126 = scmp.ne.s32.totalorder %s112, %s113
    %p127 = scmp.eq.s32.totalorder %s16, 1
    %p128 = por %p126, %p127
    %p130 = scmp.ne.s32.totalorder %s113, %s129
    %p131 = scmp.eq.s32.totalorder %s16, 0
    %p132 = por %p130, %p131
    %p133 = scmp.le.s32.totalorder 1, %s10
    %p134 = scmp.lt.s32.totalorder %s10, 3
    %p135 = pnand %p133, %p134
    %p136 = pneg %p135
    // Predicated region
    $region9: #{conv_classifier_v1_forward.4} parent=5 // pred_check
      _
    $region10: #{conv_classifier_v1_forward.4} parent=5 // pred_check_branch
      %138 = sbr.rel (%p135) target = $region12
    $region11: #{conv_classifier_v1_forward.4} parent=5 // pred_region
      %s139 = ssub.s32 %s10, 1
      // Predicated region
      $region13: #{conv_classifier_v1_forward.4} parent=11 // pred_check
        %p140 = pneg %p57
      $region14: #{conv_classifier_v1_forward.4} parent=11 // pred_check_branch
        %142 = sbr.rel (%p140) target = $region16
      $region15: #{conv_classifier_v1_forward.4} parent=11 // pred_region
        _
      $region16: #{conv_classifier_v1_forward.4} parent=11 // pred_fallthru
        _
      // Predicated region
      $region17: #{conv_classifier_v1_forward.4} parent=11 // pred_check
        %p143 = pneg %p78
      $region18: #{conv_classifier_v1_forward.4} parent=11 // pred_check_branch
        %145 = sbr.rel (%p143) target = $region20
      $region19: #{conv_classifier_v1_forward.4} parent=11 // pred_region
        _
      $region20: #{conv_classifier_v1_forward.4} parent=11 // pred_fallthru
        _
      // Predicated region
      $region21: #{conv_classifier_v1_forward.4} parent=11 // pred_check
        %p146 = pneg %p99
      $region22: #{conv_classifier_v1_forward.4} parent=11 // pred_check_branch
        %148 = sbr.rel (%p146) target = $region24
      $region23: #{conv_classifier_v1_forward.4} parent=11 // pred_region
        _
      $region24: #{conv_classifier_v1_forward.4} parent=11 // pred_fallthru
        _
    $region12: #{conv_classifier_v1_forward.4} parent=5 // pred_fallthru
      _
    %p149 = scmp.lt.s32.totalorder %s10, 2
    // Predicated region
    $region25: #{conv_classifier_v1_forward.4} parent=5 // pred_check
      %p150 = pneg %p149
    $region26: #{conv_classifier_v1_forward.4} parent=5 // pred_check_branch
      %152 = sbr.rel (%p150) target = $region28
    $region27: #{conv_classifier_v1_forward.4} parent=5 // pred_region
      // Predicated region
      $region29: #{conv_classifier_v1_forward.4} parent=27 // pred_check
        %p153 = pneg %p30
      $region30: #{conv_classifier_v1_forward.4} parent=27 // pred_check_branch
        %155 = sbr.rel (%p153) target = $region32
      $region31: #{conv_classifier_v1_forward.4} parent=27 // pred_region
        %p156 = scmp.lt.s32.totalorder %s10, 1
        %s157 = scalar_select %p156, %s10, 1
        %s158 = smul.addr %s157, 4
        %s159 = smul.addr %s158, 8
        %s160 = scalar_lea.vmem %s0, %s159
      $region32: #{conv_classifier_v1_forward.4} parent=27 // pred_fallthru
        _
    $region28: #{conv_classifier_v1_forward.4} parent=5 // pred_fallthru
      _
    %p161 = scmp.le.s32.totalorder 1, %s10
    %p162 = scmp.lt.s32.totalorder %s10, 3
    %p163 = pnand %p161, %p162
    %p164 = pneg %p163
    // Predicated region
    $region33: #{conv_classifier_v1_forward.4} parent=5 // pred_check
      _
    $region34: #{conv_classifier_v1_forward.4} parent=5 // pred_check_branch
      %166 = sbr.rel (%p163) target = $region36
    $region35: #{conv_classifier_v1_forward.4} parent=5 // pred_region
      %s167 = ssub.s32 %s10, 1
      %p168 = scmp.lt.s32.totalorder %s15, 1
      %s169 = scalar_select %p168, %s15, 1
      %s170 = smul.addr %s169, 4
      %s171 = smul.addr %s170, 8
      %s172 = scalar_lea.vmem %s0, %s171
      %p173 = pneg %p36
      %p174 = pneg %p33
      %p175 = pneg %p57
      %p176 = pneg %p54
      %p177 = pneg %p78
      %p178 = pneg %p75
      %p179 = pneg %p99
      %p180 = pneg %p96
      %p181 = pneg %p125
      %p182 = pneg %p122
      %p183 = scmp.lt.s32.totalorder %s15, 1
      %s184 = scalar_select %p183, %s15, 1
      %s185 = smul.addr %s184, 2
      %s186 = smul.addr %s185, 8
      %s187 = scalar_lea.vmem %s4, %s186
      %p188 = scmp.lt.s32.totalorder %s15, 1
      %s189 = scalar_select %p188, %s15, 1
      %s190 = smul.addr %s189, 4
      %s191 = smul.addr %s190, 8
      %s192 = scalar_lea.vmem %s0, %s191
      %p193 = scmp.lt.s32.totalorder %s15, 1
      %s194 = scalar_select %p193, %s15, 1
      %s195 = smul.addr %s194, 2
      %s196 = smul.addr %s195, 8
      %s197 = scalar_lea.vmem %s4, %s196
      %v198 = vld [vmem:[%s192] sm:$0xff]
      %v199 = vld [vmem:[%s192 + $0x8] sm:$0xff]
      %v200 = vld [vmem:[%s192 + $0x10] sm:$0xff]
      %v201 = vld [vmem:[%s192 + $0x18] sm:$0xff]
      %v202 = vld [vmem:[%s1] sm:$0xff]
      %v203 = vld [vmem:[%s1 + $0x8] sm:$0xff]
      %v204 = vld [vmem:[%s1 + $0x10] sm:$0xff]
      %v205 = vld [vmem:[%s1 + $0x18] sm:$0xff]
      %v206 = vld [vmem:[%s1 + $0x20] sm:$0xff]
      %v207 = vld [vmem:[%s1 + $0x28] sm:$0xff]
      %v208 = vld [vmem:[%s1 + $0x30] sm:$0xff]
      %v209 = vld [vmem:[%s1 + $0x38] sm:$0xff]
      %v210 = vld [vmem:[%s1 + $0x40] sm:$0xff]
      %v211 = vld [vmem:[%s1 + $0x48] sm:$0xff]
      %v212 = vld [vmem:[%s1 + $0x50] sm:$0xff]
      %v213 = vld [vmem:[%s1 + $0x58] sm:$0xff]
      %v214 = vld [vmem:[%s1 + $0x60] sm:$0xff]
      %v215 = vld [vmem:[%s1 + $0x68] sm:$0xff]
      %v216 = vld [vmem:[%s1 + $0x70] sm:$0xff]
      %v217 = vld [vmem:[%s1 + $0x78] sm:$0xff]
      %v218 = vld [vmem:[%s1 + $0x80] sm:$0xff]
      %v219 = vld [vmem:[%s1 + $0x88] sm:$0xff]
      %v220 = vld [vmem:[%s1 + $0x90] sm:$0xff]
      %v221 = vld [vmem:[%s1 + $0x98] sm:$0xff]
      %v222 = vld [vmem:[%s1 + $0xa0] sm:$0xff]
      %v223 = vld [vmem:[%s1 + $0xa8] sm:$0xff]
      %v224 = vld [vmem:[%s1 + $0xb0] sm:$0xff]
      %v225 = vld [vmem:[%s1 + $0xb8] sm:$0xff]
      %v226 = vld [vmem:[%s1 + $0xc0] sm:$0xff]
      %v227 = vld [vmem:[%s1 + $0xc8] sm:$0xff]
      %v228 = vld [vmem:[%s1 + $0xd0] sm:$0xff]
      %v229 = vld [vmem:[%s1 + $0xd8] sm:$0xff]
      %v230 = vld [vmem:[%s1 + $0xe0] sm:$0xff]
      %v231 = vld [vmem:[%s1 + $0xe8] sm:$0xff]
      %v232 = vld [vmem:[%s1 + $0xf0] sm:$0xff]
      %v233 = vld [vmem:[%s1 + $0xf8] sm:$0xff]
      %v234 = vld [vmem:[%s1 + $0x100] sm:$0xff]
      %v235 = vld [vmem:[%s1 + $0x108] sm:$0xff]
      %v236 = vld [vmem:[%s1 + $0x110] sm:$0xff]
      %v237 = vld [vmem:[%s1 + $0x118] sm:$0xff]
      %v238 = vld [vmem:[%s1 + $0x120] sm:$0xff]
      %v239 = vld [vmem:[%s1 + $0x128] sm:$0xff]
      %v240 = vld [vmem:[%s1 + $0x130] sm:$0xff]
      %v241 = vld [vmem:[%s1 + $0x138] sm:$0xff]
      %v242 = vld [vmem:[%s1 + $0x140] sm:$0xff]
      %v243 = vld [vmem:[%s1 + $0x148] sm:$0xff]
      %v244 = vld [vmem:[%s1 + $0x150] sm:$0xff]
      %v245 = vld [vmem:[%s1 + $0x158] sm:$0xff]
      %v246 = vld [vmem:[%s1 + $0x160] sm:$0xff]
      %v247 = vld [vmem:[%s1 + $0x168] sm:$0xff]
      %v248 = vld [vmem:[%s1 + $0x170] sm:$0xff]
      %v249 = vld [vmem:[%s1 + $0x178] sm:$0xff]
      %v250 = vld [vmem:[%s1 + $0x180] sm:$0xff]
      %v251 = vld [vmem:[%s1 + $0x188] sm:$0xff]
      %v252 = vld [vmem:[%s1 + $0x190] sm:$0xff]
      %v253 = vld [vmem:[%s1 + $0x198] sm:$0xff]
      %v254 = vld [vmem:[%s1 + $0x1a0] sm:$0xff]
      %v255 = vld [vmem:[%s1 + $0x1a8] sm:$0xff]
      %v256 = vld [vmem:[%s1 + $0x1b0] sm:$0xff]
      %v257 = vld [vmem:[%s1 + $0x1b8] sm:$0xff]
      %v258 = vld [vmem:[%s1 + $0x1c0] sm:$0xff]
      %v259 = vld [vmem:[%s1 + $0x1c8] sm:$0xff]
      %v260 = vld [vmem:[%s1 + $0x1d0] sm:$0xff]
      %v261 = vld [vmem:[%s1 + $0x1d8] sm:$0xff]
      %v262 = vld [vmem:[%s1 + $0x1e0] sm:$0xff]
      %v263 = vld [vmem:[%s1 + $0x1e8] sm:$0xff]
      %v264 = vld [vmem:[%s1 + $0x1f0] sm:$0xff]
      %v265 = vld [vmem:[%s1 + $0x1f8] sm:$0xff]
      %s266 = scalar_lea.vmem %s1, 512
      %v267 = vld [vmem:[%s266] sm:$0xff]
      %v268 = vld [vmem:[%s266 + $0x8] sm:$0xff]
      %v269 = vld [vmem:[%s266 + $0x10] sm:$0xff]
      %v270 = vld [vmem:[%s266 + $0x18] sm:$0xff]
      %v271 = vld [vmem:[%s266 + $0x20] sm:$0xff]
      %v272 = vld [vmem:[%s266 + $0x28] sm:$0xff]
      %v273 = vld [vmem:[%s266 + $0x30] sm:$0xff]
      %v274 = vld [vmem:[%s266 + $0x38] sm:$0xff]
      %v275 = vld [vmem:[%s266 + $0x40] sm:$0xff]
      %v276 = vld [vmem:[%s266 + $0x48] sm:$0xff]
      %v277 = vld [vmem:[%s266 + $0x50] sm:$0xff]
      %v278 = vld [vmem:[%s266 + $0x58] sm:$0xff]
      %v279 = vld [vmem:[%s266 + $0x60] sm:$0xff]
      %v280 = vld [vmem:[%s266 + $0x68] sm:$0xff]
      %v281 = vld [vmem:[%s266 + $0x70] sm:$0xff]
      %v282 = vld [vmem:[%s266 + $0x78] sm:$0xff]
      %v283 = vld [vmem:[%s266 + $0x80] sm:$0xff]
      %v284 = vld [vmem:[%s266 + $0x88] sm:$0xff]
      %v285 = vld [vmem:[%s266 + $0x90] sm:$0xff]
      %v286 = vld [vmem:[%s266 + $0x98] sm:$0xff]
      %v287 = vld [vmem:[%s266 + $0xa0] sm:$0xff]
      %v288 = vld [vmem:[%s266 + $0xa8] sm:$0xff]
      %v289 = vld [vmem:[%s266 + $0xb0] sm:$0xff]
      %v290 = vld [vmem:[%s266 + $0xb8] sm:$0xff]
      %v291 = vld [vmem:[%s266 + $0xc0] sm:$0xff]
      %v292 = vld [vmem:[%s266 + $0xc8] sm:$0xff]
      %v293 = vld [vmem:[%s266 + $0xd0] sm:$0xff]
      %v294 = vld [vmem:[%s266 + $0xd8] sm:$0xff]
      %v295 = vld [vmem:[%s266 + $0xe0] sm:$0xff]
      %v296 = vld [vmem:[%s266 + $0xe8] sm:$0xff]
      %v297 = vld [vmem:[%s266 + $0xf0] sm:$0xff]
      %v298 = vld [vmem:[%s266 + $0xf8] sm:$0xff]
      %v299 = vld [vmem:[%s266 + $0x100] sm:$0xff]
      %v300 = vld [vmem:[%s266 + $0x108] sm:$0xff]
      %v301 = vld [vmem:[%s266 + $0x110] sm:$0xff]
      %v302 = vld [vmem:[%s266 + $0x118] sm:$0xff]
      %v303 = vld [vmem:[%s266 + $0x120] sm:$0xff]
      %v304 = vld [vmem:[%s266 + $0x128] sm:$0xff]
      %v305 = vld [vmem:[%s266 + $0x130] sm:$0xff]
      %v306 = vld [vmem:[%s266 + $0x138] sm:$0xff]
      %v307 = vld [vmem:[%s266 + $0x140] sm:$0xff]
      %v308 = vld [vmem:[%s266 + $0x148] sm:$0xff]
      %v309 = vld [vmem:[%s266 + $0x150] sm:$0xff]
      %v310 = vld [vmem:[%s266 + $0x158] sm:$0xff]
      %v311 = vld [vmem:[%s266 + $0x160] sm:$0xff]
      %v312 = vld [vmem:[%s266 + $0x168] sm:$0xff]
      %v313 = vld [vmem:[%s266 + $0x170] sm:$0xff]
      %v314 = vld [vmem:[%s266 + $0x178] sm:$0xff]
      %v315 = vld [vmem:[%s266 + $0x180] sm:$0xff]
      %v316 = vld [vmem:[%s266 + $0x188] sm:$0xff]
      %v317 = vld [vmem:[%s266 + $0x190] sm:$0xff]
      %v318 = vld [vmem:[%s266 + $0x198] sm:$0xff]
      %v319 = vld [vmem:[%s266 + $0x1a0] sm:$0xff]
      %v320 = vld [vmem:[%s266 + $0x1a8] sm:$0xff]
      %v321 = vld [vmem:[%s266 + $0x1b0] sm:$0xff]
      %v322 = vld [vmem:[%s266 + $0x1b8] sm:$0xff]
      %v323 = vld [vmem:[%s266 + $0x1c0] sm:$0xff]
      %v324 = vld [vmem:[%s266 + $0x1c8] sm:$0xff]
      %v325 = vld [vmem:[%s266 + $0x1d0] sm:$0xff]
      %v326 = vld [vmem:[%s266 + $0x1d8] sm:$0xff]
      %v327 = vld [vmem:[%s266 + $0x1e0] sm:$0xff]
      %v328 = vld [vmem:[%s266 + $0x1e8] sm:$0xff]
      %v329 = vld [vmem:[%s266 + $0x1f0] sm:$0xff]
      %v330 = vld [vmem:[%s266 + $0x1f8] sm:$0xff]
      %vm335 = vcmask 1046528
      %v336 = vrot.slane %v198, 1
      %v337 = vrot.slane %v200, 1
      %v338 = vsel %vm335, %v336, %v337
      %v339 = vrot.slane %v199, 1
      %v340 = vrot.slane %v201, 1
      %v341 = vsel %vm335, %v339, %v340
      %346 = vmatprep.subr.mxu0 %v268
      %347 = vmatpush1.msra.mxu0 %v267
      %348 = vmatprep.subr.mxu0 %v270
      %349 = vmatpush1.msra.mxu0 %v269
      %350 = vmatprep.subr.mxu0 %v272
      %351 = vmatpush1.msra.mxu0 %v271
      %352 = vmatprep.subr.mxu0 %v274
      %353 = vmatpush1.msra.mxu0 %v273
      %354 = vmatprep.subr.mxu0 %v276
      %355 = vmatpush1.msra.mxu0 %v275
      %356 = vmatprep.subr.mxu0 %v278
      %357 = vmatpush1.msra.mxu0 %v277
      %358 = vmatprep.subr.mxu0 %v280
      %359 = vmatpush1.msra.mxu0 %v279
      %360 = vmatprep.subr.mxu0 %v282
      %361 = vmatpush1.msra.mxu0 %v281
      %362 = vmatprep.subr.mxu0 %v284
      %363 = vmatpush1.msra.mxu0 %v283
      %364 = vmatprep.subr.mxu0 %v286
      %365 = vmatpush1.msra.mxu0 %v285
      %366 = vmatprep.subr.mxu0 %v288
      %367 = vmatpush1.msra.mxu0 %v287
      %368 = vmatprep.subr.mxu0 %v290
      %369 = vmatpush1.msra.mxu0 %v289
      %370 = vmatprep.subr.mxu0 %v292
      %371 = vmatpush1.msra.mxu0 %v291
      %372 = vmatprep.subr.mxu0 %v294
      %373 = vmatpush1.msra.mxu0 %v293
      %374 = vmatprep.subr.mxu0 %v296
      %375 = vmatpush1.msra.mxu0 %v295
      %376 = vmatprep.subr.mxu0 %v298
      %377 = vmatpush1.msra.mxu0 %v297
      %378 = vmatprep.subr.mxu0 %v300
      %379 = vmatpush1.msra.mxu0 %v299
      %380 = vmatprep.subr.mxu0 %v302
      %381 = vmatpush1.msra.mxu0 %v301
      %382 = vmatprep.subr.mxu0 %v304
      %383 = vmatpush1.msra.mxu0 %v303
      %384 = vmatprep.subr.mxu0 %v306
      %385 = vmatpush1.msra.mxu0 %v305
      %386 = vmatprep.subr.mxu0 %v308
      %387 = vmatpush1.msra.mxu0 %v307
      %388 = vmatprep.subr.mxu0 %v310
      %389 = vmatpush1.msra.mxu0 %v309
      %390 = vmatprep.subr.mxu0 %v312
      %391 = vmatpush1.msra.mxu0 %v311
      %392 = vmatprep.subr.mxu0 %v314
      %393 = vmatpush1.msra.mxu0 %v313
      %394 = vmatprep.subr.mxu0 %v316
      %395 = vmatpush1.msra.mxu0 %v315
      %396 = vmatprep.subr.mxu0 %v318
      %397 = vmatpush1.msra.mxu0 %v317
      %398 = vmatprep.subr.mxu0 %v320
      %399 = vmatpush1.msra.mxu0 %v319
      %400 = vmatprep.subr.mxu0 %v322
      %401 = vmatpush1.msra.mxu0 %v321
      %402 = vmatprep.subr.mxu0 %v324
      %403 = vmatpush1.msra.mxu0 %v323
      %404 = vmatprep.subr.mxu0 %v326
      %405 = vmatpush1.msra.mxu0 %v325
      %406 = vmatprep.subr.mxu0 %v328
      %407 = vmatpush1.msra.mxu0 %v327
      %408 = vmatprep.subr.mxu0 %v330
      %409 = vmatpush1.msra.mxu0 %v329
      %410 = vmatprep.mubr.f32.mxu0 %v341
      %411 = vmatmul.mubr.f32.gmra.mrb[0].mxu0 %v338
      %v412 = vpop.f32.mrb[0].mxu0
      %v413 = vadd.f32 0.0, %v412
      %v414 = vpop.f32.mrb[0].mxu0
      %v415 = vadd.f32 0.0, %v414
      %416 = vmatprep.mubr.f32.mxu0 %v340
      %417 = vmatmul.mubr.f32.gmra.mrb[0].mxu0 %v337
      %v418 = vpop.f32.mrb[0].mxu0
      %v419 = vadd.f32 0.0, %v418
      %v420 = vpop.f32.mrb[0].mxu0
      %v421 = vadd.f32 0.0, %v420
      %422 = vdwg.mxu0
      %423 = vmatprep.subr.mxu0 %v203
      %424 = vmatpush1.msra.mxu0 %v202
      %425 = vmatprep.subr.mxu0 %v205
      %426 = vmatpush1.msra.mxu0 %v204
      %427 = vmatprep.subr.mxu0 %v207
      %428 = vmatpush1.msra.mxu0 %v206
      %429 = vmatprep.subr.mxu0 %v209
      %430 = vmatpush1.msra.mxu0 %v208
      %431 = vmatprep.subr.mxu0 %v211
      %432 = vmatpush1.msra.mxu0 %v210
      %433 = vmatprep.subr.mxu0 %v213
      %434 = vmatpush1.msra.mxu0 %v212
      %435 = vmatprep.subr.mxu0 %v215
      %436 = vmatpush1.msra.mxu0 %v214
      %437 = vmatprep.subr.mxu0 %v217
      %438 = vmatpush1.msra.mxu0 %v216
      %439 = vmatprep.subr.mxu0 %v219
      %440 = vmatpush1.msra.mxu0 %v218
      %441 = vmatprep.subr.mxu0 %v221
      %442 = vmatpush1.msra.mxu0 %v220
      %443 = vmatprep.subr.mxu0 %v223
      %444 = vmatpush1.msra.mxu0 %v222
      %445 = vmatprep.subr.mxu0 %v225
      %446 = vmatpush1.msra.mxu0 %v224
      %447 = vmatprep.subr.mxu0 %v227
      %448 = vmatpush1.msra.mxu0 %v226
      %449 = vmatprep.subr.mxu0 %v229
      %450 = vmatpush1.msra.mxu0 %v228
      %451 = vmatprep.subr.mxu0 %v231
      %452 = vmatpush1.msra.mxu0 %v230
      %453 = vmatprep.subr.mxu0 %v233
      %454 = vmatpush1.msra.mxu0 %v232
      %455 = vmatprep.subr.mxu0 %v235
      %456 = vmatpush1.msra.mxu0 %v234
      %457 = vmatprep.subr.mxu0 %v237
      %458 = vmatpush1.msra.mxu0 %v236
      %459 = vmatprep.subr.mxu0 %v239
      %460 = vmatpush1.msra.mxu0 %v238
      %461 = vmatprep.subr.mxu0 %v241
      %462 = vmatpush1.msra.mxu0 %v240
      %463 = vmatprep.subr.mxu0 %v243
      %464 = vmatpush1.msra.mxu0 %v242
      %465 = vmatprep.subr.mxu0 %v245
      %466 = vmatpush1.msra.mxu0 %v244
      %467 = vmatprep.subr.mxu0 %v247
      %468 = vmatpush1.msra.mxu0 %v246
      %469 = vmatprep.subr.mxu0 %v249
      %470 = vmatpush1.msra.mxu0 %v248
      %471 = vmatprep.subr.mxu0 %v251
      %472 = vmatpush1.msra.mxu0 %v250
      %473 = vmatprep.subr.mxu0 %v253
      %474 = vmatpush1.msra.mxu0 %v252
      %475 = vmatprep.subr.mxu0 %v255
      %476 = vmatpush1.msra.mxu0 %v254
      %477 = vmatprep.subr.mxu0 %v257
      %478 = vmatpush1.msra.mxu0 %v256
      %479 = vmatprep.subr.mxu0 %v259
      %480 = vmatpush1.msra.mxu0 %v258
      %481 = vmatprep.subr.mxu0 %v261
      %482 = vmatpush1.msra.mxu0 %v260
      %483 = vmatprep.subr.mxu0 %v263
      %484 = vmatpush1.msra.mxu0 %v262
      %485 = vmatprep.subr.mxu0 %v265
      %486 = vmatpush1.msra.mxu0 %v264
      %487 = vmatprep.mubr.f32.mxu0 %v199
      %488 = vmatmul.mubr.f32.gmra.mrb[0].mxu0 %v198
      %v489 = vpop.f32.mrb[0].mxu0
      %v490 = vadd.f32 %v413, %v489
      %v491 = vpop.f32.mrb[0].mxu0
      %v492 = vadd.f32 %v415, %v491
      %493 = vmatprep.mubr.f32.mxu0 %v201
      %494 = vmatmul.mubr.f32.gmra.mrb[0].mxu0 %v200
      %v495 = vpop.f32.mrb[0].mxu0
      %v496 = vadd.f32 %v419, %v495
      %v497 = vpop.f32.mrb[0].mxu0
      %v498 = vadd.f32 %v421, %v497
      %499 = vdwg.mxu0
      %s500 = scalar_lea.vmem %s1, 1024
      %v501 = vld [vmem:[%s500] sm:$0xff]
      %v502 = vld [vmem:[%s500 + $0x8] sm:$0xff]
      %v503 = vld [vmem:[%s500 + $0x10] sm:$0xff]
      %v504 = vld [vmem:[%s500 + $0x18] sm:$0xff]
      %v505 = vld [vmem:[%s500 + $0x20] sm:$0xff]
      %v506 = vld [vmem:[%s500 + $0x28] sm:$0xff]
      %v507 = vld [vmem:[%s500 + $0x30] sm:$0xff]
      %v508 = vld [vmem:[%s500 + $0x38] sm:$0xff]
      %v509 = vld [vmem:[%s500 + $0x40] sm:$0xff]
      %v510 = vld [vmem:[%s500 + $0x48] sm:$0xff]
      %v511 = vld [vmem:[%s500 + $0x50] sm:$0xff]
      %v512 = vld [vmem:[%s500 + $0x58] sm:$0xff]
      %v513 = vld [vmem:[%s500 + $0x60] sm:$0xff]
      %v514 = vld [vmem:[%s500 + $0x68] sm:$0xff]
      %v515 = vld [vmem:[%s500 + $0x70] sm:$0xff]
      %v516 = vld [vmem:[%s500 + $0x78] sm:$0xff]
      %v517 = vld [vmem:[%s500 + $0x80] sm:$0xff]
      %v518 = vld [vmem:[%s500 + $0x88] sm:$0xff]
      %v519 = vld [vmem:[%s500 + $0x90] sm:$0xff]
      %v520 = vld [vmem:[%s500 + $0x98] sm:$0xff]
      %v521 = vld [vmem:[%s500 + $0xa0] sm:$0xff]
      %v522 = vld [vmem:[%s500 + $0xa8] sm:$0xff]
      %v523 = vld [vmem:[%s500 + $0xb0] sm:$0xff]
      %v524 = vld [vmem:[%s500 + $0xb8] sm:$0xff]
      %v525 = vld [vmem:[%s500 + $0xc0] sm:$0xff]
      %v526 = vld [vmem:[%s500 + $0xc8] sm:$0xff]
      %v527 = vld [vmem:[%s500 + $0xd0] sm:$0xff]
      %v528 = vld [vmem:[%s500 + $0xd8] sm:$0xff]
      %v529 = vld [vmem:[%s500 + $0xe0] sm:$0xff]
      %v530 = vld [vmem:[%s500 + $0xe8] sm:$0xff]
      %v531 = vld [vmem:[%s500 + $0xf0] sm:$0xff]
      %v532 = vld [vmem:[%s500 + $0xf8] sm:$0xff]
      %v533 = vld [vmem:[%s500 + $0x100] sm:$0xff]
      %v534 = vld [vmem:[%s500 + $0x108] sm:$0xff]
      %v535 = vld [vmem:[%s500 + $0x110] sm:$0xff]
      %v536 = vld [vmem:[%s500 + $0x118] sm:$0xff]
      %v537 = vld [vmem:[%s500 + $0x120] sm:$0xff]
      %v538 = vld [vmem:[%s500 + $0x128] sm:$0xff]
      %v539 = vld [vmem:[%s500 + $0x130] sm:$0xff]
      %v540 = vld [vmem:[%s500 + $0x138] sm:$0xff]
      %v541 = vld [vmem:[%s500 + $0x140] sm:$0xff]
      %v542 = vld [vmem:[%s500 + $0x148] sm:$0xff]
      %v543 = vld [vmem:[%s500 + $0x150] sm:$0xff]
      %v544 = vld [vmem:[%s500 + $0x158] sm:$0xff]
      %v545 = vld [vmem:[%s500 + $0x160] sm:$0xff]
      %v546 = vld [vmem:[%s500 + $0x168] sm:$0xff]
      %v547 = vld [vmem:[%s500 + $0x170] sm:$0xff]
      %v548 = vld [vmem:[%s500 + $0x178] sm:$0xff]
      %v549 = vld [vmem:[%s500 + $0x180] sm:$0xff]
      %v550 = vld [vmem:[%s500 + $0x188] sm:$0xff]
      %v551 = vld [vmem:[%s500 + $0x190] sm:$0xff]
      %v552 = vld [vmem:[%s500 + $0x198] sm:$0xff]
      %v553 = vld [vmem:[%s500 + $0x1a0] sm:$0xff]
      %v554 = vld [vmem:[%s500 + $0x1a8] sm:$0xff]
      %v555 = vld [vmem:[%s500 + $0x1b0] sm:$0xff]
      %v556 = vld [vmem:[%s500 + $0x1b8] sm:$0xff]
      %v557 = vld [vmem:[%s500 + $0x1c0] sm:$0xff]
      %v558 = vld [vmem:[%s500 + $0x1c8] sm:$0xff]
      %v559 = vld [vmem:[%s500 + $0x1d0] sm:$0xff]
      %v560 = vld [vmem:[%s500 + $0x1d8] sm:$0xff]
      %v561 = vld [vmem:[%s500 + $0x1e0] sm:$0xff]
      %v562 = vld [vmem:[%s500 + $0x1e8] sm:$0xff]
      %v563 = vld [vmem:[%s500 + $0x1f0] sm:$0xff]
      %v564 = vld [vmem:[%s500 + $0x1f8] sm:$0xff]
      %vm565 = vcmask 1045504
      %v566 = vrot.slane %v198, 2
      %v567 = vrot.slane %v200, 2
      %v568 = vsel %vm565, %v566, %v567
      %v569 = vrot.slane %v199, 2
      %v570 = vrot.slane %v201, 2
      %v571 = vsel %vm565, %v569, %v570
      %576 = vmatprep.subr.mxu0 %v502
      %577 = vmatpush1.msra.mxu0 %v501
      %578 = vmatprep.subr.mxu0 %v504
      %579 = vmatpush1.msra.mxu0 %v503
      %580 = vmatprep.subr.mxu0 %v506
      %581 = vmatpush1.msra.mxu0 %v505
      %582 = vmatprep.subr.mxu0 %v508
      %583 = vmatpush1.msra.mxu0 %v507
      %584 = vmatprep.subr.mxu0 %v510
      %585 = vmatpush1.msra.mxu0 %v509
      %586 = vmatprep.subr.mxu0 %v512
      %587 = vmatpush1.msra.mxu0 %v511
      %588 = vmatprep.subr.mxu0 %v514
      %589 = vmatpush1.msra.mxu0 %v513
      %590 = vmatprep.subr.mxu0 %v516
      %591 = vmatpush1.msra.mxu0 %v515
      %592 = vmatprep.subr.mxu0 %v518
      %593 = vmatpush1.msra.mxu0 %v517
      %594 = vmatprep.subr.mxu0 %v520
      %595 = vmatpush1.msra.mxu0 %v519
      %596 = vmatprep.subr.mxu0 %v522
      %597 = vmatpush1.msra.mxu0 %v521
      %598 = vmatprep.subr.mxu0 %v524
      %599 = vmatpush1.msra.mxu0 %v523
      %600 = vmatprep.subr.mxu0 %v526
      %601 = vmatpush1.msra.mxu0 %v525
      %602 = vmatprep.subr.mxu0 %v528
      %603 = vmatpush1.msra.mxu0 %v527
      %604 = vmatprep.subr.mxu0 %v530
      %605 = vmatpush1.msra.mxu0 %v529
      %606 = vmatprep.subr.mxu0 %v532
      %607 = vmatpush1.msra.mxu0 %v531
      %608 = vmatprep.subr.mxu0 %v534
      %609 = vmatpush1.msra.mxu0 %v533
      %610 = vmatprep.subr.mxu0 %v536
      %611 = vmatpush1.msra.mxu0 %v535
      %612 = vmatprep.subr.mxu0 %v538
      %613 = vmatpush1.msra.mxu0 %v537
      %614 = vmatprep.subr.mxu0 %v540
      %615 = vmatpush1.msra.mxu0 %v539
      %616 = vmatprep.subr.mxu0 %v542
      %617 = vmatpush1.msra.mxu0 %v541
      %618 = vmatprep.subr.mxu0 %v544
      %619 = vmatpush1.msra.mxu0 %v543
      %620 = vmatprep.subr.mxu0 %v546
      %621 = vmatpush1.msra.mxu0 %v545
      %622 = vmatprep.subr.mxu0 %v548
      %623 = vmatpush1.msra.mxu0 %v547
      %624 = vmatprep.subr.mxu0 %v550
      %625 = vmatpush1.msra.mxu0 %v549
      %626 = vmatprep.subr.mxu0 %v552
      %627 = vmatpush1.msra.mxu0 %v551
      %628 = vmatprep.subr.mxu0 %v554
      %629 = vmatpush1.msra.mxu0 %v553
      %630 = vmatprep.subr.mxu0 %v556
      %631 = vmatpush1.msra.mxu0 %v555
      %632 = vmatprep.subr.mxu0 %v558
      %633 = vmatpush1.msra.mxu0 %v557
      %634 = vmatprep.subr.mxu0 %v560
      %635 = vmatpush1.msra.mxu0 %v559
      %636 = vmatprep.subr.mxu0 %v562
      %637 = vmatpush1.msra.mxu0 %v561
      %638 = vmatprep.subr.mxu0 %v564
      %639 = vmatpush1.msra.mxu0 %v563
      %640 = vmatprep.mubr.f32.mxu0 %v571
      %641 = vmatmul.mubr.f32.gmra.mrb[0].mxu0 %v568
      %v642 = vpop.f32.mrb[0].mxu0
      %v643 = vadd.f32 0.0, %v642
      %v644 = vpop.f32.mrb[0].mxu0
      %v645 = vadd.f32 0.0, %v644
      %646 = vmatprep.mubr.f32.mxu0 %v570
      %647 = vmatmul.mubr.f32.gmra.mrb[0].mxu0 %v567
      %v648 = vpop.f32.mrb[0].mxu0
      %v649 = vadd.f32 0.0, %v648
      %v650 = vpop.f32.mrb[0].mxu0
      %v651 = vadd.f32 0.0, %v650
      %652 = vdwg.mxu0
      %v653 = vadd.f32 %v490, %v643
      %v654 = vadd.f32 %v492, %v645
      %v655 = vadd.f32 %v496, %v649
      %v656 = vadd.f32 %v498, %v651
      %s657 = scalar_lea.vmem %s1, 1536
      %v658 = vld [vmem:[%s657] sm:$0xff]
      %v659 = vld [vmem:[%s657 + $0x8] sm:$0xff]
      %v660 = vld [vmem:[%s657 + $0x10] sm:$0xff]
      %v661 = vld [vmem:[%s657 + $0x18] sm:$0xff]
      %v662 = vld [vmem:[%s657 + $0x20] sm:$0xff]
      %v663 = vld [vmem:[%s657 + $0x28] sm:$0xff]
      %v664 = vld [vmem:[%s657 + $0x30] sm:$0xff]
      %v665 = vld [vmem:[%s657 + $0x38] sm:$0xff]
      %v666 = vld [vmem:[%s657 + $0x40] sm:$0xff]
      %v667 = vld [vmem:[%s657 + $0x48] sm:$0xff]
      %v668 = vld [vmem:[%s657 + $0x50] sm:$0xff]
      %v669 = vld [vmem:[%s657 + $0x58] sm:$0xff]
      %v670 = vld [vmem:[%s657 + $0x60] sm:$0xff]
      %v671 = vld [vmem:[%s657 + $0x68] sm:$0xff]
      %v672 = vld [vmem:[%s657 + $0x70] sm:$0xff]
      %v673 = vld [vmem:[%s657 + $0x78] sm:$0xff]
      %v674 = vld [vmem:[%s657 + $0x80] sm:$0xff]
      %v675 = vld [vmem:[%s657 + $0x88] sm:$0xff]
      %v676 = vld [vmem:[%s657 + $0x90] sm:$0xff]
      %v677 = vld [vmem:[%s657 + $0x98] sm:$0xff]
      %v678 = vld [vmem:[%s657 + $0xa0] sm:$0xff]
      %v679 = vld [vmem:[%s657 + $0xa8] sm:$0xff]
      %v680 = vld [vmem:[%s657 + $0xb0] sm:$0xff]
      %v681 = vld [vmem:[%s657 + $0xb8] sm:$0xff]
      %v682 = vld [vmem:[%s657 + $0xc0] sm:$0xff]
      %v683 = vld [vmem:[%s657 + $0xc8] sm:$0xff]
      %v684 = vld [vmem:[%s657 + $0xd0] sm:$0xff]
      %v685 = vld [vmem:[%s657 + $0xd8] sm:$0xff]
      %v686 = vld [vmem:[%s657 + $0xe0] sm:$0xff]
      %v687 = vld [vmem:[%s657 + $0xe8] sm:$0xff]
      %v688 = vld [vmem:[%s657 + $0xf0] sm:$0xff]
      %v689 = vld [vmem:[%s657 + $0xf8] sm:$0xff]
      %v690 = vld [vmem:[%s657 + $0x100] sm:$0xff]
      %v691 = vld [vmem:[%s657 + $0x108] sm:$0xff]
      %v692 = vld [vmem:[%s657 + $0x110] sm:$0xff]
      %v693 = vld [vmem:[%s657 + $0x118] sm:$0xff]
      %v694 = vld [vmem:[%s657 + $0x120] sm:$0xff]
      %v695 = vld [vmem:[%s657 + $0x128] sm:$0xff]
      %v696 = vld [vmem:[%s657 + $0x130] sm:$0xff]
      %v697 = vld [vmem:[%s657 + $0x138] sm:$0xff]
      %v698 = vld [vmem:[%s657 + $0x140] sm:$0xff]
      %v699 = vld [vmem:[%s657 + $0x148] sm:$0xff]
      %v700 = vld [vmem:[%s657 + $0x150] sm:$0xff]
      %v701 = vld [vmem:[%s657 + $0x158] sm:$0xff]
      %v702 = vld [vmem:[%s657 + $0x160] sm:$0xff]
      %v703 = vld [vmem:[%s657 + $0x168] sm:$0xff]
      %v704 = vld [vmem:[%s657 + $0x170] sm:$0xff]
      %v705 = vld [vmem:[%s657 + $0x178] sm:$0xff]
      %v706 = vld [vmem:[%s657 + $0x180] sm:$0xff]
      %v707 = vld [vmem:[%s657 + $0x188] sm:$0xff]
      %v708 = vld [vmem:[%s657 + $0x190] sm:$0xff]
      %v709 = vld [vmem:[%s657 + $0x198] sm:$0xff]
      %v710 = vld [vmem:[%s657 + $0x1a0] sm:$0xff]
      %v711 = vld [vmem:[%s657 + $0x1a8] sm:$0xff]
      %v712 = vld [vmem:[%s657 + $0x1b0] sm:$0xff]
      %v713 = vld [vmem:[%s657 + $0x1b8] sm:$0xff]
      %v714 = vld [vmem:[%s657 + $0x1c0] sm:$0xff]
      %v715 = vld [vmem:[%s657 + $0x1c8] sm:$0xff]
      %v716 = vld [vmem:[%s657 + $0x1d0] sm:$0xff]
      %v717 = vld [vmem:[%s657 + $0x1d8] sm:$0xff]
      %v718 = vld [vmem:[%s657 + $0x1e0] sm:$0xff]
      %v719 = vld [vmem:[%s657 + $0x1e8] sm:$0xff]
      %v720 = vld [vmem:[%s657 + $0x1f0] sm:$0xff]
      %v721 = vld [vmem:[%s657 + $0x1f8] sm:$0xff]
      %s722 = scalar_lea.vmem %s1, 2048
      %v723 = vld [vmem:[%s722] sm:$0xff]
      %v724 = vld [vmem:[%s722 + $0x8] sm:$0xff]
      %v725 = vld [vmem:[%s722 + $0x10] sm:$0xff]
      %v726 = vld [vmem:[%s722 + $0x18] sm:$0xff]
      %v727 = vld [vmem:[%s722 + $0x20] sm:$0xff]
      %v728 = vld [vmem:[%s722 + $0x28] sm:$0xff]
      %v729 = vld [vmem:[%s722 + $0x30] sm:$0xff]
      %v730 = vld [vmem:[%s722 + $0x38] sm:$0xff]
      %v731 = vld [vmem:[%s722 + $0x40] sm:$0xff]
      %v732 = vld [vmem:[%s722 + $0x48] sm:$0xff]
      %v733 = vld [vmem:[%s722 + $0x50] sm:$0xff]
      %v734 = vld [vmem:[%s722 + $0x58] sm:$0xff]
      %v735 = vld [vmem:[%s722 + $0x60] sm:$0xff]
      %v736 = vld [vmem:[%s722 + $0x68] sm:$0xff]
      %v737 = vld [vmem:[%s722 + $0x70] sm:$0xff]
      %v738 = vld [vmem:[%s722 + $0x78] sm:$0xff]
      %v739 = vld [vmem:[%s722 + $0x80] sm:$0xff]
      %v740 = vld [vmem:[%s722 + $0x88] sm:$0xff]
      %v741 = vld [vmem:[%s722 + $0x90] sm:$0xff]
      %v742 = vld [vmem:[%s722 + $0x98] sm:$0xff]
      %v743 = vld [vmem:[%s722 + $0xa0] sm:$0xff]
      %v744 = vld [vmem:[%s722 + $0xa8] sm:$0xff]
      %v745 = vld [vmem:[%s722 + $0xb0] sm:$0xff]
      %v746 = vld [vmem:[%s722 + $0xb8] sm:$0xff]
      %v747 = vld [vmem:[%s722 + $0xc0] sm:$0xff]
      %v748 = vld [vmem:[%s722 + $0xc8] sm:$0xff]
      %v749 = vld [vmem:[%s722 + $0xd0] sm:$0xff]
      %v750 = vld [vmem:[%s722 + $0xd8] sm:$0xff]
      %v751 = vld [vmem:[%s722 + $0xe0] sm:$0xff]
      %v752 = vld [vmem:[%s722 + $0xe8] sm:$0xff]
      %v753 = vld [vmem:[%s722 + $0xf0] sm:$0xff]
      %v754 = vld [vmem:[%s722 + $0xf8] sm:$0xff]
      %v755 = vld [vmem:[%s722 + $0x100] sm:$0xff]
      %v756 = vld [vmem:[%s722 + $0x108] sm:$0xff]
      %v757 = vld [vmem:[%s722 + $0x110] sm:$0xff]
      %v758 = vld [vmem:[%s722 + $0x118] sm:$0xff]
      %v759 = vld [vmem:[%s722 + $0x120] sm:$0xff]
      %v760 = vld [vmem:[%s722 + $0x128] sm:$0xff]
      %v761 = vld [vmem:[%s722 + $0x130] sm:$0xff]
      %v762 = vld [vmem:[%s722 + $0x138] sm:$0xff]
      %v763 = vld [vmem:[%s722 + $0x140] sm:$0xff]
      %v764 = vld [vmem:[%s722 + $0x148] sm:$0xff]
      %v765 = vld [vmem:[%s722 + $0x150] sm:$0xff]
      %v766 = vld [vmem:[%s722 + $0x158] sm:$0xff]
      %v767 = vld [vmem:[%s722 + $0x160] sm:$0xff]
      %v768 = vld [vmem:[%s722 + $0x168] sm:$0xff]
      %v769 = vld [vmem:[%s722 + $0x170] sm:$0xff]
      %v770 = vld [vmem:[%s722 + $0x178] sm:$0xff]
      %v771 = vld [vmem:[%s722 + $0x180] sm:$0xff]
      %v772 = vld [vmem:[%s722 + $0x188] sm:$0xff]
      %v773 = vld [vmem:[%s722 + $0x190] sm:$0xff]
      %v774 = vld [vmem:[%s722 + $0x198] sm:$0xff]
      %v775 = vld [vmem:[%s722 + $0x1a0] sm:$0xff]
      %v776 = vld [vmem:[%s722 + $0x1a8] sm:$0xff]
      %v777 = vld [vmem:[%s722 + $0x1b0] sm:$0xff]
      %v778 = vld [vmem:[%s722 + $0x1b8] sm:$0xff]
      %v779 = vld [vmem:[%s722 + $0x1c0] sm:$0xff]
      %v780 = vld [vmem:[%s722 + $0x1c8] sm:$0xff]
      %v781 = vld [vmem:[%s722 + $0x1d0] sm:$0xff]
      %v782 = vld [vmem:[%s722 + $0x1d8] sm:$0xff]
      %v783 = vld [vmem:[%s722 + $0x1e0] sm:$0xff]
      %v784 = vld [vmem:[%s722 + $0x1e8] sm:$0xff]
      %v785 = vld [vmem:[%s722 + $0x1f0] sm:$0xff]
      %v786 = vld [vmem:[%s722 + $0x1f8] sm:$0xff]
      %787 = vmatprep.subr.mxu0 %v724
      %788 = vmatpush1.msra.mxu0 %v723
      %789 = vmatprep.subr.mxu0 %v726
      %790 = vmatpush1.msra.mxu0 %v725
      %791 = vmatprep.subr.mxu0 %v728
      %792 = vmatpush1.msra.mxu0 %v727
      %793 = vmatprep.subr.mxu0 %v730
      %794 = vmatpush1.msra.mxu0 %v729
      %795 = vmatprep.subr.mxu0 %v732
      %796 = vmatpush1.msra.mxu0 %v731
      %797 = vmatprep.subr.mxu0 %v734
      %798 = vmatpush1.msra.mxu0 %v733
      %799 = vmatprep.subr.mxu0 %v736
      %800 = vmatpush1.msra.mxu0 %v735
      %801 = vmatprep.subr.mxu0 %v738
      %802 = vmatpush1.msra.mxu0 %v737
      %803 = vmatprep.subr.mxu0 %v740
      %804 = vmatpush1.msra.mxu0 %v739
      %805 = vmatprep.subr.mxu0 %v742
      %806 = vmatpush1.msra.mxu0 %v741
      %807 = vmatprep.subr.mxu0 %v744
      %808 = vmatpush1.msra.mxu0 %v743
      %809 = vmatprep.subr.mxu0 %v746
      %810 = vmatpush1.msra.mxu0 %v745
      %811 = vmatprep.subr.mxu0 %v748
      %812 = vmatpush1.msra.mxu0 %v747
      %813 = vmatprep.subr.mxu0 %v750
      %814 = vmatpush1.msra.mxu0 %v749
      %815 = vmatprep.subr.mxu0 %v752
      %816 = vmatpush1.msra.mxu0 %v751
      %817 = vmatprep.subr.mxu0 %v754
      %818 = vmatpush1.msra.mxu0 %v753
      %819 = vmatprep.subr.mxu0 %v756
      %820 = vmatpush1.msra.mxu0 %v755
      %821 = vmatprep.subr.mxu0 %v758
      %822 = vmatpush1.msra.mxu0 %v757
      %823 = vmatprep.subr.mxu0 %v760
      %824 = vmatpush1.msra.mxu0 %v759
      %825 = vmatprep.subr.mxu0 %v762
      %826 = vmatpush1.msra.mxu0 %v761
      %827 = vmatprep.subr.mxu0 %v764
      %828 = vmatpush1.msra.mxu0 %v763
      %829 = vmatprep.subr.mxu0 %v766
      %830 = vmatpush1.msra.mxu0 %v765
      %831 = vmatprep.subr.mxu0 %v768
      %832 = vmatpush1.msra.mxu0 %v767
      %833 = vmatprep.subr.mxu0 %v770
      %834 = vmatpush1.msra.mxu0 %v769
      %835 = vmatprep.subr.mxu0 %v772
      %836 = vmatpush1.msra.mxu0 %v771
      %837 = vmatprep.subr.mxu0 %v774
      %838 = vmatpush1.msra.mxu0 %v773
      %839 = vmatprep.subr.mxu0 %v776
      %840 = vmatpush1.msra.mxu0 %v775
      %841 = vmatprep.subr.mxu0 %v778
      %842 = vmatpush1.msra.mxu0 %v777
      %843 = vmatprep.subr.mxu0 %v780
      %844 = vmatpush1.msra.mxu0 %v779
      %845 = vmatprep.subr.mxu0 %v782
      %846 = vmatpush1.msra.mxu0 %v781
      %847 = vmatprep.subr.mxu0 %v784
      %848 = vmatpush1.msra.mxu0 %v783
      %849 = vmatprep.subr.mxu0 %v786
      %850 = vmatpush1.msra.mxu0 %v785
      %851 = vmatprep.mubr.f32.mxu0 %v341
      %852 = vmatmul.mubr.f32.gmra.mrb[0].mxu0 %v338
      %v853 = vpop.f32.mrb[0].mxu0
      %v854 = vadd.f32 0.0, %v853
      %v855 = vpop.f32.mrb[0].mxu0
      %v856 = vadd.f32 0.0, %v855
      %857 = vmatprep.mubr.f32.mxu0 %v340
      %858 = vmatmul.mubr.f32.gmra.mrb[0].mxu0 %v337
      %v859 = vpop.f32.mrb[0].mxu0
      %v860 = vadd.f32 0.0, %v859
      %v861 = vpop.f32.mrb[0].mxu0
      %v862 = vadd.f32 0.0, %v861
      %863 = vdwg.mxu0
      %864 = vmatprep.subr.mxu0 %v659
      %865 = vmatpush1.msra.mxu0 %v658
      %866 = vmatprep.subr.mxu0 %v661
      %867 = vmatpush1.msra.mxu0 %v660
      %868 = vmatprep.subr.mxu0 %v663
      %869 = vmatpush1.msra.mxu0 %v662
      %870 = vmatprep.subr.mxu0 %v665
      %871 = vmatpush1.msra.mxu0 %v664
      %872 = vmatprep.subr.mxu0 %v667
      %873 = vmatpush1.msra.mxu0 %v666
      %874 = vmatprep.subr.mxu0 %v669
      %875 = vmatpush1.msra.mxu0 %v668
      %876 = vmatprep.subr.mxu0 %v671
      %877 = vmatpush1.msra.mxu0 %v670
      %878 = vmatprep.subr.mxu0 %v673
      %879 = vmatpush1.msra.mxu0 %v672
      %880 = vmatprep.subr.mxu0 %v675
      %881 = vmatpush1.msra.mxu0 %v674
      %882 = vmatprep.subr.mxu0 %v677
      %883 = vmatpush1.msra.mxu0 %v676
      %884 = vmatprep.subr.mxu0 %v679
      %885 = vmatpush1.msra.mxu0 %v678
      %886 = vmatprep.subr.mxu0 %v681
      %887 = vmatpush1.msra.mxu0 %v680
      %888 = vmatprep.subr.mxu0 %v683
      %889 = vmatpush1.msra.mxu0 %v682
      %890 = vmatprep.subr.mxu0 %v685
      %891 = vmatpush1.msra.mxu0 %v684
      %892 = vmatprep.subr.mxu0 %v687
      %893 = vmatpush1.msra.mxu0 %v686
      %894 = vmatprep.subr.mxu0 %v689
      %895 = vmatpush1.msra.mxu0 %v688
      %896 = vmatprep.subr.mxu0 %v691
      %897 = vmatpush1.msra.mxu0 %v690
      %898 = vmatprep.subr.mxu0 %v693
      %899 = vmatpush1.msra.mxu0 %v692
      %900 = vmatprep.subr.mxu0 %v695
      %901 = vmatpush1.msra.mxu0 %v694
      %902 = vmatprep.subr.mxu0 %v697
      %903 = vmatpush1.msra.mxu0 %v696
      %904 = vmatprep.subr.mxu0 %v699
      %905 = vmatpush1.msra.mxu0 %v698
      %906 = vmatprep.subr.mxu0 %v701
      %907 = vmatpush1.msra.mxu0 %v700
      %908 = vmatprep.subr.mxu0 %v703
      %909 = vmatpush1.msra.mxu0 %v702
      %910 = vmatprep.subr.mxu0 %v705
      %911 = vmatpush1.msra.mxu0 %v704
      %912 = vmatprep.subr.mxu0 %v707
      %913 = vmatpush1.msra.mxu0 %v706
      %914 = vmatprep.subr.mxu0 %v709
      %915 = vmatpush1.msra.mxu0 %v708
      %916 = vmatprep.subr.mxu0 %v711
      %917 = vmatpush1.msra.mxu0 %v710
      %918 = vmatprep.subr.mxu0 %v713
      %919 = vmatpush1.msra.mxu0 %v712
      %920 = vmatprep.subr.mxu0 %v715
      %921 = vmatpush1.msra.mxu0 %v714
      %922 = vmatprep.subr.mxu0 %v717
      %923 = vmatpush1.msra.mxu0 %v716
      %924 = vmatprep.subr.mxu0 %v719
      %925 = vmatpush1.msra.mxu0 %v718
      %926 = vmatprep.subr.mxu0 %v721
      %927 = vmatpush1.msra.mxu0 %v720
      %928 = vmatprep.mubr.f32.mxu0 %v199
      %929 = vmatmul.mubr.f32.gmra.mrb[0].mxu0 %v198
      %v930 = vpop.f32.mrb[0].mxu0
      %v931 = vadd.f32 %v854, %v930
      %v932 = vpop.f32.mrb[0].mxu0
      %v933 = vadd.f32 %v856, %v932
      %934 = vmatprep.mubr.f32.mxu0 %v201
      %935 = vmatmul.mubr.f32.gmra.mrb[0].mxu0 %v200
      %v936 = vpop.f32.mrb[0].mxu0
      %v937 = vadd.f32 %v860, %v936
      %v938 = vpop.f32.mrb[0].mxu0
      %v939 = vadd.f32 %v862, %v938
      %940 = vdwg.mxu0
      %s941 = scalar_lea.vmem %s1, 2560
      %v942 = vld [vmem:[%s941] sm:$0xff]
      %v943 = vld [vmem:[%s941 + $0x8] sm:$0xff]
      %v944 = vld [vmem:[%s941 + $0x10] sm:$0xff]
      %v945 = vld [vmem:[%s941 + $0x18] sm:$0xff]
      %v946 = vld [vmem:[%s941 + $0x20] sm:$0xff]
      %v947 = vld [vmem:[%s941 + $0x28] sm:$0xff]
      %v948 = vld [vmem:[%s941 + $0x30] sm:$0xff]
      %v949 = vld [vmem:[%s941 + $0x38] sm:$0xff]
      %v950 = vld [vmem:[%s941 + $0x40] sm:$0xff]
      %v951 = vld [vmem:[%s941 + $0x48] sm:$0xff]
      %v952 = vld [vmem:[%s941 + $0x50] sm:$0xff]
      %v953 = vld [vmem:[%s941 + $0x58] sm:$0xff]
      %v954 = vld [vmem:[%s941 + $0x60] sm:$0xff]
      %v955 = vld [vmem:[%s941 + $0x68] sm:$0xff]
      %v956 = vld [vmem:[%s941 + $0x70] sm:$0xff]
      %v957 = vld [vmem:[%s941 + $0x78] sm:$0xff]
      %v958 = vld [vmem:[%s941 + $0x80] sm:$0xff]
      %v959 = vld [vmem:[%s941 + $0x88] sm:$0xff]
      %v960 = vld [vmem:[%s941 + $0x90] sm:$0xff]
      %v961 = vld [vmem:[%s941 + $0x98] sm:$0xff]
      %v962 = vld [vmem:[%s941 + $0xa0] sm:$0xff]
      %v963 = vld [vmem:[%s941 + $0xa8] sm:$0xff]
      %v964 = vld [vmem:[%s941 + $0xb0] sm:$0xff]
      %v965 = vld [vmem:[%s941 + $0xb8] sm:$0xff]
      %v966 = vld [vmem:[%s941 + $0xc0] sm:$0xff]
      %v967 = vld [vmem:[%s941 + $0xc8] sm:$0xff]
      %v968 = vld [vmem:[%s941 + $0xd0] sm:$0xff]
      %v969 = vld [vmem:[%s941 + $0xd8] sm:$0xff]
      %v970 = vld [vmem:[%s941 + $0xe0] sm:$0xff]
      %v971 = vld [vmem:[%s941 + $0xe8] sm:$0xff]
      %v972 = vld [vmem:[%s941 + $0xf0] sm:$0xff]
      %v973 = vld [vmem:[%s941 + $0xf8] sm:$0xff]
      %v974 = vld [vmem:[%s941 + $0x100] sm:$0xff]
      %v975 = vld [vmem:[%s941 + $0x108] sm:$0xff]
      %v976 = vld [vmem:[%s941 + $0x110] sm:$0xff]
      %v977 = vld [vmem:[%s941 + $0x118] sm:$0xff]
      %v978 = vld [vmem:[%s941 + $0x120] sm:$0xff]
      %v979 = vld [vmem:[%s941 + $0x128] sm:$0xff]
      %v980 = vld [vmem:[%s941 + $0x130] sm:$0xff]
      %v981 = vld [vmem:[%s941 + $0x138] sm:$0xff]
      %v982 = vld [vmem:[%s941 + $0x140] sm:$0xff]
      %v983 = vld [vmem:[%s941 + $0x148] sm:$0xff]
      %v984 = vld [vmem:[%s941 + $0x150] sm:$0xff]
      %v985 = vld [vmem:[%s941 + $0x158] sm:$0xff]
      %v986 = vld [vmem:[%s941 + $0x160] sm:$0xff]
      %v987 = vld [vmem:[%s941 + $0x168] sm:$0xff]
      %v988 = vld [vmem:[%s941 + $0x170] sm:$0xff]
      %v989 = vld [vmem:[%s941 + $0x178] sm:$0xff]
      %v990 = vld [vmem:[%s941 + $0x180] sm:$0xff]
      %v991 = vld [vmem:[%s941 + $0x188] sm:$0xff]
      %v992 = vld [vmem:[%s941 + $0x190] sm:$0xff]
      %v993 = vld [vmem:[%s941 + $0x198] sm:$0xff]
      %v994 = vld [vmem:[%s941 + $0x1a0] sm:$0xff]
      %v995 = vld [vmem:[%s941 + $0x1a8] sm:$0xff]
      %v996 = vld [vmem:[%s941 + $0x1b0] sm:$0xff]
      %v997 = vld [vmem:[%s941 + $0x1b8] sm:$0xff]
      %v998 = vld [vmem:[%s941 + $0x1c0] sm:$0xff]
      %v999 = vld [vmem:[%s941 + $0x1c8] sm:$0xff]
      %v1000 = vld [vmem:[%s941 + $0x1d0] sm:$0xff]
      %v1001 = vld [vmem:[%s941 + $0x1d8] sm:$0xff]
      %v1002 = vld [vmem:[%s941 + $0x1e0] sm:$0xff]
      %v1003 = vld [vmem:[%s941 + $0x1e8] sm:$0xff]
      %v1004 = vld [vmem:[%s941 + $0x1f0] sm:$0xff]
      %v1005 = vld [vmem:[%s941 + $0x1f8] sm:$0xff]
      %1006 = vmatprep.subr.mxu0 %v943
      %1007 = vmatpush1.msra.mxu0 %v942
      %1008 = vmatprep.subr.mxu0 %v945
      %1009 = vmatpush1.msra.mxu0 %v944
      %1010 = vmatprep.subr.mxu0 %v947
      %1011 = vmatpush1.msra.mxu0 %v946
      %1012 = vmatprep.subr.mxu0 %v949
      %1013 = vmatpush1.msra.mxu0 %v948
      %1014 = vmatprep.subr.mxu0 %v951
      %1015 = vmatpush1.msra.mxu0 %v950
      %1016 = vmatprep.subr.mxu0 %v953
      %1017 = vmatpush1.msra.mxu0 %v952
      %1018 = vmatprep.subr.mxu0 %v955
      %1019 = vmatpush1.msra.mxu0 %v954
      %1020 = vmatprep.subr.mxu0 %v957
      %1021 = vmatpush1.msra.mxu0 %v956
      %1022 = vmatprep.subr.mxu0 %v959
      %1023 = vmatpush1.msra.mxu0 %v958
      %1024 = vmatprep.subr.mxu0 %v961
      %1025 = vmatpush1.msra.mxu0 %v960
      %1026 = vmatprep.subr.mxu0 %v963
      %1027 = vmatpush1.msra.mxu0 %v962
      %1028 = vmatprep.subr.mxu0 %v965
      %1029 = vmatpush1.msra.mxu0 %v964
      %1030 = vmatprep.subr.mxu0 %v967
      %1031 = vmatpush1.msra.mxu0 %v966
      %1032 = vmatprep.subr.mxu0 %v969
      %1033 = vmatpush1.msra.mxu0 %v968
      %1034 = vmatprep.subr.mxu0 %v971
      %1035 = vmatpush1.msra.mxu0 %v970
      %1036 = vmatprep.subr.mxu0 %v973
      %1037 = vmatpush1.msra.mxu0 %v972
      %1038 = vmatprep.subr.mxu0 %v975
      %1039 = vmatpush1.msra.mxu0 %v974
      %1040 = vmatprep.subr.mxu0 %v977
      %1041 = vmatpush1.msra.mxu0 %v976
      %1042 = vmatprep.subr.mxu0 %v979
      %1043 = vmatpush1.msra.mxu0 %v978
      %1044 = vmatprep.subr.mxu0 %v981
      %1045 = vmatpush1.msra.mxu0 %v980
      %1046 = vmatprep.subr.mxu0 %v983
      %1047 = vmatpush1.msra.mxu0 %v982
      %1048 = vmatprep.subr.mxu0 %v985
      %1049 = vmatpush1.msra.mxu0 %v984
      %1050 = vmatprep.subr.mxu0 %v987
      %1051 = vmatpush1.msra.mxu0 %v986
      %1052 = vmatprep.subr.mxu0 %v989
      %1053 = vmatpush1.msra.mxu0 %v988
      %1054 = vmatprep.subr.mxu0 %v991
      %1055 = vmatpush1.msra.mxu0 %v990
      %1056 = vmatprep.subr.mxu0 %v993
      %1057 = vmatpush1.msra.mxu0 %v992
      %1058 = vmatprep.subr.mxu0 %v995
      %1059 = vmatpush1.msra.mxu0 %v994
      %1060 = vmatprep.subr.mxu0 %v997
      %1061 = vmatpush1.msra.mxu0 %v996
      %1062 = vmatprep.subr.mxu0 %v999
      %1063 = vmatpush1.msra.mxu0 %v998
      %1064 = vmatprep.subr.mxu0 %v1001
      %1065 = vmatpush1.msra.mxu0 %v1000
      %1066 = vmatprep.subr.mxu0 %v1003
      %1067 = vmatpush1.msra.mxu0 %v1002
      %1068 = vmatprep.subr.mxu0 %v1005
      %1069 = vmatpush1.msra.mxu0 %v1004
      %1070 = vmatprep.mubr.f32.mxu0 %v571
      %1071 = vmatmul.mubr.f32.gmra.mrb[0].mxu0 %v568
      %v1072 = vpop.f32.mrb[0].mxu0
      %v1073 = vadd.f32 0.0, %v1072
      %v1074 = vpop.f32.mrb[0].mxu0
      %v1075 = vadd.f32 0.0, %v1074
      %1076 = vmatprep.mubr.f32.mxu0 %v570
      %1077 = vmatmul.mubr.f32.gmra.mrb[0].mxu0 %v567
      %v1078 = vpop.f32.mrb[0].mxu0
      %v1079 = vadd.f32 0.0, %v1078
      %v1080 = vpop.f32.mrb[0].mxu0
      %v1081 = vadd.f32 0.0, %v1080
      %1082 = vdwg.mxu0
      %v1083 = vadd.f32 %v931, %v1073
      %v1084 = vadd.f32 %v933, %v1075
      %v1085 = vadd.f32 %v937, %v1079
      %v1086 = vadd.f32 %v939, %v1081
      %v1087 = vmax.f32 %v653, %v1083
      %v1088 = vmax.f32 %v654, %v1084
      %v1089 = vmax.f32 %v655, %v1085
      %v1090 = vmax.f32 %v656, %v1086
      %v1091 = vld [vmem:[%s2] sm:$0x7f]
      %vm1092 = vcmask 113664
      %v1094 = vsel %vm1092, %v1091, 0
      %v1097 = vsel %vm565, %v1089, 0
      %v1100 = vsel %vm565, %v1090, 0
      %1102 = vmatprep.subr.mxu0 %v1088
      %1103 = vmatpush1.msra.mxu0 %v1087
      %1104 = vmatprep.subr.mxu0 %v1100
      %1105 = vmatpush1.msra.mxu0 %v1097
      %1106 = vmatprep.subr.mxu0 0.0
      %1107 = vmatpush1.msra.mxu0 0.0
      %1108 = vmatprep.subr.mxu0 0.0
      %1109 = vmatpush1.msra.mxu0 0.0
      %1110 = vmatprep.subr.mxu0 0.0
      %1111 = vmatpush1.msra.mxu0 0.0
      %1112 = vmatprep.subr.mxu0 0.0
      %1113 = vmatpush1.msra.mxu0 0.0
      %1114 = vmatprep.subr.mxu0 0.0
      %1115 = vmatpush1.msra.mxu0 0.0
      %1116 = vmatprep.subr.mxu0 0.0
      %1117 = vmatpush1.msra.mxu0 0.0
      %1118 = vmatprep.subr.mxu0 0.0
      %1119 = vmatpush1.msra.mxu0 0.0
      %1120 = vmatprep.subr.mxu0 0.0
      %1121 = vmatpush1.msra.mxu0 0.0
      %1122 = vmatprep.subr.mxu0 0.0
      %1123 = vmatpush1.msra.mxu0 0.0
      %1124 = vmatprep.subr.mxu0 0.0
      %1125 = vmatpush1.msra.mxu0 0.0
      %1126 = vmatprep.subr.mxu0 0.0
      %1127 = vmatpush1.msra.mxu0 0.0
      %1128 = vmatprep.subr.mxu0 0.0
      %1129 = vmatpush1.msra.mxu0 0.0
      %1130 = vmatprep.subr.mxu0 0.0
      %1131 = vmatpush1.msra.mxu0 0.0
      %1132 = vmatprep.subr.mxu0 0.0
      %1133 = vmatpush1.msra.mxu0 0.0
      %1134 = vmatprep.subr.mxu0 0.0
      %1135 = vmatpush1.msra.mxu0 0.0
      %1136 = vmatprep.subr.mxu0 0.0
      %1137 = vmatpush1.msra.mxu0 0.0
      %1138 = vmatprep.subr.mxu0 0.0
      %1139 = vmatpush1.msra.mxu0 0.0
      %1140 = vmatprep.subr.mxu0 0.0
      %1141 = vmatpush1.msra.mxu0 0.0
      %1142 = vmatprep.subr.mxu0 0.0
      %1143 = vmatpush1.msra.mxu0 0.0
      %1144 = vmatprep.subr.mxu0 0.0
      %1145 = vmatpush1.msra.mxu0 0.0
      %1146 = vmatprep.subr.mxu0 0.0
      %1147 = vmatpush1.msra.mxu0 0.0
      %1148 = vmatprep.subr.mxu0 0.0
      %1149 = vmatpush1.msra.mxu0 0.0
      %1150 = vmatprep.subr.mxu0 0.0
      %1151 = vmatpush1.msra.mxu0 0.0
      %1152 = vmatprep.subr.mxu0 0.0
      %1153 = vmatpush1.msra.mxu0 0.0
      %1154 = vmatprep.subr.mxu0 0.0
      %1155 = vmatpush1.msra.mxu0 0.0
      %1156 = vmatprep.subr.mxu0 0.0
      %1157 = vmatpush1.msra.mxu0 0.0
      %1158 = vmatprep.subr.mxu0 0.0
      %1159 = vmatpush1.msra.mxu0 0.0
      %1160 = vmatprep.subr.mxu0 0.0
      %1161 = vmatpush1.msra.mxu0 0.0
      %1162 = vmatprep.subr.mxu0 0.0
      %1163 = vmatpush1.msra.mxu0 0.0
      %1164 = vmatprep.subr.mxu0 0.0
      %1165 = vmatpush1.msra.mxu0 0.0
      %1166 = vmatprep.mubr.f32.mxu0 0.0
      %1167 = vmatmul.mubr.f32.gmra.mrb[0].mxu0 %v1094
      %v1168 = vpop.f32.mrb[0].mxu0
      %v1169 = vadd.f32 0.0, %v1168
      %v1170 = vpop.f32.mrb[0].mxu0
      %v1171 = vadd.f32 0.0, %v1170
      %1172 = vdwg.mxu0
      %s1173 = scalar_lea.vmem %s2, 8
      %v1174 = vld [vmem:[%s1173] sm:$0x7f]
      %v1176 = vsel %vm1092, %v1174, 0
      %1178 = vmatprep.subr.mxu0 %v1088
      %1179 = vmatpush1.msra.mxu0 %v1087
      %1180 = vmatprep.subr.mxu0 %v1100
      %1181 = vmatpush1.msra.mxu0 %v1097
      %1182 = vmatprep.subr.mxu0 0.0
      %1183 = vmatpush1.msra.mxu0 0.0
      %1184 = vmatprep.subr.mxu0 0.0
      %1185 = vmatpush1.msra.mxu0 0.0
      %1186 = vmatprep.subr.mxu0 0.0
      %1187 = vmatpush1.msra.mxu0 0.0
      %1188 = vmatprep.subr.mxu0 0.0
      %1189 = vmatpush1.msra.mxu0 0.0
      %1190 = vmatprep.subr.mxu0 0.0
      %1191 = vmatpush1.msra.mxu0 0.0
      %1192 = vmatprep.subr.mxu0 0.0
      %1193 = vmatpush1.msra.mxu0 0.0
      %1194 = vmatprep.subr.mxu0 0.0
      %1195 = vmatpush1.msra.mxu0 0.0
      %1196 = vmatprep.subr.mxu0 0.0
      %1197 = vmatpush1.msra.mxu0 0.0
      %1198 = vmatprep.subr.mxu0 0.0
      %1199 = vmatpush1.msra.mxu0 0.0
      %1200 = vmatprep.subr.mxu0 0.0
      %1201 = vmatpush1.msra.mxu0 0.0
      %1202 = vmatprep.subr.mxu0 0.0
      %1203 = vmatpush1.msra.mxu0 0.0
      %1204 = vmatprep.subr.mxu0 0.0
      %1205 = vmatpush1.msra.mxu0 0.0
      %1206 = vmatprep.subr.mxu0 0.0
      %1207 = vmatpush1.msra.mxu0 0.0
      %1208 = vmatprep.subr.mxu0 0.0
      %1209 = vmatpush1.msra.mxu0 0.0
      %1210 = vmatprep.subr.mxu0 0.0
      %1211 = vmatpush1.msra.mxu0 0.0
      %1212 = vmatprep.subr.mxu0 0.0
      %1213 = vmatpush1.msra.mxu0 0.0
      %1214 = vmatprep.subr.mxu0 0.0
      %1215 = vmatpush1.msra.mxu0 0.0
      %1216 = vmatprep.subr.mxu0 0.0
      %1217 = vmatpush1.msra.mxu0 0.0
      %1218 = vmatprep.subr.mxu0 0.0
      %1219 = vmatpush1.msra.mxu0 0.0
      %1220 = vmatprep.subr.mxu0 0.0
      %1221 = vmatpush1.msra.mxu0 0.0
      %1222 = vmatprep.subr.mxu0 0.0
      %1223 = vmatpush1.msra.mxu0 0.0
      %1224 = vmatprep.subr.mxu0 0.0
      %1225 = vmatpush1.msra.mxu0 0.0
      %1226 = vmatprep.subr.mxu0 0.0
      %1227 = vmatpush1.msra.mxu0 0.0
      %1228 = vmatprep.subr.mxu0 0.0
      %1229 = vmatpush1.msra.mxu0 0.0
      %1230 = vmatprep.subr.mxu0 0.0
      %1231 = vmatpush1.msra.mxu0 0.0
      %1232 = vmatprep.subr.mxu0 0.0
      %1233 = vmatpush1.msra.mxu0 0.0
      %1234 = vmatprep.subr.mxu0 0.0
      %1235 = vmatpush1.msra.mxu0 0.0
      %1236 = vmatprep.subr.mxu0 0.0
      %1237 = vmatpush1.msra.mxu0 0.0
      %1238 = vmatprep.subr.mxu0 0.0
      %1239 = vmatpush1.msra.mxu0 0.0
      %1240 = vmatprep.subr.mxu0 0.0
      %1241 = vmatpush1.msra.mxu0 0.0
      %1242 = vmatprep.mubr.f32.mxu0 0.0
      %1243 = vmatmul.mubr.f32.gmra.mrb[0].mxu0 %v1176
      %v1244 = vpop.f32.mrb[0].mxu0
      %v1245 = vadd.f32 0.0, %v1244
      %v1246 = vpop.f32.mrb[0].mxu0
      %v1247 = vadd.f32 0.0, %v1246
      %1248 = vdwg.mxu0
      %v1249 = vmax.f32 %v1169, %v1245
      %v1250 = vmax.f32 %v1171, %v1247
      %v1251 = vld [vmem:[%s3] sm:$0x3]
      %v1253 = vlaneseq
      %v1254 = vshrl.u32 %v1253, 7
      %v1255 = vsub.s32 0, %v1254
      %v1256 = vrot.slane %v1251, %v1255
      %v1257 = vlaneseq
      %v1258 = vshrl.u32 %v1257, 7
      %v1259 = vsub.s32 1, %v1258
      %v1260 = vrot.slane %v1251, %v1259
      %v1263 = vadd.f32 %v1249, %v1256
      %v1264 = vadd.f32 %v1250, %v1260
      %v1265 = vmax.f32 %v1263, 0.0
      %v1266 = vmax.f32 %v1264, 0.0
      %1267 = vst [vmem:[%s197] sm:$0x7f] %v1265
      %vm1268 = vcmask 784384
      %1269 = vst.msk [vmem:[%s197 + $0x8] sm:$0x7f] %vm1268, %v1266
      %p1270 = scmp.lt.s32.totalorder %s15, 1
      %s1271 = scalar_select %p1270, %s15, 1
      %s1272 = smul.addr %s1271, 2
      %s1273 = smul.addr %s1272, 8
      %s1274 = scalar_lea.vmem %s4, %s1273
      // Predicated region
      $region37: #{conv_classifier_v1_forward.4} parent=35 // pred_check
        %p1275 = pneg %p122
      $region38: #{conv_classifier_v1_forward.4} parent=35 // pred_check_branch
        %1277 = sbr.rel (%p1275) target = $region40
      $region39: #{conv_classifier_v1_forward.4} parent=35 // pred_region
        _
      $region40: #{conv_classifier_v1_forward.4} parent=35 // pred_fallthru
        _
    $region36: #{conv_classifier_v1_forward.4} parent=5 // pred_fallthru
      _
    %p1278 = scmp.le.s32.totalorder 2, %s10
    // Predicated region
    $region41: #{conv_classifier_v1_forward.4} parent=5 // pred_check
      %p1279 = pneg %p1278
    $region42: #{conv_classifier_v1_forward.4} parent=5 // pred_check_branch
      %1281 = sbr.rel (%p1279) target = $region44
    $region43: #{conv_classifier_v1_forward.4} parent=5 // pred_region
      %s1282 = ssub.s32 %s10, 2
      // Predicated region
      $region45: #{conv_classifier_v1_forward.4} parent=43 // pred_check
        %p1283 = pneg %p128
      $region46: #{conv_classifier_v1_forward.4} parent=43 // pred_check_branch
        %1285 = sbr.rel (%p1283) target = $region48
      $region47: #{conv_classifier_v1_forward.4} parent=43 // pred_region
        %p1286 = scmp.lt.s32.totalorder %s16, 1
        %s1287 = scalar_select %p1286, %s16, 1
        %s1288 = smul.addr %s1287, 2
        %s1289 = smul.addr %s1288, 8
        %s1290 = scalar_lea.vmem %s4, %s1289
      $region48: #{conv_classifier_v1_forward.4} parent=43 // pred_fallthru
        _
    $region44: #{conv_classifier_v1_forward.4} parent=5 // pred_fallthru
      _
  $region6: #{conv_classifier_v1_forward.4} parent=0 // loop_footer
    %s14 = sadd.s32 1, %s10
  $region7: #{conv_classifier_v1_forward.4} parent=0 // loop_footer_branch
    %9 = sbr.rel target = $region3
  $region8: #{conv_classifier_v1_forward.4} parent=0 // loop_exit
    _

</llo_original>
